<compile_context>
chip_gen: v6e
topology: v6e:2x2x1
jax: 0.10.0
libtpu: 0.0.40
codegen_flags: <defaults>
</compile_context>

<pallas_src>
import numpy as np
import jax
import jax.numpy as jnp
from jax import lax
from jax.experimental import pallas as pl
from jax.experimental.pallas import tpu as pltpu

# ----------------------------- problem sizes --------------------------------
B = 2                     # batch
DIM = 16                  # MFFF dim (multiple of 16 so int(dim*e)//4 >= 1)
E = 0.25
H, W = 16, 16
HW = H * W
C1 = round(DIM * E)       # channels routed through ImprovedFFTKernel
C2 = DIM - C1             # identity channels
CM = int(DIM * E)         # ImprovedFFTKernel dim (== C1)
C4 = CM // 4              # hidden width of channel_attention
K3, K5, K31 = 3, 5, 31
BN_EPS = 1e-3

ROWS = DIM * B            # 32 I/O rows, batch-major r = b*DIM + c
MROWS = CM * B            # 8 rows inside the spectral branch (channel-major)

# rows of the packed per-row bias tensor bb (13, MROWS, 1)
(R_BIN, R_BFAC, R_BC1, R_B35, R_BDW33, R_WDW11, R_BDW11,
 R_BCA2, R_BF1, R_BF2, R_ALPHA, R_BETA, R_BOUT) = range(13)
# rows of the packed folded-BN tensor bn (4, ROWS, 1)
S_CV1, T_CV1, S_CV2, T_CV2 = range(4)


# --------------------------- in-kernel helpers -------------------------------
def _erf(x):
    # Abramowitz & Stegun 7.1.26 (|err| < 1.5e-7); exp goes to the EUP slot.
    a1, a2, a3, a4, a5 = 0.254829592, -0.284496736, 1.421413741, -1.453152027, 1.061405429
    p = 0.3275911
    s = jnp.where(x >= 0.0, 1.0, -1.0)
    z = jnp.abs(x)
    t = 1.0 / (1.0 + p * z)
    poly = ((((a5 * t + a4) * t + a3) * t + a2) * t + a1) * t
    return s * (1.0 - poly * jnp.exp(-z * z))


def _gelu(x):     # nn.GELU() default (exact erf form)
    return 0.5 * x * (1.0 + _erf(x * 0.7071067811865476))


def _silu(x):
    return x * jax.nn.sigmoid(x)


# ------------------------------- the kernel ----------------------------------
def mfff_kernel(x_ref, kr_cv1_ref, kr_cv2m_ref, kr_cv2i_ref,
                kr_in_ref, kr_c1_ref, kr_f1_ref, kr_f2_ref, kr_out_ref,
                kr_fac_ref, kr_ca1_ref, kr_ca2_ref,
                bn_ref, bb_ref, bca1_ref, dft_ref, s35_hbm, s31_hbm,
                o_ref, s35_buf, s31_buf, dma_sem):
    f32 = jnp.float32

    # Kick off the depthwise-operator DMAs immediately so they overlap with the
    # cv1 / in_conv / fac / FFT compute below (they are only needed later).
    cp35 = pltpu.make_async_copy(s35_hbm, s35_buf, dma_sem.at[0])
    cp31 = pltpu.make_async_copy(s31_hbm, s31_buf, dma_sem.at[1])
    cp35.start()
    cp31.start()

    x = x_ref[...]                                           # (ROWS, HW)

    def mix(w_ref, a):
        # channel-mixing 1x1 conv as a single MXU matmul (host-built matrices)
        return jnp.dot(w_ref[...], a, preferred_element_type=f32)

    def mixvec(w_ref, v, bias):
        # tiny channel mix on (rows, 1) vectors (spatial size 1): cheap VALU loop
        w = w_ref[...]
        acc = bias
        for j in range(w.shape[1]):
            acc = acc + w[:, j:j + 1] * v[j:j + 1, :]
        return acc

    def fft2(a):
        return (jnp.dot(a, dft_ref[0], preferred_element_type=f32),
                jnp.dot(a, dft_ref[1], preferred_element_type=f32))

    def ifft2_abs(zre, zim):
        # Stack re/im so each pushed (256,256) DFT operator is reused for both
        # halves (2 weight pushes instead of 4 per ifft2).  The 'backward'
        # normalization (1/HW, an exact power of two) is applied afterwards.
        m = zre.shape[0]
        z = jnp.concatenate([zre, zim], axis=0)              # (2m, 256)
        pr = jnp.dot(z, dft_ref[0], preferred_element_type=f32)
        pi = jnp.dot(z, dft_ref[1], preferred_element_type=f32)
        qre = (pr[:m] + pi[m:]) * (1.0 / HW)
        qim = (pr[m:] - pi[:m]) * (1.0 / HW)
        return jnp.sqrt(qre * qre + qim * qim)

    def dwconv(a, s_buf, bias):
        # Depthwise KxK conv via per-channel dense (HW,HW) bf16 operators.
        # Statically row-sliced (B,256) LHS per channel: only the useful rows
        # are computed (no masked full-width matmuls, no discarded pops).
        parts = []
        for c in range(CM):
            lhs = a[c * B:(c + 1) * B, :].astype(jnp.bfloat16)
            parts.append(bias[c * B:(c + 1) * B] +
                         jnp.dot(lhs, s_buf[c], preferred_element_type=f32))
        return jnp.concatenate(parts, axis=0)                # channel-major rows

    # ---- cv1 = Conv2d(1x1, bias=False) + folded eval BN + SiLU ----
    # (input rows batch-major; kr_cv1 also permutes to internal channel-major)
    y1 = _silu(mix(kr_cv1_ref, x) * bn_ref[S_CV1] + bn_ref[T_CV1])
    xm = y1[:MROWS]                                          # ok_branch (8,256)
    ident = y1[MROWS:]                                       # identity  (24,256)

    # ---- ImprovedFFTKernel.in_conv : 1x1 conv + exact GELU ----
    out1 = _gelu(mix(kr_in_ref, xm) + bb_ref[R_BIN])

    # ---- fac_pool + fac_conv -> per-(channel,batch) spectral gain ----
    pooled = jnp.mean(out1, axis=1, keepdims=True)           # (8,1)
    x_att = mixvec(kr_fac_ref, pooled, bb_ref[R_BFAC])       # (8,1)

    # ---- x_fca = abs(ifft2(x_att * fft2(out1)))  (dense DFT matmuls) ----
    yre, yim = fft2(out1)
    x_fca = ifft2_abs(x_att * yre, x_att * yim)

    # ---- multi-scale spatial convs: 1x1 + fused (3x3 + 5x5) depthwise ----
    x_sca = mix(kr_c1_ref, x_fca) + bb_ref[R_BC1]
    cp35.wait()                                              # s35 operator ready
    x_sca = x_sca + dwconv(x_fca, s35_buf, bb_ref[R_B35])

    # ---- channel attention (from x_att) ----
    ca = jnp.maximum(mixvec(kr_ca1_ref, x_att, bca1_ref[...]), 0.0)
    cw = jax.nn.sigmoid(mixvec(kr_ca2_ref, ca, bb_ref[R_BCA2]))
    x_sca = x_sca * cw

    # ---- FFM: abs(ifft2(f1 * fft2(f2))) * alpha + x * beta ----
    f1 = mix(kr_f1_ref, x_sca) + bb_ref[R_BF1]
    f2 = mix(kr_f2_ref, x_sca) + bb_ref[R_BF2]
    y2re, y2im = fft2(f2)
    x_sca = ifft2_abs(f1 * y2re, f1 * y2im) * bb_ref[R_ALPHA] + x_sca * bb_ref[R_BETA]

    # ---- dw_33 (31x31 depthwise) + dw_11 + residual + ReLU + out_conv ----
    cp31.wait()                                              # s31 operator ready
    dw33 = dwconv(out1, s31_buf, bb_ref[R_BDW33])
    dw11 = out1 * bb_ref[R_WDW11] + bb_ref[R_BDW11]
    o = jnp.maximum(xm + dw33 + dw11 + x_sca, 0.0)
    m_out = mix(kr_out_ref, o) + bb_ref[R_BOUT]

    # ---- cv2 on concat([m_out, ident]); kr_cv2* also permute back to batch-major ----
    z = mix(kr_cv2m_ref, m_out) + mix(kr_cv2i_ref, ident)
    z = _silu(z * bn_ref[S_CV2] + bn_ref[T_CV2])
    o_ref[...] = z.astype(o_ref.dtype)


# ------------------------------ host wrapper ---------------------------------
def _full_spec(a):
    n = a.ndim
    return pl.BlockSpec(tuple(a.shape), lambda i, _n=n: (0,) * _n)


_OPERAND_ORDER = ["kr_cv1", "kr_cv2m", "kr_cv2i", "kr_in", "kr_c1", "kr_f1",
                  "kr_f2", "kr_out", "kr_fac", "kr_ca1", "kr_ca2",
                  "bn", "bb", "bca1", "dft", "s35", "s31"]
_HBM_OPERANDS = {"s35", "s31"}        # kept in HBM, DMA'd manually (overlapped)


def mfff_forward(x, ops):
    """x: (B, DIM, H, W) float32 NCHW (same convention as the PyTorch module)."""
    assert x.shape == (B, DIM, H, W)
    # batch-major rows r = b*DIM + c  ->  pure reshape, no transpose round-trip
    xr = x.reshape(ROWS, HW)
    operands = [ops[k] for k in _OPERAND_ORDER]
    in_specs = [_full_spec(xr)]
    for k, a in zip(_OPERAND_ORDER, operands):
        if k in _HBM_OPERANDS:
            in_specs.append(pl.BlockSpec(memory_space=pl.ANY))
        else:
            in_specs.append(_full_spec(a))
    out_rows = pl.pallas_call(
        mfff_kernel,
        out_shape=jax.ShapeDtypeStruct((ROWS, HW), x.dtype),
        grid=(1,),
        in_specs=in_specs,
        out_specs=pl.BlockSpec((ROWS, HW), lambda i: (0, 0)),
        scratch_shapes=[pltpu.VMEM((CM, HW, HW), jnp.bfloat16),   # s35 buffer
                        pltpu.VMEM((CM, HW, HW), jnp.bfloat16),   # s31 buffer
                        pltpu.SemaphoreType.DMA((2,))],
        compiler_params=pltpu.CompilerParams(
            dimension_semantics=("arbitrary",)),
    )(xr, *operands)
    return out_rows.reshape(B, DIM, H, W)                    # free reshape


# ------------------------- parameter construction ----------------------------
def make_params(key):
    ks = iter(jax.random.split(key, 64))

    def nrm(shape, scale):
        return jax.random.normal(next(ks), shape, jnp.float32) * scale

    def conv_w(cout, cin_g, k):
        return nrm((cout, cin_g, k, k), 1.0 / np.sqrt(cin_g * k * k))

    def conv_b(cout, cin_g, k):
        return nrm((cout,), 1.0 / np.sqrt(cin_g * k * k))

    p = {}
    # MFFF.cv1 / cv2 : Conv2d(DIM, DIM, 1, bias=False) + BatchNorm2d + SiLU
    for name in ("cv1", "cv2"):
        p[f"{name}_w"] = conv_w(DIM, DIM, 1)[:, :, 0, 0]
        p[f"{name}_gamma"] = 1.0 + nrm((DIM,), 0.1)
        p[f"{name}_beta"] = nrm((DIM,), 0.1)
        p[f"{name}_mean"] = nrm((DIM,), 0.1)
        p[f"{name}_var"] = 1.0 + jnp.abs(nrm((DIM,), 0.1))
    # ImprovedFFTKernel (dim = CM)
    p["in_w"] = conv_w(CM, CM, 1)[:, :, 0, 0];  p["in_b"] = conv_b(CM, CM, 1)
    p["out_w"] = conv_w(CM, CM, 1)[:, :, 0, 0]; p["out_b"] = conv_b(CM, CM, 1)
    p["dw33_w"] = conv_w(CM, 1, K31)[:, 0];     p["dw33_b"] = conv_b(CM, 1, K31)   # (CM,31,31)
    p["dw11_w"] = conv_w(CM, 1, 1)[:, 0, 0, 0]; p["dw11_b"] = conv_b(CM, 1, 1)     # (CM,)
    p["fac_w"] = conv_w(CM, CM, 1)[:, :, 0, 0]; p["fac_b"] = conv_b(CM, CM, 1)
    p["c1_w"] = conv_w(CM, CM, 1)[:, :, 0, 0];  p["c1_b"] = conv_b(CM, CM, 1)
    p["c3_w"] = conv_w(CM, 1, K3)[:, 0];        p["c3_b"] = conv_b(CM, 1, K3)
    p["c5_w"] = conv_w(CM, 1, K5)[:, 0];        p["c5_b"] = conv_b(CM, 1, K5)
    p["ca1_w"] = conv_w(C4, CM, 1)[:, :, 0, 0]; p["ca1_b"] = conv_b(C4, CM, 1)
    p["ca2_w"] = conv_w(CM, C4, 1)[:, :, 0, 0]; p["ca2_b"] = conv_b(CM, C4, 1)
    # FFM (dim = CM). alpha/beta randomized so the spectral branch is exercised.
    p["f1_w"] = conv_w(CM, CM, 1)[:, :, 0, 0];  p["f1_b"] = conv_b(CM, CM, 1)
    p["f2_w"] = conv_w(CM, CM, 1)[:, :, 0, 0];  p["f2_b"] = conv_b(CM, CM, 1)
    p["alpha"] = nrm((CM,), 0.5)
    p["beta"] = 1.0 + nrm((CM,), 0.1)
    return p


def _fold_bn(gamma, beta, mean, var):
    s = gamma / jnp.sqrt(var + BN_EPS)
    return s, beta - mean * s


def _dft_ops():
    """Forward 2-D DFT operators (Re, Im) on the row-major flattened spatial
    axis.  The inverse (norm='backward') reuses the same operators with an
    exact 1/HW scale applied in-kernel."""
    ih, iw = np.arange(H), np.arange(W)
    fh = np.exp(-2j * np.pi * np.outer(ih, ih) / H)
    fw = np.exp(-2j * np.pi * np.outer(iw, iw) / W)
    d = np.kron(fh, fw)                         # forward fft2 (right-multiply)
    return jnp.asarray(np.stack([d.real, d.imag]).astype(np.float32))


def _dw_dense(w):
    """Depthwise (C,K,K) taps -> per-channel dense (HW,HW) right-mul operators
    with zero padding K//2 (same semantics as PyTorch depthwise Conv2d)."""
    w = np.asarray(w, np.float32)
    c, k, _ = w.shape
    pad = k // 2
    ops = np.zeros((c, HW, HW), np.float32)
    for ki in range(k):
        eh = np.eye(H, k=pad - ki, dtype=np.float32)
        for kj in range(k):
            ew = np.eye(W, k=pad - kj, dtype=np.float32)
            ops += w[:, ki, kj][:, None, None] * np.kron(eh, ew)[None]
    return jnp.asarray(ops)


def _kron_b(w):
    """1x1 conv (Cout,Cin) acting on channel-major rows (c*B+b) -> kron(W, I_B)."""
    return jnp.asarray(np.kron(np.asarray(w, np.float32),
                               np.eye(B, dtype=np.float32)))


def _cv1_mat(w):
    """cv1 (DIM,DIM): input rows batch-major (b*DIM+cin), output rows
    channel-major (cout*B+b) -- folds the layout permutation into the weights."""
    w = np.asarray(w, np.float32)
    m = np.zeros((DIM * B, DIM * B), np.float32)
    for co in range(DIM):
        for b in range(B):
            m[co * B + b, b * DIM:(b + 1) * DIM] = w[co]
    return jnp.asarray(m)


def _cv2_mats(w):
    """cv2 (DIM,DIM) split at C1: inputs rows channel-major (c*B+b), output
    rows batch-major (b*DIM+o) so the kernel output reshapes straight to NCHW."""
    w = np.asarray(w, np.float32)
    mm = np.zeros((DIM * B, C1 * B), np.float32)
    mi = np.zeros((DIM * B, C2 * B), np.float32)
    for o in range(DIM):
        for b in range(B):
            for c in range(C1):
                mm[b * DIM + o, c * B + b] = w[o, c]
            for c in range(C2):
                mi[b * DIM + o, c * B + b] = w[o, C1 + c]
    return jnp.asarray(mm), jnp.asarray(mi)


def _rep_b(v):
    """Per-channel (C,) -> channel-major per-row (C*B, 1) column."""
    return jnp.asarray(np.repeat(np.asarray(v, np.float32), B)[:, None])


def _tile_b(v):
    """Per-channel (C,) -> batch-major per-row (B*C, 1) column."""
    return jnp.asarray(np.tile(np.asarray(v, np.float32), B)[:, None])


def prep_operands(p):
    s1, t1 = _fold_bn(p["cv1_gamma"], p["cv1_beta"], p["cv1_mean"], p["cv1_var"])
    s2, t2 = _fold_bn(p["cv2_gamma"], p["cv2_beta"], p["cv2_mean"], p["cv2_var"])
    # cv1 BN rows are channel-major (internal layout), cv2 BN rows batch-major (output)
    bn = jnp.stack([_rep_b(s1), _rep_b(t1), _tile_b(s2), _tile_b(t2)])      # (4,32,1)
    bb = jnp.stack([_rep_b(p["in_b"]), _rep_b(p["fac_b"]), _rep_b(p["c1_b"]),
                    _rep_b(p["c3_b"] + p["c5_b"]), _rep_b(p["dw33_b"]),
                    _rep_b(p["dw11_w"]), _rep_b(p["dw11_b"]), _rep_b(p["ca2_b"]),
                    _rep_b(p["f1_b"]), _rep_b(p["f2_b"]), _rep_b(p["alpha"]),
                    _rep_b(p["beta"]), _rep_b(p["out_b"])])                 # (13,8,1)
    kr_cv2m, kr_cv2i = _cv2_mats(p["cv2_w"])
    return dict(
        kr_cv1=_cv1_mat(p["cv1_w"]),
        kr_cv2m=kr_cv2m, kr_cv2i=kr_cv2i,
        kr_in=_kron_b(p["in_w"]), kr_c1=_kron_b(p["c1_w"]),
        kr_f1=_kron_b(p["f1_w"]), kr_f2=_kron_b(p["f2_w"]),
        kr_out=_kron_b(p["out_w"]), kr_fac=_kron_b(p["fac_w"]),
        kr_ca1=_kron_b(p["ca1_w"]), kr_ca2=_kron_b(p["ca2_w"]),
        bn=bn, bb=bb, bca1=_rep_b(p["ca1_b"]),
        dft=_dft_ops(),                                                     # f32
        # depthwise operators stored bf16: half DMA + single-pass MXU
        s35=(_dw_dense(p["c3_w"]) + _dw_dense(p["c5_w"])).astype(jnp.bfloat16),
        s31=_dw_dense(p["dw33_w"]).astype(jnp.bfloat16),
    )


# ------------------------- pure-JAX reference (checking) ---------------------
def _ref_conv1x1(x, w, b=None):
    y = jnp.einsum("bchw,oc->bohw", x, w)
    return y if b is None else y + b[None, :, None, None]


def _ref_dwconv(x, w, b, k):
    y = lax.conv_general_dilated(
        x, w[:, None], window_strides=(1, 1), padding=[(k // 2, k // 2)] * 2,
        dimension_numbers=("NCHW", "OIHW", "NCHW"), feature_group_count=x.shape[1])
    return y + b[None, :, None, None]


def _ref_ffm(x, p):
    x1 = _ref_conv1x1(x, p["f1_w"], p["f1_b"])
    x2 = _ref_conv1x1(x, p["f2_w"], p["f2_b"])
    out = jnp.fft.ifft2(x1.astype(jnp.complex64) * jnp.fft.fft2(x2.astype(jnp.complex64)))
    out = jnp.abs(out).astype(x.dtype)
    return out * p["alpha"][None, :, None, None] + x * p["beta"][None, :, None, None]


def _ref_ifk(x, p):
    out = _ref_conv1x1(x, p["in_w"], p["in_b"])
    out = 0.5 * out * (1.0 + jax.scipy.special.erf(out / np.sqrt(2.0)))
    pooled = jnp.mean(out, axis=(2, 3), keepdims=True)
    x_att = _ref_conv1x1(pooled, p["fac_w"], p["fac_b"])
    x_fft = x_att.astype(jnp.complex64) * jnp.fft.fft2(out.astype(jnp.complex64))
    x_fca = jnp.abs(jnp.fft.ifft2(x_fft)).astype(out.dtype)
    x_sca = (_ref_conv1x1(x_fca, p["c1_w"], p["c1_b"])
             + _ref_dwconv(x_fca, p["c3_w"], p["c3_b"], K3)
             + _ref_dwconv(x_fca, p["c5_w"], p["c5_b"], K5))
    ca = jax.nn.relu(_ref_conv1x1(x_att, p["ca1_w"], p["ca1_b"]))
    cw = jax.nn.sigmoid(_ref_conv1x1(ca, p["ca2_w"], p["ca2_b"]))
    x_sca = _ref_ffm(x_sca * cw, p)
    out2 = (x + _ref_dwconv(out, p["dw33_w"], p["dw33_b"], K31)
            + out * p["dw11_w"][None, :, None, None] + p["dw11_b"][None, :, None, None]
            + x_sca)
    return _ref_conv1x1(jax.nn.relu(out2), p["out_w"], p["out_b"])


def _ref_conv_bn_silu(x, w, gamma, beta, mean, var):
    y = _ref_conv1x1(x, w)
    s = gamma / jnp.sqrt(var + BN_EPS)
    y = y * s[None, :, None, None] + (beta - mean * s)[None, :, None, None]
    return y * jax.nn.sigmoid(y)


def mfff_reference(x, p):
    y1 = _ref_conv_bn_silu(x, p["cv1_w"], p["cv1_gamma"], p["cv1_beta"],
                           p["cv1_mean"], p["cv1_var"])
    ok, ident = y1[:, :C1], y1[:, C1:]
    cat = jnp.concatenate([_ref_ifk(ok, p), ident], axis=1)
    return _ref_conv_bn_silu(cat, p["cv2_w"], p["cv2_gamma"], p["cv2_beta"],
                             p["cv2_mean"], p["cv2_var"])


# ----------------------------------- main ------------------------------------
if __name__ == "__main__":
    key = jax.random.PRNGKey(0)
    kx, kp = jax.random.split(key)
    x = jax.random.normal(kx, (B, DIM, H, W), jnp.float32)     # NCHW, like PyTorch
    params = make_params(kp)
    ops = prep_operands(params)

    fwd = jax.jit(mfff_forward)
    out = jax.block_until_ready(fwd(x, ops))
    ref = jax.block_until_ready(mfff_reference(x, params))

    assert out.shape == (B, DIM, H, W) and out.dtype == jnp.float32
    max_err = float(jnp.max(jnp.abs(out - ref)))
    # 5e-3 tolerance covers the bf16-quantized depthwise operators on the MXU
    # (the DFT / channel-mix path is kept in f32, so error stays ~1e-3).
    if not np.allclose(np.asarray(out), np.asarray(ref), atol=5e-3, rtol=5e-3):
        raise AssertionError(f"Pallas kernel mismatch vs pure-JAX reference "
                             f"(max abs err = {max_err})")
    print("KERNEL_OK")
</pallas_src>

<mosaic_0001>
module attributes {stable_mosaic.version = 11 : i64} {
  func.func @mfff_kernel(%arg0: i32, %arg1: memref<32x256xf32, #tpu.memory_space<vmem>>, %arg2: memref<32x32xf32, #tpu.memory_space<vmem>>, %arg3: memref<32x8xf32, #tpu.memory_space<vmem>>, %arg4: memref<32x24xf32, #tpu.memory_space<vmem>>, %arg5: memref<8x8xf32, #tpu.memory_space<vmem>>, %arg6: memref<8x8xf32, #tpu.memory_space<vmem>>, %arg7: memref<8x8xf32, #tpu.memory_space<vmem>>, %arg8: memref<8x8xf32, #tpu.memory_space<vmem>>, %arg9: memref<8x8xf32, #tpu.memory_space<vmem>>, %arg10: memref<8x8xf32, #tpu.memory_space<vmem>>, %arg11: memref<2x8xf32, #tpu.memory_space<vmem>>, %arg12: memref<8x2xf32, #tpu.memory_space<vmem>>, %arg13: memref<4x32x1xf32, #tpu.memory_space<vmem>>, %arg14: memref<13x8x1xf32, #tpu.memory_space<vmem>>, %arg15: memref<2x1xf32, #tpu.memory_space<vmem>>, %arg16: memref<2x256x256xf32, #tpu.memory_space<vmem>>, %arg17: memref<4x256x256xbf16, #tpu.memory_space<any>>, %arg18: memref<4x256x256xbf16, #tpu.memory_space<any>>, %arg19: memref<32x256xf32, #tpu.memory_space<vmem>>, %arg20: memref<4x256x256xbf16, #tpu.memory_space<vmem>>, %arg21: memref<4x256x256xbf16, #tpu.memory_space<vmem>>, %arg22: memref<2x!tpu.dma_semaphore, #tpu.memory_space<semaphore_mem>>) attributes {dimension_semantics = [#tpu.dimension_semantics<arbitrary>], iteration_bounds = array<i64: 1>, scalar_prefetch = 0 : i64, scratch_operands = 3 : i64, tpu.core_type = #tpu.core_type<tc>, window_params = [{pipeline_mode = #tpu.pipeline_mode<synchronous>, transform_indices = @transform_0, window_bounds = array<i64: 32, 256>}, {pipeline_mode = #tpu.pipeline_mode<synchronous>, transform_indices = @transform_1, window_bounds = array<i64: 32, 32>}, {pipeline_mode = #tpu.pipeline_mode<synchronous>, transform_indices = @transform_2, window_bounds = array<i64: 32, 8>}, {pipeline_mode = #tpu.pipeline_mode<synchronous>, transform_indices = @transform_3, window_bounds = array<i64: 32, 24>}, {pipeline_mode = #tpu.pipeline_mode<synchronous>, transform_indices = @transform_4, window_bounds = array<i64: 8, 8>}, {pipeline_mode = #tpu.pipeline_mode<synchronous>, transform_indices = @transform_5, window_bounds = array<i64: 8, 8>}, {pipeline_mode = #tpu.pipeline_mode<synchronous>, transform_indices = @transform_6, window_bounds = array<i64: 8, 8>}, {pipeline_mode = #tpu.pipeline_mode<synchronous>, transform_indices = @transform_7, window_bounds = array<i64: 8, 8>}, {pipeline_mode = #tpu.pipeline_mode<synchronous>, transform_indices = @transform_8, window_bounds = array<i64: 8, 8>}, {pipeline_mode = #tpu.pipeline_mode<synchronous>, transform_indices = @transform_9, window_bounds = array<i64: 8, 8>}, {pipeline_mode = #tpu.pipeline_mode<synchronous>, transform_indices = @transform_10, window_bounds = array<i64: 2, 8>}, {pipeline_mode = #tpu.pipeline_mode<synchronous>, transform_indices = @transform_11, window_bounds = array<i64: 8, 2>}, {pipeline_mode = #tpu.pipeline_mode<synchronous>, transform_indices = @transform_12, window_bounds = array<i64: 4, 32, 1>}, {pipeline_mode = #tpu.pipeline_mode<synchronous>, transform_indices = @transform_13, window_bounds = array<i64: 13, 8, 1>}, {pipeline_mode = #tpu.pipeline_mode<synchronous>, transform_indices = @transform_14, window_bounds = array<i64: 2, 1>}, {pipeline_mode = #tpu.pipeline_mode<synchronous>, transform_indices = @transform_15, window_bounds = array<i64: 2, 256, 256>}, {}, {}, {pipeline_mode = #tpu.pipeline_mode<synchronous>, transform_indices = @transform_18, window_bounds = array<i64: 32, 256>}]} {
    %c0_i32 = arith.constant 0 : i32
    %0 = tpu.memref_slice %arg22[%c0_i32] : memref<2x!tpu.dma_semaphore, #tpu.memory_space<semaphore_mem>> -> memref<1x!tpu.dma_semaphore, #tpu.memory_space<semaphore_mem>>
    %1 = tpu.memref_squeeze %0 : memref<1x!tpu.dma_semaphore, #tpu.memory_space<semaphore_mem>> -> memref<!tpu.dma_semaphore, #tpu.memory_space<semaphore_mem>>
    tpu.enqueue_dma source(%arg17 : memref<4x256x256xbf16, #tpu.memory_space<any>>) target(%arg20 : memref<4x256x256xbf16, #tpu.memory_space<vmem>>) target_semaphore(%1 : memref<!tpu.dma_semaphore, #tpu.memory_space<semaphore_mem>>)
    %c1_i32 = arith.constant 1 : i32
    %2 = tpu.memref_slice %arg22[%c1_i32] : memref<2x!tpu.dma_semaphore, #tpu.memory_space<semaphore_mem>> -> memref<1x!tpu.dma_semaphore, #tpu.memory_space<semaphore_mem>>
    %3 = tpu.memref_squeeze %2 : memref<1x!tpu.dma_semaphore, #tpu.memory_space<semaphore_mem>> -> memref<!tpu.dma_semaphore, #tpu.memory_space<semaphore_mem>>
    tpu.enqueue_dma source(%arg18 : memref<4x256x256xbf16, #tpu.memory_space<any>>) target(%arg21 : memref<4x256x256xbf16, #tpu.memory_space<vmem>>) target_semaphore(%3 : memref<!tpu.dma_semaphore, #tpu.memory_space<semaphore_mem>>)
    %c0 = arith.constant 0 : index
    %c0_0 = arith.constant 0 : index
    %4 = vector.load %arg1[%c0, %c0_0] : memref<32x256xf32, #tpu.memory_space<vmem>>, vector<32x256xf32>
    %c0_1 = arith.constant 0 : index
    %c0_2 = arith.constant 0 : index
    %5 = vector.load %arg2[%c0_1, %c0_2] : memref<32x32xf32, #tpu.memory_space<vmem>>, vector<32x32xf32>
    %cst = arith.constant dense<0.000000e+00> : vector<32x256xf32>
    %6 = tpu.matmul %5, %4, %cst {dimension_numbers = #tpu.dot_dimension_numbers<[1], [0], [0], [1], [0, 0, 1, 1], [], []>} : vector<32x32xf32>, vector<32x256xf32>, vector<32x256xf32> -> vector<32x256xf32>
    %c0_3 = arith.constant 0 : index
    %c0_4 = arith.constant 0 : index
    %c0_5 = arith.constant 0 : index
    %7 = vector.load %arg13[%c0_3, %c0_4, %c0_5] : memref<4x32x1xf32, #tpu.memory_space<vmem>>, vector<1x32x1xf32>
    %8 = vector.shape_cast %7 : vector<1x32x1xf32> to vector<32x1xf32>
    %9 = vector.broadcast %8 : vector<32x1xf32> to vector<32x256xf32>
    %10 = arith.mulf %6, %9 : vector<32x256xf32>
    %c1 = arith.constant 1 : index
    %c0_6 = arith.constant 0 : index
    %c0_7 = arith.constant 0 : index
    %11 = vector.load %arg13[%c1, %c0_6, %c0_7] : memref<4x32x1xf32, #tpu.memory_space<vmem>>, vector<1x32x1xf32>
    %12 = vector.shape_cast %11 : vector<1x32x1xf32> to vector<32x1xf32>
    %13 = vector.broadcast %12 : vector<32x1xf32> to vector<32x256xf32>
    %14 = arith.addf %10, %13 : vector<32x256xf32>
    %15 = arith.negf %14 : vector<32x256xf32>
    %16 = math.exp %15 : vector<32x256xf32>
    %cst_8 = arith.constant 1.000000e+00 : f32
    %17 = vector.broadcast %cst_8 : f32 to vector<32x256xf32>
    %18 = arith.addf %17, %16 : vector<32x256xf32>
    %19 = arith.divf %17, %18 : vector<32x256xf32>
    %20 = arith.mulf %14, %19 : vector<32x256xf32>
    %21 = vector.extract_strided_slice %20 {offsets = [0, 0], sizes = [8, 256], strides = [1, 1]} : vector<32x256xf32> to vector<8x256xf32>
    %22 = vector.extract_strided_slice %20 {offsets = [8, 0], sizes = [24, 256], strides = [1, 1]} : vector<32x256xf32> to vector<24x256xf32>
    %c0_9 = arith.constant 0 : index
    %c0_10 = arith.constant 0 : index
    %23 = vector.load %arg5[%c0_9, %c0_10] : memref<8x8xf32, #tpu.memory_space<vmem>>, vector<8x8xf32>
    %cst_11 = arith.constant dense<0.000000e+00> : vector<8x256xf32>
    %24 = tpu.matmul %23, %21, %cst_11 {dimension_numbers = #tpu.dot_dimension_numbers<[1], [0], [0], [1], [0, 0, 1, 1], [], []>} : vector<8x8xf32>, vector<8x256xf32>, vector<8x256xf32> -> vector<8x256xf32>
    %c0_12 = arith.constant 0 : index
    %c0_13 = arith.constant 0 : index
    %c0_14 = arith.constant 0 : index
    %25 = vector.load %arg14[%c0_12, %c0_13, %c0_14] : memref<13x8x1xf32, #tpu.memory_space<vmem>>, vector<1x8x1xf32>
    %26 = vector.shape_cast %25 : vector<1x8x1xf32> to vector<8x1xf32>
    %27 = vector.broadcast %26 : vector<8x1xf32> to vector<8x256xf32>
    %28 = arith.addf %24, %27 : vector<8x256xf32>
    %cst_15 = arith.constant 5.000000e-01 : f32
    %29 = vector.broadcast %cst_15 : f32 to vector<8x256xf32>
    %30 = arith.mulf %29, %28 : vector<8x256xf32>
    %cst_16 = arith.constant 0.707106769 : f32
    %31 = vector.broadcast %cst_16 : f32 to vector<8x256xf32>
    %32 = arith.mulf %28, %31 : vector<8x256xf32>
    %cst_17 = arith.constant 0.000000e+00 : f32
    %33 = vector.broadcast %cst_17 : f32 to vector<8x256xf32>
    %34 = arith.cmpf oge, %32, %33 : vector<8x256xf32>
    %cst_18 = arith.constant 1.000000e+00 : f32
    %cst_19 = arith.constant -1.000000e+00 : f32
    %35 = vector.broadcast %cst_18 : f32 to vector<8x256xf32>
    %36 = vector.broadcast %cst_19 : f32 to vector<8x256xf32>
    %37 = arith.select %34, %35, %36 : vector<8x256xi1>, vector<8x256xf32>
    %38 = math.absf %32 : vector<8x256xf32>
    %cst_20 = arith.constant 0.327591091 : f32
    %39 = vector.broadcast %cst_20 : f32 to vector<8x256xf32>
    %40 = arith.mulf %39, %38 : vector<8x256xf32>
    %cst_21 = arith.constant 1.000000e+00 : f32
    %41 = vector.broadcast %cst_21 : f32 to vector<8x256xf32>
    %42 = arith.addf %41, %40 : vector<8x256xf32>
    %cst_22 = arith.constant 1.000000e+00 : f32
    %43 = vector.broadcast %cst_22 : f32 to vector<8x256xf32>
    %44 = arith.divf %43, %42 : vector<8x256xf32>
    %cst_23 = arith.constant 1.06140542 : f32
    %45 = vector.broadcast %cst_23 : f32 to vector<8x256xf32>
    %46 = arith.mulf %45, %44 : vector<8x256xf32>
    %cst_24 = arith.constant -1.45315206 : f32
    %47 = vector.broadcast %cst_24 : f32 to vector<8x256xf32>
    %48 = arith.addf %46, %47 : vector<8x256xf32>
    %49 = arith.mulf %48, %44 : vector<8x256xf32>
    %cst_25 = arith.constant 1.42141378 : f32
    %50 = vector.broadcast %cst_25 : f32 to vector<8x256xf32>
    %51 = arith.addf %49, %50 : vector<8x256xf32>
    %52 = arith.mulf %51, %44 : vector<8x256xf32>
    %cst_26 = arith.constant -0.284496725 : f32
    %53 = vector.broadcast %cst_26 : f32 to vector<8x256xf32>
    %54 = arith.addf %52, %53 : vector<8x256xf32>
    %55 = arith.mulf %54, %44 : vector<8x256xf32>
    %cst_27 = arith.constant 0.254829586 : f32
    %56 = vector.broadcast %cst_27 : f32 to vector<8x256xf32>
    %57 = arith.addf %55, %56 : vector<8x256xf32>
    %58 = arith.mulf %57, %44 : vector<8x256xf32>
    %cst_28 = arith.constant 0.000000e+00 : f32
    %59 = vector.broadcast %cst_28 : f32 to vector<8x256xf32>
    %60 = arith.subf %59, %38 : vector<8x256xf32>
    %61 = arith.mulf %60, %38 : vector<8x256xf32>
    %62 = math.exp %61 : vector<8x256xf32>
    %63 = arith.mulf %58, %62 : vector<8x256xf32>
    %cst_29 = arith.constant 1.000000e+00 : f32
    %64 = vector.broadcast %cst_29 : f32 to vector<8x256xf32>
    %65 = arith.subf %64, %63 : vector<8x256xf32>
    %66 = arith.mulf %37, %65 : vector<8x256xf32>
    %cst_30 = arith.constant 1.000000e+00 : f32
    %67 = vector.broadcast %cst_30 : f32 to vector<8x256xf32>
    %68 = arith.addf %67, %66 : vector<8x256xf32>
    %69 = arith.mulf %30, %68 : vector<8x256xf32>
    %cst_31 = arith.constant dense<0.000000e+00> : vector<8xf32>
    %70 = vector.multi_reduction <add>, %69, %cst_31 [1] : vector<8x256xf32> to vector<8xf32>
    %71 = vector.shape_cast %70 : vector<8xf32> to vector<8x1xf32>
    %cst_32 = arith.constant 2.560000e+02 : f32
    %72 = vector.broadcast %cst_32 : f32 to vector<8x1xf32>
    %73 = arith.divf %71, %72 : vector<8x1xf32>
    %c1_33 = arith.constant 1 : index
    %c0_34 = arith.constant 0 : index
    %c0_35 = arith.constant 0 : index
    %74 = vector.load %arg14[%c1_33, %c0_34, %c0_35] : memref<13x8x1xf32, #tpu.memory_space<vmem>>, vector<1x8x1xf32>
    %75 = vector.shape_cast %74 : vector<1x8x1xf32> to vector<8x1xf32>
    %c0_36 = arith.constant 0 : index
    %c0_37 = arith.constant 0 : index
    %76 = vector.load %arg10[%c0_36, %c0_37] : memref<8x8xf32, #tpu.memory_space<vmem>>, vector<8x8xf32>
    %77 = vector.extract_strided_slice %76 {offsets = [0, 0], sizes = [8, 1], strides = [1, 1]} : vector<8x8xf32> to vector<8x1xf32>
    %78 = vector.extract_strided_slice %73 {offsets = [0, 0], sizes = [1, 1], strides = [1, 1]} : vector<8x1xf32> to vector<1x1xf32>
    %79 = vector.broadcast %78 : vector<1x1xf32> to vector<8x1xf32>
    %80 = arith.mulf %77, %79 : vector<8x1xf32>
    %81 = arith.addf %75, %80 : vector<8x1xf32>
    %82 = vector.extract_strided_slice %76 {offsets = [0, 1], sizes = [8, 1], strides = [1, 1]} : vector<8x8xf32> to vector<8x1xf32>
    %83 = vector.extract_strided_slice %73 {offsets = [1, 0], sizes = [1, 1], strides = [1, 1]} : vector<8x1xf32> to vector<1x1xf32>
    %84 = vector.broadcast %83 : vector<1x1xf32> to vector<8x1xf32>
    %85 = arith.mulf %82, %84 : vector<8x1xf32>
    %86 = arith.addf %81, %85 : vector<8x1xf32>
    %87 = vector.extract_strided_slice %76 {offsets = [0, 2], sizes = [8, 1], strides = [1, 1]} : vector<8x8xf32> to vector<8x1xf32>
    %88 = vector.extract_strided_slice %73 {offsets = [2, 0], sizes = [1, 1], strides = [1, 1]} : vector<8x1xf32> to vector<1x1xf32>
    %89 = vector.broadcast %88 : vector<1x1xf32> to vector<8x1xf32>
    %90 = arith.mulf %87, %89 : vector<8x1xf32>
    %91 = arith.addf %86, %90 : vector<8x1xf32>
    %92 = vector.extract_strided_slice %76 {offsets = [0, 3], sizes = [8, 1], strides = [1, 1]} : vector<8x8xf32> to vector<8x1xf32>
    %93 = vector.extract_strided_slice %73 {offsets = [3, 0], sizes = [1, 1], strides = [1, 1]} : vector<8x1xf32> to vector<1x1xf32>
    %94 = vector.broadcast %93 : vector<1x1xf32> to vector<8x1xf32>
    %95 = arith.mulf %92, %94 : vector<8x1xf32>
    %96 = arith.addf %91, %95 : vector<8x1xf32>
    %97 = vector.extract_strided_slice %76 {offsets = [0, 4], sizes = [8, 1], strides = [1, 1]} : vector<8x8xf32> to vector<8x1xf32>
    %98 = vector.extract_strided_slice %73 {offsets = [4, 0], sizes = [1, 1], strides = [1, 1]} : vector<8x1xf32> to vector<1x1xf32>
    %99 = vector.broadcast %98 : vector<1x1xf32> to vector<8x1xf32>
    %100 = arith.mulf %97, %99 : vector<8x1xf32>
    %101 = arith.addf %96, %100 : vector<8x1xf32>
    %102 = vector.extract_strided_slice %76 {offsets = [0, 5], sizes = [8, 1], strides = [1, 1]} : vector<8x8xf32> to vector<8x1xf32>
    %103 = vector.extract_strided_slice %73 {offsets = [5, 0], sizes = [1, 1], strides = [1, 1]} : vector<8x1xf32> to vector<1x1xf32>
    %104 = vector.broadcast %103 : vector<1x1xf32> to vector<8x1xf32>
    %105 = arith.mulf %102, %104 : vector<8x1xf32>
    %106 = arith.addf %101, %105 : vector<8x1xf32>
    %107 = vector.extract_strided_slice %76 {offsets = [0, 6], sizes = [8, 1], strides = [1, 1]} : vector<8x8xf32> to vector<8x1xf32>
    %108 = vector.extract_strided_slice %73 {offsets = [6, 0], sizes = [1, 1], strides = [1, 1]} : vector<8x1xf32> to vector<1x1xf32>
    %109 = vector.broadcast %108 : vector<1x1xf32> to vector<8x1xf32>
    %110 = arith.mulf %107, %109 : vector<8x1xf32>
    %111 = arith.addf %106, %110 : vector<8x1xf32>
    %112 = vector.extract_strided_slice %76 {offsets = [0, 7], sizes = [8, 1], strides = [1, 1]} : vector<8x8xf32> to vector<8x1xf32>
    %113 = vector.extract_strided_slice %73 {offsets = [7, 0], sizes = [1, 1], strides = [1, 1]} : vector<8x1xf32> to vector<1x1xf32>
    %114 = vector.broadcast %113 : vector<1x1xf32> to vector<8x1xf32>
    %115 = arith.mulf %112, %114 : vector<8x1xf32>
    %116 = arith.addf %111, %115 : vector<8x1xf32>
    %c0_38 = arith.constant 0 : index
    %c0_39 = arith.constant 0 : index
    %c0_40 = arith.constant 0 : index
    %117 = vector.load %arg16[%c0_38, %c0_39, %c0_40] : memref<2x256x256xf32, #tpu.memory_space<vmem>>, vector<1x256x256xf32>
    %118 = vector.shape_cast %117 : vector<1x256x256xf32> to vector<256x256xf32>
    %cst_41 = arith.constant dense<0.000000e+00> : vector<8x256xf32>
    %119 = tpu.matmul %69, %118, %cst_41 {dimension_numbers = #tpu.dot_dimension_numbers<[1], [0], [0], [1], [0, 0, 1, 1], [], []>} : vector<8x256xf32>, vector<256x256xf32>, vector<8x256xf32> -> vector<8x256xf32>
    %c1_42 = arith.constant 1 : index
    %c0_43 = arith.constant 0 : index
    %c0_44 = arith.constant 0 : index
    %120 = vector.load %arg16[%c1_42, %c0_43, %c0_44] : memref<2x256x256xf32, #tpu.memory_space<vmem>>, vector<1x256x256xf32>
    %121 = vector.shape_cast %120 : vector<1x256x256xf32> to vector<256x256xf32>
    %cst_45 = arith.constant dense<0.000000e+00> : vector<8x256xf32>
    %122 = tpu.matmul %69, %121, %cst_45 {dimension_numbers = #tpu.dot_dimension_numbers<[1], [0], [0], [1], [0, 0, 1, 1], [], []>} : vector<8x256xf32>, vector<256x256xf32>, vector<8x256xf32> -> vector<8x256xf32>
    %123 = vector.broadcast %116 : vector<8x1xf32> to vector<8x256xf32>
    %124 = arith.mulf %123, %119 : vector<8x256xf32>
    %125 = vector.broadcast %116 : vector<8x1xf32> to vector<8x256xf32>
    %126 = arith.mulf %125, %122 : vector<8x256xf32>
    %127 = tpu.concatenate %124, %126 in 0 : vector<8x256xf32>, vector<8x256xf32> -> vector<16x256xf32>
    %c0_46 = arith.constant 0 : index
    %c0_47 = arith.constant 0 : index
    %c0_48 = arith.constant 0 : index
    %128 = vector.load %arg16[%c0_46, %c0_47, %c0_48] : memref<2x256x256xf32, #tpu.memory_space<vmem>>, vector<1x256x256xf32>
    %129 = vector.shape_cast %128 : vector<1x256x256xf32> to vector<256x256xf32>
    %cst_49 = arith.constant dense<0.000000e+00> : vector<16x256xf32>
    %130 = tpu.matmul %127, %129, %cst_49 {dimension_numbers = #tpu.dot_dimension_numbers<[1], [0], [0], [1], [0, 0, 1, 1], [], []>} : vector<16x256xf32>, vector<256x256xf32>, vector<16x256xf32> -> vector<16x256xf32>
    %c1_50 = arith.constant 1 : index
    %c0_51 = arith.constant 0 : index
    %c0_52 = arith.constant 0 : index
    %131 = vector.load %arg16[%c1_50, %c0_51, %c0_52] : memref<2x256x256xf32, #tpu.memory_space<vmem>>, vector<1x256x256xf32>
    %132 = vector.shape_cast %131 : vector<1x256x256xf32> to vector<256x256xf32>
    %cst_53 = arith.constant dense<0.000000e+00> : vector<16x256xf32>
    %133 = tpu.matmul %127, %132, %cst_53 {dimension_numbers = #tpu.dot_dimension_numbers<[1], [0], [0], [1], [0, 0, 1, 1], [], []>} : vector<16x256xf32>, vector<256x256xf32>, vector<16x256xf32> -> vector<16x256xf32>
    %134 = vector.extract_strided_slice %130 {offsets = [0, 0], sizes = [8, 256], strides = [1, 1]} : vector<16x256xf32> to vector<8x256xf32>
    %135 = vector.extract_strided_slice %133 {offsets = [8, 0], sizes = [8, 256], strides = [1, 1]} : vector<16x256xf32> to vector<8x256xf32>
    %136 = arith.addf %134, %135 : vector<8x256xf32>
    %cst_54 = arith.constant 3.906250e-03 : f32
    %137 = vector.broadcast %cst_54 : f32 to vector<8x256xf32>
    %138 = arith.mulf %136, %137 : vector<8x256xf32>
    %139 = vector.extract_strided_slice %130 {offsets = [8, 0], sizes = [8, 256], strides = [1, 1]} : vector<16x256xf32> to vector<8x256xf32>
    %140 = vector.extract_strided_slice %133 {offsets = [0, 0], sizes = [8, 256], strides = [1, 1]} : vector<16x256xf32> to vector<8x256xf32>
    %141 = arith.subf %139, %140 : vector<8x256xf32>
    %cst_55 = arith.constant 3.906250e-03 : f32
    %142 = vector.broadcast %cst_55 : f32 to vector<8x256xf32>
    %143 = arith.mulf %141, %142 : vector<8x256xf32>
    %144 = arith.mulf %138, %138 : vector<8x256xf32>
    %145 = arith.mulf %143, %143 : vector<8x256xf32>
    %146 = arith.addf %144, %145 : vector<8x256xf32>
    %147 = math.sqrt %146 : vector<8x256xf32>
    %c0_56 = arith.constant 0 : index
    %c0_57 = arith.constant 0 : index
    %148 = vector.load %arg6[%c0_56, %c0_57] : memref<8x8xf32, #tpu.memory_space<vmem>>, vector<8x8xf32>
    %cst_58 = arith.constant dense<0.000000e+00> : vector<8x256xf32>
    %149 = tpu.matmul %148, %147, %cst_58 {dimension_numbers = #tpu.dot_dimension_numbers<[1], [0], [0], [1], [0, 0, 1, 1], [], []>} : vector<8x8xf32>, vector<8x256xf32>, vector<8x256xf32> -> vector<8x256xf32>
    %c2 = arith.constant 2 : index
    %c0_59 = arith.constant 0 : index
    %c0_60 = arith.constant 0 : index
    %150 = vector.load %arg14[%c2, %c0_59, %c0_60] : memref<13x8x1xf32, #tpu.memory_space<vmem>>, vector<1x8x1xf32>
    %151 = vector.shape_cast %150 : vector<1x8x1xf32> to vector<8x1xf32>
    %152 = vector.broadcast %151 : vector<8x1xf32> to vector<8x256xf32>
    %153 = arith.addf %149, %152 : vector<8x256xf32>
    %c0_i32_61 = arith.constant 0 : i32
    %154 = tpu.memref_slice %arg22[%c0_i32_61] : memref<2x!tpu.dma_semaphore, #tpu.memory_space<semaphore_mem>> -> memref<1x!tpu.dma_semaphore, #tpu.memory_space<semaphore_mem>>
    %155 = tpu.memref_squeeze %154 : memref<1x!tpu.dma_semaphore, #tpu.memory_space<semaphore_mem>> -> memref<!tpu.dma_semaphore, #tpu.memory_space<semaphore_mem>>
    tpu.wait_dma2 semaphore(%155 : memref<!tpu.dma_semaphore, #tpu.memory_space<semaphore_mem>>) src(%arg17 : memref<4x256x256xbf16, #tpu.memory_space<any>>) dst(%arg20 : memref<4x256x256xbf16, #tpu.memory_space<vmem>>)
    %c3 = arith.constant 3 : index
    %c0_62 = arith.constant 0 : index
    %c0_63 = arith.constant 0 : index
    %156 = vector.load %arg14[%c3, %c0_62, %c0_63] : memref<13x8x1xf32, #tpu.memory_space<vmem>>, vector<1x8x1xf32>
    %157 = vector.shape_cast %156 : vector<1x8x1xf32> to vector<8x1xf32>
    %158 = vector.extract_strided_slice %147 {offsets = [0, 0], sizes = [2, 256], strides = [1, 1]} : vector<8x256xf32> to vector<2x256xf32>
    %159 = arith.truncf %158 : vector<2x256xf32> to vector<2x256xbf16>
    %160 = vector.extract_strided_slice %157 {offsets = [0, 0], sizes = [2, 1], strides = [1, 1]} : vector<8x1xf32> to vector<2x1xf32>
    %c0_64 = arith.constant 0 : index
    %c0_65 = arith.constant 0 : index
    %c0_66 = arith.constant 0 : index
    %161 = vector.load %arg20[%c0_64, %c0_65, %c0_66] : memref<4x256x256xbf16, #tpu.memory_space<vmem>>, vector<1x256x256xbf16>
    %162 = vector.shape_cast %161 : vector<1x256x256xbf16> to vector<256x256xbf16>
    %cst_67 = arith.constant dense<0.000000e+00> : vector<2x256xf32>
    %163 = tpu.matmul %159, %162, %cst_67 {dimension_numbers = #tpu.dot_dimension_numbers<[1], [0], [0], [1], [0, 0, 1, 1], [], []>} : vector<2x256xbf16>, vector<256x256xbf16>, vector<2x256xf32> -> vector<2x256xf32>
    %164 = vector.broadcast %160 : vector<2x1xf32> to vector<2x256xf32>
    %165 = arith.addf %164, %163 : vector<2x256xf32>
    %166 = vector.extract_strided_slice %147 {offsets = [2, 0], sizes = [2, 256], strides = [1, 1]} : vector<8x256xf32> to vector<2x256xf32>
    %167 = arith.truncf %166 : vector<2x256xf32> to vector<2x256xbf16>
    %168 = vector.extract_strided_slice %157 {offsets = [2, 0], sizes = [2, 1], strides = [1, 1]} : vector<8x1xf32> to vector<2x1xf32>
    %c1_68 = arith.constant 1 : index
    %c0_69 = arith.constant 0 : index
    %c0_70 = arith.constant 0 : index
    %169 = vector.load %arg20[%c1_68, %c0_69, %c0_70] : memref<4x256x256xbf16, #tpu.memory_space<vmem>>, vector<1x256x256xbf16>
    %170 = vector.shape_cast %169 : vector<1x256x256xbf16> to vector<256x256xbf16>
    %cst_71 = arith.constant dense<0.000000e+00> : vector<2x256xf32>
    %171 = tpu.matmul %167, %170, %cst_71 {dimension_numbers = #tpu.dot_dimension_numbers<[1], [0], [0], [1], [0, 0, 1, 1], [], []>} : vector<2x256xbf16>, vector<256x256xbf16>, vector<2x256xf32> -> vector<2x256xf32>
    %172 = vector.broadcast %168 : vector<2x1xf32> to vector<2x256xf32>
    %173 = arith.addf %172, %171 : vector<2x256xf32>
    %174 = vector.extract_strided_slice %147 {offsets = [4, 0], sizes = [2, 256], strides = [1, 1]} : vector<8x256xf32> to vector<2x256xf32>
    %175 = arith.truncf %174 : vector<2x256xf32> to vector<2x256xbf16>
    %176 = vector.extract_strided_slice %157 {offsets = [4, 0], sizes = [2, 1], strides = [1, 1]} : vector<8x1xf32> to vector<2x1xf32>
    %c2_72 = arith.constant 2 : index
    %c0_73 = arith.constant 0 : index
    %c0_74 = arith.constant 0 : index
    %177 = vector.load %arg20[%c2_72, %c0_73, %c0_74] : memref<4x256x256xbf16, #tpu.memory_space<vmem>>, vector<1x256x256xbf16>
    %178 = vector.shape_cast %177 : vector<1x256x256xbf16> to vector<256x256xbf16>
    %cst_75 = arith.constant dense<0.000000e+00> : vector<2x256xf32>
    %179 = tpu.matmul %175, %178, %cst_75 {dimension_numbers = #tpu.dot_dimension_numbers<[1], [0], [0], [1], [0, 0, 1, 1], [], []>} : vector<2x256xbf16>, vector<256x256xbf16>, vector<2x256xf32> -> vector<2x256xf32>
    %180 = vector.broadcast %176 : vector<2x1xf32> to vector<2x256xf32>
    %181 = arith.addf %180, %179 : vector<2x256xf32>
    %182 = vector.extract_strided_slice %147 {offsets = [6, 0], sizes = [2, 256], strides = [1, 1]} : vector<8x256xf32> to vector<2x256xf32>
    %183 = arith.truncf %182 : vector<2x256xf32> to vector<2x256xbf16>
    %184 = vector.extract_strided_slice %157 {offsets = [6, 0], sizes = [2, 1], strides = [1, 1]} : vector<8x1xf32> to vector<2x1xf32>
    %c3_76 = arith.constant 3 : index
    %c0_77 = arith.constant 0 : index
    %c0_78 = arith.constant 0 : index
    %185 = vector.load %arg20[%c3_76, %c0_77, %c0_78] : memref<4x256x256xbf16, #tpu.memory_space<vmem>>, vector<1x256x256xbf16>
    %186 = vector.shape_cast %185 : vector<1x256x256xbf16> to vector<256x256xbf16>
    %cst_79 = arith.constant dense<0.000000e+00> : vector<2x256xf32>
    %187 = tpu.matmul %183, %186, %cst_79 {dimension_numbers = #tpu.dot_dimension_numbers<[1], [0], [0], [1], [0, 0, 1, 1], [], []>} : vector<2x256xbf16>, vector<256x256xbf16>, vector<2x256xf32> -> vector<2x256xf32>
    %188 = vector.broadcast %184 : vector<2x1xf32> to vector<2x256xf32>
    %189 = arith.addf %188, %187 : vector<2x256xf32>
    %190 = tpu.concatenate %165, %173, %181, %189 in 0 : vector<2x256xf32>, vector<2x256xf32>, vector<2x256xf32>, vector<2x256xf32> -> vector<8x256xf32>
    %191 = arith.addf %153, %190 : vector<8x256xf32>
    %c0_80 = arith.constant 0 : index
    %c0_81 = arith.constant 0 : index
    %192 = vector.load %arg15[%c0_80, %c0_81] : memref<2x1xf32, #tpu.memory_space<vmem>>, vector<2x1xf32>
    %c0_82 = arith.constant 0 : index
    %c0_83 = arith.constant 0 : index
    %193 = vector.load %arg11[%c0_82, %c0_83] : memref<2x8xf32, #tpu.memory_space<vmem>>, vector<2x8xf32>
    %194 = vector.extract_strided_slice %193 {offsets = [0, 0], sizes = [2, 1], strides = [1, 1]} : vector<2x8xf32> to vector<2x1xf32>
    %195 = vector.extract_strided_slice %116 {offsets = [0, 0], sizes = [1, 1], strides = [1, 1]} : vector<8x1xf32> to vector<1x1xf32>
    %196 = vector.broadcast %195 : vector<1x1xf32> to vector<2x1xf32>
    %197 = arith.mulf %194, %196 : vector<2x1xf32>
    %198 = arith.addf %192, %197 : vector<2x1xf32>
    %199 = vector.extract_strided_slice %193 {offsets = [0, 1], sizes = [2, 1], strides = [1, 1]} : vector<2x8xf32> to vector<2x1xf32>
    %200 = vector.extract_strided_slice %116 {offsets = [1, 0], sizes = [1, 1], strides = [1, 1]} : vector<8x1xf32> to vector<1x1xf32>
    %201 = vector.broadcast %200 : vector<1x1xf32> to vector<2x1xf32>
    %202 = arith.mulf %199, %201 : vector<2x1xf32>
    %203 = arith.addf %198, %202 : vector<2x1xf32>
    %204 = vector.extract_strided_slice %193 {offsets = [0, 2], sizes = [2, 1], strides = [1, 1]} : vector<2x8xf32> to vector<2x1xf32>
    %205 = vector.extract_strided_slice %116 {offsets = [2, 0], sizes = [1, 1], strides = [1, 1]} : vector<8x1xf32> to vector<1x1xf32>
    %206 = vector.broadcast %205 : vector<1x1xf32> to vector<2x1xf32>
    %207 = arith.mulf %204, %206 : vector<2x1xf32>
    %208 = arith.addf %203, %207 : vector<2x1xf32>
    %209 = vector.extract_strided_slice %193 {offsets = [0, 3], sizes = [2, 1], strides = [1, 1]} : vector<2x8xf32> to vector<2x1xf32>
    %210 = vector.extract_strided_slice %116 {offsets = [3, 0], sizes = [1, 1], strides = [1, 1]} : vector<8x1xf32> to vector<1x1xf32>
    %211 = vector.broadcast %210 : vector<1x1xf32> to vector<2x1xf32>
    %212 = arith.mulf %209, %211 : vector<2x1xf32>
    %213 = arith.addf %208, %212 : vector<2x1xf32>
    %214 = vector.extract_strided_slice %193 {offsets = [0, 4], sizes = [2, 1], strides = [1, 1]} : vector<2x8xf32> to vector<2x1xf32>
    %215 = vector.extract_strided_slice %116 {offsets = [4, 0], sizes = [1, 1], strides = [1, 1]} : vector<8x1xf32> to vector<1x1xf32>
    %216 = vector.broadcast %215 : vector<1x1xf32> to vector<2x1xf32>
    %217 = arith.mulf %214, %216 : vector<2x1xf32>
    %218 = arith.addf %213, %217 : vector<2x1xf32>
    %219 = vector.extract_strided_slice %193 {offsets = [0, 5], sizes = [2, 1], strides = [1, 1]} : vector<2x8xf32> to vector<2x1xf32>
    %220 = vector.extract_strided_slice %116 {offsets = [5, 0], sizes = [1, 1], strides = [1, 1]} : vector<8x1xf32> to vector<1x1xf32>
    %221 = vector.broadcast %220 : vector<1x1xf32> to vector<2x1xf32>
    %222 = arith.mulf %219, %221 : vector<2x1xf32>
    %223 = arith.addf %218, %222 : vector<2x1xf32>
    %224 = vector.extract_strided_slice %193 {offsets = [0, 6], sizes = [2, 1], strides = [1, 1]} : vector<2x8xf32> to vector<2x1xf32>
    %225 = vector.extract_strided_slice %116 {offsets = [6, 0], sizes = [1, 1], strides = [1, 1]} : vector<8x1xf32> to vector<1x1xf32>
    %226 = vector.broadcast %225 : vector<1x1xf32> to vector<2x1xf32>
    %227 = arith.mulf %224, %226 : vector<2x1xf32>
    %228 = arith.addf %223, %227 : vector<2x1xf32>
    %229 = vector.extract_strided_slice %193 {offsets = [0, 7], sizes = [2, 1], strides = [1, 1]} : vector<2x8xf32> to vector<2x1xf32>
    %230 = vector.extract_strided_slice %116 {offsets = [7, 0], sizes = [1, 1], strides = [1, 1]} : vector<8x1xf32> to vector<1x1xf32>
    %231 = vector.broadcast %230 : vector<1x1xf32> to vector<2x1xf32>
    %232 = arith.mulf %229, %231 : vector<2x1xf32>
    %233 = arith.addf %228, %232 : vector<2x1xf32>
    %cst_84 = arith.constant 0.000000e+00 : f32
    %234 = vector.broadcast %cst_84 : f32 to vector<2x1xf32>
    %235 = arith.maximumf %233, %234 : vector<2x1xf32>
    %c7 = arith.constant 7 : index
    %c0_85 = arith.constant 0 : index
    %c0_86 = arith.constant 0 : index
    %236 = vector.load %arg14[%c7, %c0_85, %c0_86] : memref<13x8x1xf32, #tpu.memory_space<vmem>>, vector<1x8x1xf32>
    %237 = vector.shape_cast %236 : vector<1x8x1xf32> to vector<8x1xf32>
    %c0_87 = arith.constant 0 : index
    %c0_88 = arith.constant 0 : index
    %238 = vector.load %arg12[%c0_87, %c0_88] : memref<8x2xf32, #tpu.memory_space<vmem>>, vector<8x2xf32>
    %239 = vector.extract_strided_slice %238 {offsets = [0, 0], sizes = [8, 1], strides = [1, 1]} : vector<8x2xf32> to vector<8x1xf32>
    %240 = vector.extract_strided_slice %235 {offsets = [0, 0], sizes = [1, 1], strides = [1, 1]} : vector<2x1xf32> to vector<1x1xf32>
    %241 = vector.broadcast %240 : vector<1x1xf32> to vector<8x1xf32>
    %242 = arith.mulf %239, %241 : vector<8x1xf32>
    %243 = arith.addf %237, %242 : vector<8x1xf32>
    %244 = vector.extract_strided_slice %238 {offsets = [0, 1], sizes = [8, 1], strides = [1, 1]} : vector<8x2xf32> to vector<8x1xf32>
    %245 = vector.extract_strided_slice %235 {offsets = [1, 0], sizes = [1, 1], strides = [1, 1]} : vector<2x1xf32> to vector<1x1xf32>
    %246 = vector.broadcast %245 : vector<1x1xf32> to vector<8x1xf32>
    %247 = arith.mulf %244, %246 : vector<8x1xf32>
    %248 = arith.addf %243, %247 : vector<8x1xf32>
    %249 = arith.negf %248 : vector<8x1xf32>
    %250 = math.exp %249 : vector<8x1xf32>
    %cst_89 = arith.constant 1.000000e+00 : f32
    %251 = vector.broadcast %cst_89 : f32 to vector<8x1xf32>
    %252 = arith.addf %251, %250 : vector<8x1xf32>
    %253 = arith.divf %251, %252 : vector<8x1xf32>
    %254 = vector.broadcast %253 : vector<8x1xf32> to vector<8x256xf32>
    %255 = arith.mulf %191, %254 : vector<8x256xf32>
    %c0_90 = arith.constant 0 : index
    %c0_91 = arith.constant 0 : index
    %256 = vector.load %arg7[%c0_90, %c0_91] : memref<8x8xf32, #tpu.memory_space<vmem>>, vector<8x8xf32>
    %cst_92 = arith.constant dense<0.000000e+00> : vector<8x256xf32>
    %257 = tpu.matmul %256, %255, %cst_92 {dimension_numbers = #tpu.dot_dimension_numbers<[1], [0], [0], [1], [0, 0, 1, 1], [], []>} : vector<8x8xf32>, vector<8x256xf32>, vector<8x256xf32> -> vector<8x256xf32>
    %c8 = arith.constant 8 : index
    %c0_93 = arith.constant 0 : index
    %c0_94 = arith.constant 0 : index
    %258 = vector.load %arg14[%c8, %c0_93, %c0_94] : memref<13x8x1xf32, #tpu.memory_space<vmem>>, vector<1x8x1xf32>
    %259 = vector.shape_cast %258 : vector<1x8x1xf32> to vector<8x1xf32>
    %260 = vector.broadcast %259 : vector<8x1xf32> to vector<8x256xf32>
    %261 = arith.addf %257, %260 : vector<8x256xf32>
    %c0_95 = arith.constant 0 : index
    %c0_96 = arith.constant 0 : index
    %262 = vector.load %arg8[%c0_95, %c0_96] : memref<8x8xf32, #tpu.memory_space<vmem>>, vector<8x8xf32>
    %cst_97 = arith.constant dense<0.000000e+00> : vector<8x256xf32>
    %263 = tpu.matmul %262, %255, %cst_97 {dimension_numbers = #tpu.dot_dimension_numbers<[1], [0], [0], [1], [0, 0, 1, 1], [], []>} : vector<8x8xf32>, vector<8x256xf32>, vector<8x256xf32> -> vector<8x256xf32>
    %c9 = arith.constant 9 : index
    %c0_98 = arith.constant 0 : index
    %c0_99 = arith.constant 0 : index
    %264 = vector.load %arg14[%c9, %c0_98, %c0_99] : memref<13x8x1xf32, #tpu.memory_space<vmem>>, vector<1x8x1xf32>
    %265 = vector.shape_cast %264 : vector<1x8x1xf32> to vector<8x1xf32>
    %266 = vector.broadcast %265 : vector<8x1xf32> to vector<8x256xf32>
    %267 = arith.addf %263, %266 : vector<8x256xf32>
    %c0_100 = arith.constant 0 : index
    %c0_101 = arith.constant 0 : index
    %c0_102 = arith.constant 0 : index
    %268 = vector.load %arg16[%c0_100, %c0_101, %c0_102] : memref<2x256x256xf32, #tpu.memory_space<vmem>>, vector<1x256x256xf32>
    %269 = vector.shape_cast %268 : vector<1x256x256xf32> to vector<256x256xf32>
    %cst_103 = arith.constant dense<0.000000e+00> : vector<8x256xf32>
    %270 = tpu.matmul %267, %269, %cst_103 {dimension_numbers = #tpu.dot_dimension_numbers<[1], [0], [0], [1], [0, 0, 1, 1], [], []>} : vector<8x256xf32>, vector<256x256xf32>, vector<8x256xf32> -> vector<8x256xf32>
    %c1_104 = arith.constant 1 : index
    %c0_105 = arith.constant 0 : index
    %c0_106 = arith.constant 0 : index
    %271 = vector.load %arg16[%c1_104, %c0_105, %c0_106] : memref<2x256x256xf32, #tpu.memory_space<vmem>>, vector<1x256x256xf32>
    %272 = vector.shape_cast %271 : vector<1x256x256xf32> to vector<256x256xf32>
    %cst_107 = arith.constant dense<0.000000e+00> : vector<8x256xf32>
    %273 = tpu.matmul %267, %272, %cst_107 {dimension_numbers = #tpu.dot_dimension_numbers<[1], [0], [0], [1], [0, 0, 1, 1], [], []>} : vector<8x256xf32>, vector<256x256xf32>, vector<8x256xf32> -> vector<8x256xf32>
    %274 = arith.mulf %261, %270 : vector<8x256xf32>
    %275 = arith.mulf %261, %273 : vector<8x256xf32>
    %276 = tpu.concatenate %274, %275 in 0 : vector<8x256xf32>, vector<8x256xf32> -> vector<16x256xf32>
    %c0_108 = arith.constant 0 : index
    %c0_109 = arith.constant 0 : index
    %c0_110 = arith.constant 0 : index
    %277 = vector.load %arg16[%c0_108, %c0_109, %c0_110] : memref<2x256x256xf32, #tpu.memory_space<vmem>>, vector<1x256x256xf32>
    %278 = vector.shape_cast %277 : vector<1x256x256xf32> to vector<256x256xf32>
    %cst_111 = arith.constant dense<0.000000e+00> : vector<16x256xf32>
    %279 = tpu.matmul %276, %278, %cst_111 {dimension_numbers = #tpu.dot_dimension_numbers<[1], [0], [0], [1], [0, 0, 1, 1], [], []>} : vector<16x256xf32>, vector<256x256xf32>, vector<16x256xf32> -> vector<16x256xf32>
    %c1_112 = arith.constant 1 : index
    %c0_113 = arith.constant 0 : index
    %c0_114 = arith.constant 0 : index
    %280 = vector.load %arg16[%c1_112, %c0_113, %c0_114] : memref<2x256x256xf32, #tpu.memory_space<vmem>>, vector<1x256x256xf32>
    %281 = vector.shape_cast %280 : vector<1x256x256xf32> to vector<256x256xf32>
    %cst_115 = arith.constant dense<0.000000e+00> : vector<16x256xf32>
    %282 = tpu.matmul %276, %281, %cst_115 {dimension_numbers = #tpu.dot_dimension_numbers<[1], [0], [0], [1], [0, 0, 1, 1], [], []>} : vector<16x256xf32>, vector<256x256xf32>, vector<16x256xf32> -> vector<16x256xf32>
    %283 = vector.extract_strided_slice %279 {offsets = [0, 0], sizes = [8, 256], strides = [1, 1]} : vector<16x256xf32> to vector<8x256xf32>
    %284 = vector.extract_strided_slice %282 {offsets = [8, 0], sizes = [8, 256], strides = [1, 1]} : vector<16x256xf32> to vector<8x256xf32>
    %285 = arith.addf %283, %284 : vector<8x256xf32>
    %cst_116 = arith.constant 3.906250e-03 : f32
    %286 = vector.broadcast %cst_116 : f32 to vector<8x256xf32>
    %287 = arith.mulf %285, %286 : vector<8x256xf32>
    %288 = vector.extract_strided_slice %279 {offsets = [8, 0], sizes = [8, 256], strides = [1, 1]} : vector<16x256xf32> to vector<8x256xf32>
    %289 = vector.extract_strided_slice %282 {offsets = [0, 0], sizes = [8, 256], strides = [1, 1]} : vector<16x256xf32> to vector<8x256xf32>
    %290 = arith.subf %288, %289 : vector<8x256xf32>
    %cst_117 = arith.constant 3.906250e-03 : f32
    %291 = vector.broadcast %cst_117 : f32 to vector<8x256xf32>
    %292 = arith.mulf %290, %291 : vector<8x256xf32>
    %293 = arith.mulf %287, %287 : vector<8x256xf32>
    %294 = arith.mulf %292, %292 : vector<8x256xf32>
    %295 = arith.addf %293, %294 : vector<8x256xf32>
    %296 = math.sqrt %295 : vector<8x256xf32>
    %c10 = arith.constant 10 : index
    %c0_118 = arith.constant 0 : index
    %c0_119 = arith.constant 0 : index
    %297 = vector.load %arg14[%c10, %c0_118, %c0_119] : memref<13x8x1xf32, #tpu.memory_space<vmem>>, vector<1x8x1xf32>
    %298 = vector.shape_cast %297 : vector<1x8x1xf32> to vector<8x1xf32>
    %299 = vector.broadcast %298 : vector<8x1xf32> to vector<8x256xf32>
    %300 = arith.mulf %296, %299 : vector<8x256xf32>
    %c11 = arith.constant 11 : index
    %c0_120 = arith.constant 0 : index
    %c0_121 = arith.constant 0 : index
    %301 = vector.load %arg14[%c11, %c0_120, %c0_121] : memref<13x8x1xf32, #tpu.memory_space<vmem>>, vector<1x8x1xf32>
    %302 = vector.shape_cast %301 : vector<1x8x1xf32> to vector<8x1xf32>
    %303 = vector.broadcast %302 : vector<8x1xf32> to vector<8x256xf32>
    %304 = arith.mulf %255, %303 : vector<8x256xf32>
    %305 = arith.addf %300, %304 : vector<8x256xf32>
    %c1_i32_122 = arith.constant 1 : i32
    %306 = tpu.memref_slice %arg22[%c1_i32_122] : memref<2x!tpu.dma_semaphore, #tpu.memory_space<semaphore_mem>> -> memref<1x!tpu.dma_semaphore, #tpu.memory_space<semaphore_mem>>
    %307 = tpu.memref_squeeze %306 : memref<1x!tpu.dma_semaphore, #tpu.memory_space<semaphore_mem>> -> memref<!tpu.dma_semaphore, #tpu.memory_space<semaphore_mem>>
    tpu.wait_dma2 semaphore(%307 : memref<!tpu.dma_semaphore, #tpu.memory_space<semaphore_mem>>) src(%arg18 : memref<4x256x256xbf16, #tpu.memory_space<any>>) dst(%arg21 : memref<4x256x256xbf16, #tpu.memory_space<vmem>>)
    %c4 = arith.constant 4 : index
    %c0_123 = arith.constant 0 : index
    %c0_124 = arith.constant 0 : index
    %308 = vector.load %arg14[%c4, %c0_123, %c0_124] : memref<13x8x1xf32, #tpu.memory_space<vmem>>, vector<1x8x1xf32>
    %309 = vector.shape_cast %308 : vector<1x8x1xf32> to vector<8x1xf32>
    %310 = vector.extract_strided_slice %69 {offsets = [0, 0], sizes = [2, 256], strides = [1, 1]} : vector<8x256xf32> to vector<2x256xf32>
    %311 = arith.truncf %310 : vector<2x256xf32> to vector<2x256xbf16>
    %312 = vector.extract_strided_slice %309 {offsets = [0, 0], sizes = [2, 1], strides = [1, 1]} : vector<8x1xf32> to vector<2x1xf32>
    %c0_125 = arith.constant 0 : index
    %c0_126 = arith.constant 0 : index
    %c0_127 = arith.constant 0 : index
    %313 = vector.load %arg21[%c0_125, %c0_126, %c0_127] : memref<4x256x256xbf16, #tpu.memory_space<vmem>>, vector<1x256x256xbf16>
    %314 = vector.shape_cast %313 : vector<1x256x256xbf16> to vector<256x256xbf16>
    %cst_128 = arith.constant dense<0.000000e+00> : vector<2x256xf32>
    %315 = tpu.matmul %311, %314, %cst_128 {dimension_numbers = #tpu.dot_dimension_numbers<[1], [0], [0], [1], [0, 0, 1, 1], [], []>} : vector<2x256xbf16>, vector<256x256xbf16>, vector<2x256xf32> -> vector<2x256xf32>
    %316 = vector.broadcast %312 : vector<2x1xf32> to vector<2x256xf32>
    %317 = arith.addf %316, %315 : vector<2x256xf32>
    %318 = vector.extract_strided_slice %69 {offsets = [2, 0], sizes = [2, 256], strides = [1, 1]} : vector<8x256xf32> to vector<2x256xf32>
    %319 = arith.truncf %318 : vector<2x256xf32> to vector<2x256xbf16>
    %320 = vector.extract_strided_slice %309 {offsets = [2, 0], sizes = [2, 1], strides = [1, 1]} : vector<8x1xf32> to vector<2x1xf32>
    %c1_129 = arith.constant 1 : index
    %c0_130 = arith.constant 0 : index
    %c0_131 = arith.constant 0 : index
    %321 = vector.load %arg21[%c1_129, %c0_130, %c0_131] : memref<4x256x256xbf16, #tpu.memory_space<vmem>>, vector<1x256x256xbf16>
    %322 = vector.shape_cast %321 : vector<1x256x256xbf16> to vector<256x256xbf16>
    %cst_132 = arith.constant dense<0.000000e+00> : vector<2x256xf32>
    %323 = tpu.matmul %319, %322, %cst_132 {dimension_numbers = #tpu.dot_dimension_numbers<[1], [0], [0], [1], [0, 0, 1, 1], [], []>} : vector<2x256xbf16>, vector<256x256xbf16>, vector<2x256xf32> -> vector<2x256xf32>
    %324 = vector.broadcast %320 : vector<2x1xf32> to vector<2x256xf32>
    %325 = arith.addf %324, %323 : vector<2x256xf32>
    %326 = vector.extract_strided_slice %69 {offsets = [4, 0], sizes = [2, 256], strides = [1, 1]} : vector<8x256xf32> to vector<2x256xf32>
    %327 = arith.truncf %326 : vector<2x256xf32> to vector<2x256xbf16>
    %328 = vector.extract_strided_slice %309 {offsets = [4, 0], sizes = [2, 1], strides = [1, 1]} : vector<8x1xf32> to vector<2x1xf32>
    %c2_133 = arith.constant 2 : index
    %c0_134 = arith.constant 0 : index
    %c0_135 = arith.constant 0 : index
    %329 = vector.load %arg21[%c2_133, %c0_134, %c0_135] : memref<4x256x256xbf16, #tpu.memory_space<vmem>>, vector<1x256x256xbf16>
    %330 = vector.shape_cast %329 : vector<1x256x256xbf16> to vector<256x256xbf16>
    %cst_136 = arith.constant dense<0.000000e+00> : vector<2x256xf32>
    %331 = tpu.matmul %327, %330, %cst_136 {dimension_numbers = #tpu.dot_dimension_numbers<[1], [0], [0], [1], [0, 0, 1, 1], [], []>} : vector<2x256xbf16>, vector<256x256xbf16>, vector<2x256xf32> -> vector<2x256xf32>
    %332 = vector.broadcast %328 : vector<2x1xf32> to vector<2x256xf32>
    %333 = arith.addf %332, %331 : vector<2x256xf32>
    %334 = vector.extract_strided_slice %69 {offsets = [6, 0], sizes = [2, 256], strides = [1, 1]} : vector<8x256xf32> to vector<2x256xf32>
    %335 = arith.truncf %334 : vector<2x256xf32> to vector<2x256xbf16>
    %336 = vector.extract_strided_slice %309 {offsets = [6, 0], sizes = [2, 1], strides = [1, 1]} : vector<8x1xf32> to vector<2x1xf32>
    %c3_137 = arith.constant 3 : index
    %c0_138 = arith.constant 0 : index
    %c0_139 = arith.constant 0 : index
    %337 = vector.load %arg21[%c3_137, %c0_138, %c0_139] : memref<4x256x256xbf16, #tpu.memory_space<vmem>>, vector<1x256x256xbf16>
    %338 = vector.shape_cast %337 : vector<1x256x256xbf16> to vector<256x256xbf16>
    %cst_140 = arith.constant dense<0.000000e+00> : vector<2x256xf32>
    %339 = tpu.matmul %335, %338, %cst_140 {dimension_numbers = #tpu.dot_dimension_numbers<[1], [0], [0], [1], [0, 0, 1, 1], [], []>} : vector<2x256xbf16>, vector<256x256xbf16>, vector<2x256xf32> -> vector<2x256xf32>
    %340 = vector.broadcast %336 : vector<2x1xf32> to vector<2x256xf32>
    %341 = arith.addf %340, %339 : vector<2x256xf32>
    %342 = tpu.concatenate %317, %325, %333, %341 in 0 : vector<2x256xf32>, vector<2x256xf32>, vector<2x256xf32>, vector<2x256xf32> -> vector<8x256xf32>
    %c5 = arith.constant 5 : index
    %c0_141 = arith.constant 0 : index
    %c0_142 = arith.constant 0 : index
    %343 = vector.load %arg14[%c5, %c0_141, %c0_142] : memref<13x8x1xf32, #tpu.memory_space<vmem>>, vector<1x8x1xf32>
    %344 = vector.shape_cast %343 : vector<1x8x1xf32> to vector<8x1xf32>
    %345 = vector.broadcast %344 : vector<8x1xf32> to vector<8x256xf32>
    %346 = arith.mulf %69, %345 : vector<8x256xf32>
    %c6 = arith.constant 6 : index
    %c0_143 = arith.constant 0 : index
    %c0_144 = arith.constant 0 : index
    %347 = vector.load %arg14[%c6, %c0_143, %c0_144] : memref<13x8x1xf32, #tpu.memory_space<vmem>>, vector<1x8x1xf32>
    %348 = vector.shape_cast %347 : vector<1x8x1xf32> to vector<8x1xf32>
    %349 = vector.broadcast %348 : vector<8x1xf32> to vector<8x256xf32>
    %350 = arith.addf %346, %349 : vector<8x256xf32>
    %351 = arith.addf %21, %342 : vector<8x256xf32>
    %352 = arith.addf %351, %350 : vector<8x256xf32>
    %353 = arith.addf %352, %305 : vector<8x256xf32>
    %cst_145 = arith.constant 0.000000e+00 : f32
    %354 = vector.broadcast %cst_145 : f32 to vector<8x256xf32>
    %355 = arith.maximumf %353, %354 : vector<8x256xf32>
    %c0_146 = arith.constant 0 : index
    %c0_147 = arith.constant 0 : index
    %356 = vector.load %arg9[%c0_146, %c0_147] : memref<8x8xf32, #tpu.memory_space<vmem>>, vector<8x8xf32>
    %cst_148 = arith.constant dense<0.000000e+00> : vector<8x256xf32>
    %357 = tpu.matmul %356, %355, %cst_148 {dimension_numbers = #tpu.dot_dimension_numbers<[1], [0], [0], [1], [0, 0, 1, 1], [], []>} : vector<8x8xf32>, vector<8x256xf32>, vector<8x256xf32> -> vector<8x256xf32>
    %c12 = arith.constant 12 : index
    %c0_149 = arith.constant 0 : index
    %c0_150 = arith.constant 0 : index
    %358 = vector.load %arg14[%c12, %c0_149, %c0_150] : memref<13x8x1xf32, #tpu.memory_space<vmem>>, vector<1x8x1xf32>
    %359 = vector.shape_cast %358 : vector<1x8x1xf32> to vector<8x1xf32>
    %360 = vector.broadcast %359 : vector<8x1xf32> to vector<8x256xf32>
    %361 = arith.addf %357, %360 : vector<8x256xf32>
    %c0_151 = arith.constant 0 : index
    %c0_152 = arith.constant 0 : index
    %362 = vector.load %arg3[%c0_151, %c0_152] : memref<32x8xf32, #tpu.memory_space<vmem>>, vector<32x8xf32>
    %cst_153 = arith.constant dense<0.000000e+00> : vector<32x256xf32>
    %363 = tpu.matmul %362, %361, %cst_153 {dimension_numbers = #tpu.dot_dimension_numbers<[1], [0], [0], [1], [0, 0, 1, 1], [], []>} : vector<32x8xf32>, vector<8x256xf32>, vector<32x256xf32> -> vector<32x256xf32>
    %c0_154 = arith.constant 0 : index
    %c0_155 = arith.constant 0 : index
    %364 = vector.load %arg4[%c0_154, %c0_155] : memref<32x24xf32, #tpu.memory_space<vmem>>, vector<32x24xf32>
    %cst_156 = arith.constant dense<0.000000e+00> : vector<32x256xf32>
    %365 = tpu.matmul %364, %22, %cst_156 {dimension_numbers = #tpu.dot_dimension_numbers<[1], [0], [0], [1], [0, 0, 1, 1], [], []>} : vector<32x24xf32>, vector<24x256xf32>, vector<32x256xf32> -> vector<32x256xf32>
    %366 = arith.addf %363, %365 : vector<32x256xf32>
    %c2_157 = arith.constant 2 : index
    %c0_158 = arith.constant 0 : index
    %c0_159 = arith.constant 0 : index
    %367 = vector.load %arg13[%c2_157, %c0_158, %c0_159] : memref<4x32x1xf32, #tpu.memory_space<vmem>>, vector<1x32x1xf32>
    %368 = vector.shape_cast %367 : vector<1x32x1xf32> to vector<32x1xf32>
    %369 = vector.broadcast %368 : vector<32x1xf32> to vector<32x256xf32>
    %370 = arith.mulf %366, %369 : vector<32x256xf32>
    %c3_160 = arith.constant 3 : index
    %c0_161 = arith.constant 0 : index
    %c0_162 = arith.constant 0 : index
    %371 = vector.load %arg13[%c3_160, %c0_161, %c0_162] : memref<4x32x1xf32, #tpu.memory_space<vmem>>, vector<1x32x1xf32>
    %372 = vector.shape_cast %371 : vector<1x32x1xf32> to vector<32x1xf32>
    %373 = vector.broadcast %372 : vector<32x1xf32> to vector<32x256xf32>
    %374 = arith.addf %370, %373 : vector<32x256xf32>
    %375 = arith.negf %374 : vector<32x256xf32>
    %376 = math.exp %375 : vector<32x256xf32>
    %cst_163 = arith.constant 1.000000e+00 : f32
    %377 = vector.broadcast %cst_163 : f32 to vector<32x256xf32>
    %378 = arith.addf %377, %376 : vector<32x256xf32>
    %379 = arith.divf %377, %378 : vector<32x256xf32>
    %380 = arith.mulf %374, %379 : vector<32x256xf32>
    %c0_164 = arith.constant 0 : index
    %c0_165 = arith.constant 0 : index
    %381 = vector.load %arg19[%c0_164, %c0_165] : memref<32x256xf32, #tpu.memory_space<vmem>>, vector<32x256xf32>
    tpu.vector_store %arg19[%c0_164, %c0_165], %380 {strides = array<i32>} : memref<32x256xf32, #tpu.memory_space<vmem>>, vector<32x256xf32>,
    return
  }
  func.func @transform_0(%arg0: i32) -> (i32, i32) {
    %c0_i32 = arith.constant 0 : i32
    %c0_i32_0 = arith.constant 0 : i32
    %c0_i32_1 = arith.constant 0 : i32
    return %c0_i32, %c0_i32_0 : i32, i32
  }
  func.func @transform_1(%arg0: i32) -> (i32, i32) {
    %c0_i32 = arith.constant 0 : i32
    %c0_i32_0 = arith.constant 0 : i32
    %c0_i32_1 = arith.constant 0 : i32
    return %c0_i32, %c0_i32_0 : i32, i32
  }
  func.func @transform_2(%arg0: i32) -> (i32, i32) {
    %c0_i32 = arith.constant 0 : i32
    %c0_i32_0 = arith.constant 0 : i32
    %c0_i32_1 = arith.constant 0 : i32
    return %c0_i32, %c0_i32_0 : i32, i32
  }
  func.func @transform_3(%arg0: i32) -> (i32, i32) {
    %c0_i32 = arith.constant 0 : i32
    %c0_i32_0 = arith.constant 0 : i32
    %c0_i32_1 = arith.constant 0 : i32
    return %c0_i32, %c0_i32_0 : i32, i32
  }
  func.func @transform_4(%arg0: i32) -> (i32, i32) {
    %c0_i32 = arith.constant 0 : i32
    %c0_i32_0 = arith.constant 0 : i32
    %c0_i32_1 = arith.constant 0 : i32
    return %c0_i32, %c0_i32_0 : i32, i32
  }
  func.func @transform_5(%arg0: i32) -> (i32, i32) {
    %c0_i32 = arith.constant 0 : i32
    %c0_i32_0 = arith.constant 0 : i32
    %c0_i32_1 = arith.constant 0 : i32
    return %c0_i32, %c0_i32_0 : i32, i32
  }
  func.func @transform_6(%arg0: i32) -> (i32, i32) {
    %c0_i32 = arith.constant 0 : i32
    %c0_i32_0 = arith.constant 0 : i32
    %c0_i32_1 = arith.constant 0 : i32
    return %c0_i32, %c0_i32_0 : i32, i32
  }
  func.func @transform_7(%arg0: i32) -> (i32, i32) {
    %c0_i32 = arith.constant 0 : i32
    %c0_i32_0 = arith.constant 0 : i32
    %c0_i32_1 = arith.constant 0 : i32
    return %c0_i32, %c0_i32_0 : i32, i32
  }
  func.func @transform_8(%arg0: i32) -> (i32, i32) {
    %c0_i32 = arith.constant 0 : i32
    %c0_i32_0 = arith.constant 0 : i32
    %c0_i32_1 = arith.constant 0 : i32
    return %c0_i32, %c0_i32_0 : i32, i32
  }
  func.func @transform_9(%arg0: i32) -> (i32, i32) {
    %c0_i32 = arith.constant 0 : i32
    %c0_i32_0 = arith.constant 0 : i32
    %c0_i32_1 = arith.constant 0 : i32
    return %c0_i32, %c0_i32_0 : i32, i32
  }
  func.func @transform_10(%arg0: i32) -> (i32, i32) {
    %c0_i32 = arith.constant 0 : i32
    %c0_i32_0 = arith.constant 0 : i32
    %c0_i32_1 = arith.constant 0 : i32
    return %c0_i32, %c0_i32_0 : i32, i32
  }
  func.func @transform_11(%arg0: i32) -> (i32, i32) {
    %c0_i32 = arith.constant 0 : i32
    %c0_i32_0 = arith.constant 0 : i32
    %c0_i32_1 = arith.constant 0 : i32
    return %c0_i32, %c0_i32_0 : i32, i32
  }
  func.func @transform_12(%arg0: i32) -> (i32, i32, i32) {
    %c0_i32 = arith.constant 0 : i32
    %c0_i32_0 = arith.constant 0 : i32
    %c0_i32_1 = arith.constant 0 : i32
    %c0_i32_2 = arith.constant 0 : i32
    return %c0_i32, %c0_i32_0, %c0_i32_1 : i32, i32, i32
  }
  func.func @transform_13(%arg0: i32) -> (i32, i32, i32) {
    %c0_i32 = arith.constant 0 : i32
    %c0_i32_0 = arith.constant 0 : i32
    %c0_i32_1 = arith.constant 0 : i32
    %c0_i32_2 = arith.constant 0 : i32
    return %c0_i32, %c0_i32_0, %c0_i32_1 : i32, i32, i32
  }
  func.func @transform_14(%arg0: i32) -> (i32, i32) {
    %c0_i32 = arith.constant 0 : i32
    %c0_i32_0 = arith.constant 0 : i32
    %c0_i32_1 = arith.constant 0 : i32
    return %c0_i32, %c0_i32_0 : i32, i32
  }
  func.func @transform_15(%arg0: i32) -> (i32, i32, i32) {
    %c0_i32 = arith.constant 0 : i32
    %c0_i32_0 = arith.constant 0 : i32
    %c0_i32_1 = arith.constant 0 : i32
    %c0_i32_2 = arith.constant 0 : i32
    return %c0_i32, %c0_i32_0, %c0_i32_1 : i32, i32, i32
  }
  func.func @transform_18(%arg0: i32) -> (i32, i32) {
    %c0_i32 = arith.constant 0 : i32
    %c0_i32_0 = arith.constant 0 : i32
    %c0_i32_1 = arith.constant 0 : i32
    return %c0_i32, %c0_i32_0 : i32, i32
  }
}

</mosaic_0001>

<llo_original>
// kernel: mfff_forward.1
$region0: #{mfff_forward.1}
  #allocation0 [shape = 'u32[]', space=smem, size = 0x4, offset = 0x4, fixed_abs, tag = 'smem constant byte address 0x4 - core index']
  #allocation1 [shape = 'u32[144,128]{1,0:T(1,128)}', space=vmem, size = 0x12000, scoped, tag = 'internal scratch']
  #allocation2 [shape = 'bf16[4,256,256]{2,1,0:T(8,128)(2,1)}', space=vmem, size = 0x80000, scoped, tag = 'scratch operand']
  #allocation3 [shape = 'bf16[4,256,256]{2,1,0:T(8,128)(2,1)}', space=vmem, size = 0x80000, scoped, tag = 'scratch operand']
  #allocation4 [shape = 's32[2]{0}', space=sflag, size = 0x8, scoped, tag = 'scratch operand']
  #allocation7 [shape = 's32[]', space=sflag, size = 0x4, offset = 0, fixed_abs, tag = 'sflag constant byte address 0x0 - dummy sync flag']
  #allocation8 [shape = 's32[]', space=sflag, size = 0x4, offset = 0, fixed_abs, tag = 'sflag constant byte address 0x0 - dummy sync flag']
  #allocation9 [shape = 'u32[]', space=smem, size = 0x4, offset = 0x44, fixed_abs, tag = 'smem constant byte address 0x44 - assertion arg 0']
  #allocation10 [shape = 'u32[]', space=smem, size = 0x4, offset = 0x48, fixed_abs, tag = 'smem constant byte address 0x48 - assertion arg 1']
  #allocation11 [shape = 's32[]', space=sflag, size = 0x4, offset = 0, fixed_abs, tag = 'sflag constant byte address 0x0 - dummy sync flag']
  #allocation12 [shape = 's32[]', space=sflag, size = 0x4, offset = 0, fixed_abs, tag = 'sflag constant byte address 0x0 - dummy sync flag']
  %s0 = inlined_call_operand.vmem [shape: f32[32,256], index: 0, kind: input, shape index: {}]
  %s1 = inlined_call_operand.vmem [shape: f32[32,32], index: 1, kind: input, shape index: {}]
  %s2 = inlined_call_operand.vmem [shape: f32[32,8], index: 2, kind: input, shape index: {}]
  %s3 = inlined_call_operand.vmem [shape: f32[32,24], index: 3, kind: input, shape index: {}]
  %s4 = inlined_call_operand.vmem [shape: f32[8,8], index: 4, kind: input, shape index: {}]
  %s5 = inlined_call_operand.vmem [shape: f32[8,8], index: 5, kind: input, shape index: {}]
  %s6 = inlined_call_operand.vmem [shape: f32[8,8], index: 6, kind: input, shape index: {}]
  %s7 = inlined_call_operand.vmem [shape: f32[8,8], index: 7, kind: input, shape index: {}]
  %s8 = inlined_call_operand.vmem [shape: f32[8,8], index: 8, kind: input, shape index: {}]
  %s9 = inlined_call_operand.vmem [shape: f32[8,8], index: 9, kind: input, shape index: {}]
  %s10 = inlined_call_operand.vmem [shape: f32[2,8], index: 10, kind: input, shape index: {}]
  %s11 = inlined_call_operand.vmem [shape: f32[8,2], index: 11, kind: input, shape index: {}]
  %s12 = inlined_call_operand.vmem [shape: f32[4,32,1], index: 12, kind: input, shape index: {}]
  %s13 = inlined_call_operand.vmem [shape: f32[13,8,1], index: 13, kind: input, shape index: {}]
  %s14 = inlined_call_operand.vmem [shape: f32[2,1], index: 14, kind: input, shape index: {}]
  %s15 = inlined_call_operand.hbm [shape: f32[2,256,256], index: 15, kind: input, shape index: {}]
  %s16 = inlined_call_operand.hbm [shape: bf16[4,256,256], index: 16, kind: input, shape index: {}]
  %s17 = inlined_call_operand.hbm [shape: bf16[4,256,256], index: 17, kind: input, shape index: {}]
  %s18 = inlined_call_operand.vmem [shape: f32[32,256], index: 18, kind: output, shape index: {}]
  %s19 = sld [smem:[#allocation0]]
  $region86: #{mfff_forward.1} parent=0
    _
  %s21 = ssub.s32 1, %s19
  %s22 = scalar_select 0, %s21, %s19
  $region1: #{mfff_forward.1} parent=0
    #allocation5 [shape = 'u8[524288]{0}', space=vmem, size = 0x80000, scoped, tag = 'input window, operand 15, single buffered']
    #allocation6 [shape = 's32[1]{0}', space=sflag, size = 0x4, scoped, tag = 'scoped memory for mfff_forward.1']
    %23 = vsyncpa [#allocation6], 0
    // Predicated region
    $region2: #{mfff_forward.1} parent=1 // pred_check
      _
    $region3: #{mfff_forward.1} parent=1 // pred_check_branch
      %25 = sbr.rel (0) target = $region5
    $region4: #{mfff_forward.1} parent=1 // pred_region
      _
    $region5: #{mfff_forward.1} parent=1 // pred_fallthru
      _
    // Predicated region
    $region6: #{mfff_forward.1} parent=1 // pred_check
      _
    $region7: #{mfff_forward.1} parent=1 // pred_check_branch
      %27 = sbr.rel (0) target = $region9
    $region8: #{mfff_forward.1} parent=1 // pred_region
      _
    $region9: #{mfff_forward.1} parent=1 // pred_fallthru
      _
    // Predicated region
    $region10: #{mfff_forward.1} parent=1 // pred_check
      _
    $region11: #{mfff_forward.1} parent=1 // pred_check_branch
      %29 = sbr.rel (0) target = $region13
    $region12: #{mfff_forward.1} parent=1 // pred_region
      _
    $region13: #{mfff_forward.1} parent=1 // pred_fallthru
      _
    // Predicated region
    $region14: #{mfff_forward.1} parent=1 // pred_check
      _
    $region15: #{mfff_forward.1} parent=1 // pred_check_branch
      %31 = sbr.rel (0) target = $region17
    $region16: #{mfff_forward.1} parent=1 // pred_region
      _
    $region17: #{mfff_forward.1} parent=1 // pred_fallthru
      _
    // Predicated region
    $region18: #{mfff_forward.1} parent=1 // pred_check
      _
    $region19: #{mfff_forward.1} parent=1 // pred_check_branch
      %33 = sbr.rel (0) target = $region21
    $region20: #{mfff_forward.1} parent=1 // pred_region
      _
    $region21: #{mfff_forward.1} parent=1 // pred_fallthru
      _
    // Predicated region
    $region22: #{mfff_forward.1} parent=1 // pred_check
      _
    $region23: #{mfff_forward.1} parent=1 // pred_check_branch
      %35 = sbr.rel (0) target = $region25
    $region24: #{mfff_forward.1} parent=1 // pred_region
      _
    $region25: #{mfff_forward.1} parent=1 // pred_fallthru
      _
    // Predicated region
    $region26: #{mfff_forward.1} parent=1 // pred_check
      _
    $region27: #{mfff_forward.1} parent=1 // pred_check_branch
      %37 = sbr.rel (0) target = $region29
    $region28: #{mfff_forward.1} parent=1 // pred_region
      _
    $region29: #{mfff_forward.1} parent=1 // pred_fallthru
      _
    // Predicated region
    $region30: #{mfff_forward.1} parent=1 // pred_check
      _
    $region31: #{mfff_forward.1} parent=1 // pred_check_branch
      %39 = sbr.rel (0) target = $region33
    $region32: #{mfff_forward.1} parent=1 // pred_region
      _
    $region33: #{mfff_forward.1} parent=1 // pred_fallthru
      _
    // Predicated region
    $region34: #{mfff_forward.1} parent=1 // pred_check
      _
    $region35: #{mfff_forward.1} parent=1 // pred_check_branch
      %41 = sbr.rel (0) target = $region37
    $region36: #{mfff_forward.1} parent=1 // pred_region
      _
    $region37: #{mfff_forward.1} parent=1 // pred_fallthru
      _
    // Predicated region
    $region38: #{mfff_forward.1} parent=1 // pred_check
      _
    $region39: #{mfff_forward.1} parent=1 // pred_check_branch
      %43 = sbr.rel (0) target = $region41
    $region40: #{mfff_forward.1} parent=1 // pred_region
      _
    $region41: #{mfff_forward.1} parent=1 // pred_fallthru
      _
    // Predicated region
    $region42: #{mfff_forward.1} parent=1 // pred_check
      _
    $region43: #{mfff_forward.1} parent=1 // pred_check_branch
      %45 = sbr.rel (0) target = $region45
    $region44: #{mfff_forward.1} parent=1 // pred_region
      _
    $region45: #{mfff_forward.1} parent=1 // pred_fallthru
      _
    // Predicated region
    $region46: #{mfff_forward.1} parent=1 // pred_check
      _
    $region47: #{mfff_forward.1} parent=1 // pred_check_branch
      %47 = sbr.rel (0) target = $region49
    $region48: #{mfff_forward.1} parent=1 // pred_region
      _
    $region49: #{mfff_forward.1} parent=1 // pred_fallthru
      _
    // Predicated region
    $region50: #{mfff_forward.1} parent=1 // pred_check
      _
    $region51: #{mfff_forward.1} parent=1 // pred_check_branch
      %49 = sbr.rel (0) target = $region53
    $region52: #{mfff_forward.1} parent=1 // pred_region
      _
    $region53: #{mfff_forward.1} parent=1 // pred_fallthru
      _
    // Predicated region
    $region54: #{mfff_forward.1} parent=1 // pred_check
      _
    $region55: #{mfff_forward.1} parent=1 // pred_check_branch
      %51 = sbr.rel (0) target = $region57
    $region56: #{mfff_forward.1} parent=1 // pred_region
      _
    $region57: #{mfff_forward.1} parent=1 // pred_fallthru
      _
    // Predicated region
    $region58: #{mfff_forward.1} parent=1 // pred_check
      _
    $region59: #{mfff_forward.1} parent=1 // pred_check_branch
      %53 = sbr.rel (0) target = $region61
    $region60: #{mfff_forward.1} parent=1 // pred_region
      _
    $region61: #{mfff_forward.1} parent=1 // pred_fallthru
      _
    // Predicated region
    $region62: #{mfff_forward.1} parent=1 // pred_check
      _
    $region63: #{mfff_forward.1} parent=1 // pred_check_branch
      %55 = sbr.rel (0) target = $region65
    $region64: #{mfff_forward.1} parent=1 // pred_region
      %s57 = ssub.s32 16384, 16384
      %58 = vsyncadd [#allocation6], %s57
      %s59 = sshll.u32 [#allocation5], 4
      %s60 = int_to_ptr.vmem [resolvable:$true] %s59
      %65 = dma.hbm_to_vmem [thread:$0]  %s15, 16384, %s60, [#allocation6], 256, 256, 16
    $region65: #{mfff_forward.1} parent=1 // pred_fallthru
      _
    // Predicated region
    $region66: #{mfff_forward.1} parent=1 // pred_check
      _
    $region67: #{mfff_forward.1} parent=1 // pred_check_branch
      %67 = sbr.rel (0) target = $region69
    $region68: #{mfff_forward.1} parent=1 // pred_region
      %68 = dma.done [#allocation6], 16384
    $region69: #{mfff_forward.1} parent=1 // pred_fallthru
      _
    // Predicated region
    $region70: #{mfff_forward.1} parent=1 // pred_check
      _
    $region71: #{mfff_forward.1} parent=1 // pred_check_branch
      %70 = sbr.rel target = $region73
    $region72: #{mfff_forward.1} parent=1 // pred_region
      %71 = sst [smem:[#allocation9]] [#allocation8]
      %72 = sst [smem:[#allocation10]] [#allocation7]
    $region73: #{mfff_forward.1} parent=1 // pred_fallthru
      _
    %74 = shalt.err (0)
    %s76 = sshll.u32 [#allocation2], 4
    %s77 = int_to_ptr.vmem [resolvable:$true] %s76
    %79 = dma.hbm_to_vmem [thread:$0]  %s16, 16384, %s77, [#allocation4]
    %s80 = scalar_lea.sflag [#allocation4], 1
    // Predicated region
    $region74: #{mfff_forward.1} parent=1 // pred_check
      _
    $region75: #{mfff_forward.1} parent=1 // pred_check_branch
      %82 = sbr.rel target = $region77
    $region76: #{mfff_forward.1} parent=1 // pred_region
      %83 = sst [smem:[#allocation9]] [#allocation12]
      %84 = sst [smem:[#allocation10]] [#allocation11]
    $region77: #{mfff_forward.1} parent=1 // pred_fallthru
      _
    %86 = shalt.err (0)
    %s88 = sshll.u32 [#allocation3], 4
    %s89 = int_to_ptr.vmem [resolvable:$true] %s88
    %91 = dma.hbm_to_vmem [thread:$0]  %s17, 16384, %s89, %s80
    %v92 = vld [vmem:[%s0] sm:$0xff]
    %v93 = vld [vmem:[%s0 + $0x8] sm:$0xff]
    %v94 = vld [vmem:[%s0 + $0x10] sm:$0xff]
    %v95 = vld [vmem:[%s0 + $0x18] sm:$0xff]
    %v96 = vld [vmem:[%s0 + $0x20] sm:$0xff]
    %v97 = vld [vmem:[%s0 + $0x28] sm:$0xff]
    %v98 = vld [vmem:[%s0 + $0x30] sm:$0xff]
    %v99 = vld [vmem:[%s0 + $0x38] sm:$0xff]
    %v100 = vld [vmem:[%s1] sm:$0xff]
    %v101 = vld [vmem:[%s1 + $0x8] sm:$0xff]
    %v102 = vld [vmem:[%s1 + $0x10] sm:$0xff]
    %v103 = vld [vmem:[%s1 + $0x18] sm:$0xff]
    %vm104 = vcmask 261120
    %v106 = vsel %vm104, %v100, 0
    %v109 = vsel %vm104, %v101, 0
    %v112 = vsel %vm104, %v102, 0
    %v115 = vsel %vm104, %v103, 0
    %117 = vmatprep.subr.mxu0 0.0
    %118 = vmatpush1.msra.mxu0 0.0
    %119 = vmatprep.subr.mxu0 0.0
    %120 = vmatpush1.msra.mxu0 0.0
    %121 = vmatprep.subr.mxu0 0.0
    %122 = vmatpush1.msra.mxu0 0.0
    %123 = vmatprep.subr.mxu0 0.0
    %124 = vmatpush1.msra.mxu0 0.0
    %125 = vmatprep.subr.mxu0 0.0
    %126 = vmatpush1.msra.mxu0 0.0
    %127 = vmatprep.subr.mxu0 0.0
    %128 = vmatpush1.msra.mxu0 0.0
    %129 = vmatprep.subr.mxu0 0.0
    %130 = vmatpush1.msra.mxu0 0.0
    %131 = vmatprep.subr.mxu0 0.0
    %132 = vmatpush1.msra.mxu0 0.0
    %133 = vmatprep.subr.mxu0 0.0
    %134 = vmatpush1.msra.mxu0 0.0
    %135 = vmatprep.subr.mxu0 0.0
    %136 = vmatpush1.msra.mxu0 0.0
    %137 = vmatprep.subr.mxu0 0.0
    %138 = vmatpush1.msra.mxu0 0.0
    %139 = vmatprep.subr.mxu0 0.0
    %140 = vmatpush1.msra.mxu0 0.0
    %141 = vmatprep.subr.mxu0 %v99
    %142 = vmatpush1.msra.mxu0 %v98
    %143 = vmatprep.subr.mxu0 %v97
    %144 = vmatpush1.msra.mxu0 %v96
    %145 = vmatprep.subr.mxu0 %v95
    %146 = vmatpush1.msra.mxu0 %v94
    %147 = vmatprep.subr.mxu0 %v93
    %148 = vmatpush1.msra.mxu0 %v92
    %149 = vmatprep.subr.mxu0 0.0
    %150 = vmatpush2.msra.mxu0 0.0
    %151 = vmatprep.subr.mxu0 0.0
    %152 = vmatpush2.msra.mxu0 0.0
    %153 = vmatprep.subr.mxu0 0.0
    %154 = vmatpush2.msra.mxu0 0.0
    %155 = vmatprep.subr.mxu0 0.0
    %156 = vmatpush2.msra.mxu0 0.0
    %157 = vmatprep.subr.mxu0 0.0
    %158 = vmatpush2.msra.mxu0 0.0
    %159 = vmatprep.subr.mxu0 0.0
    %160 = vmatpush2.msra.mxu0 0.0
    %161 = vmatprep.subr.mxu0 0.0
    %162 = vmatpush2.msra.mxu0 0.0
    %163 = vmatprep.subr.mxu0 0.0
    %164 = vmatpush2.msra.mxu0 0.0
    %165 = vmatprep.subr.mxu0 0.0
    %166 = vmatpush2.msra.mxu0 0.0
    %167 = vmatprep.subr.mxu0 0.0
    %168 = vmatpush2.msra.mxu0 0.0
    %169 = vmatprep.subr.mxu0 0.0
    %170 = vmatpush2.msra.mxu0 0.0
    %171 = vmatprep.subr.mxu0 0.0
    %172 = vmatpush2.msra.mxu0 0.0
    %173 = vmatprep.subr.mxu0 0.0
    %174 = vmatpush2.msra.mxu0 0.0
    %175 = vmatprep.subr.mxu0 0.0
    %176 = vmatpush2.msra.mxu0 0.0
    %177 = vmatprep.subr.mxu0 0.0
    %178 = vmatpush2.msra.mxu0 0.0
    %179 = vmatprep.subr.mxu0 0.0
    %180 = vmatpush2.msra.mxu0 0.0
    %181 = vmatprep.mubr.f32.mxu0 0.0
    %182 = vmatmul.mubr.f32.gmra.mxu0 %v106
    %v183 = vpop.f32.mrf.mxu0
    %v184 = vadd.f32 0.0, %v183
    %v185 = vpop.f32.mrf.mxu0
    %v186 = vadd.f32 0.0, %v185
    %187 = vmatprep.mubr.f32.mxu0 0.0
    %188 = vmatmul.mubr.f32.gmra.mxu0 %v109
    %v189 = vpop.f32.mrf.mxu0
    %v190 = vadd.f32 0.0, %v189
    %v191 = vpop.f32.mrf.mxu0
    %v192 = vadd.f32 0.0, %v191
    %193 = vmatprep.mubr.f32.mxu0 0.0
    %194 = vmatmul.mubr.f32.gmra.mxu0 %v112
    %v195 = vpop.f32.mrf.mxu0
    %v196 = vadd.f32 0.0, %v195
    %v197 = vpop.f32.mrf.mxu0
    %v198 = vadd.f32 0.0, %v197
    %199 = vmatprep.mubr.f32.mxu0 0.0
    %200 = vmatmul.mubr.f32.gmra.mxu0 %v115
    %v201 = vpop.f32.mrf.mxu0
    %v202 = vadd.f32 0.0, %v201
    %v203 = vpop.f32.mrf.mxu0
    %v204 = vadd.f32 0.0, %v203
    %205 = vdwg.mxu0
    %v206 = vld [vmem:[%s12] sm:$0xff]
    %v207 = vld [vmem:[%s12 + $0x8] sm:$0xff]
    %v208 = vld [vmem:[%s12 + $0x10] sm:$0xff]
    %v209 = vld [vmem:[%s12 + $0x18] sm:$0xff]
    %211 = vset.pattern.permute.xlu0 0
    %212 = vperm.xlu0 %211, %v206
    %v213 = vpop.permute.xlu0 %212
    %216 = vset.pattern.permute.xlu0 0
    %217 = vperm.xlu0 %216, %v207
    %v218 = vpop.permute.xlu0 %217
    %221 = vset.pattern.permute.xlu0 0
    %222 = vperm.xlu0 %221, %v208
    %v223 = vpop.permute.xlu0 %222
    %226 = vset.pattern.permute.xlu0 0
    %227 = vperm.xlu0 %226, %v209
    %v228 = vpop.permute.xlu0 %227
    %v230 = vmul.f32 %v184, %v213
    %v231 = vmul.f32 %v186, %v213
    %v232 = vmul.f32 %v190, %v218
    %v233 = vmul.f32 %v192, %v218
    %v234 = vmul.f32 %v196, %v223
    %v235 = vmul.f32 %v198, %v223
    %v236 = vmul.f32 %v202, %v228
    %v237 = vmul.f32 %v204, %v228
    %s238 = scalar_lea.vmem %s12, 32
    %v239 = vld [vmem:[%s238] sm:$0xff]
    %v240 = vld [vmem:[%s238 + $0x8] sm:$0xff]
    %v241 = vld [vmem:[%s238 + $0x10] sm:$0xff]
    %v242 = vld [vmem:[%s238 + $0x18] sm:$0xff]
    %244 = vset.pattern.permute.xlu0 0
    %245 = vperm.xlu0 %244, %v239
    %v246 = vpop.permute.xlu0 %245
    %249 = vset.pattern.permute.xlu0 0
    %250 = vperm.xlu0 %249, %v240
    %v251 = vpop.permute.xlu0 %250
    %254 = vset.pattern.permute.xlu0 0
    %255 = vperm.xlu0 %254, %v241
    %v256 = vpop.permute.xlu0 %255
    %259 = vset.pattern.permute.xlu0 0
    %260 = vperm.xlu0 %259, %v242
    %v261 = vpop.permute.xlu0 %260
    %v263 = vadd.f32 %v230, %v246
    %v264 = vadd.f32 %v231, %v246
    %v265 = vadd.f32 %v232, %v251
    %v266 = vadd.f32 %v233, %v251
    %v267 = vadd.f32 %v234, %v256
    %v268 = vadd.f32 %v235, %v256
    %v269 = vadd.f32 %v236, %v261
    %v270 = vadd.f32 %v237, %v261
    %v271 = vxor.u32 %v263, 2147483648
    %v272 = vxor.u32 %v264, 2147483648
    %v273 = vxor.u32 %v265, 2147483648
    %v274 = vxor.u32 %v266, 2147483648
    %v275 = vxor.u32 %v267, 2147483648
    %v276 = vxor.u32 %v268, 2147483648
    %v277 = vxor.u32 %v269, 2147483648
    %v278 = vxor.u32 %v270, 2147483648
    %v279 = vmul.f32 %v271, 1.442695
    %v280 = vpow.pop %v279
    %v281 = vmul.f32 %v272, 1.442695
    %v282 = vpow.pop %v281
    %v283 = vmul.f32 %v273, 1.442695
    %v284 = vpow.pop %v283
    %v285 = vmul.f32 %v274, 1.442695
    %v286 = vpow.pop %v285
    %v287 = vmul.f32 %v275, 1.442695
    %v288 = vpow.pop %v287
    %v289 = vmul.f32 %v276, 1.442695
    %v290 = vpow.pop %v289
    %v291 = vmul.f32 %v277, 1.442695
    %v292 = vpow.pop %v291
    %v293 = vmul.f32 %v278, 1.442695
    %v294 = vpow.pop %v293
    %v295 = vadd.f32 %v280, 1.0
    %v296 = vadd.f32 %v282, 1.0
    %v297 = vadd.f32 %v284, 1.0
    %v298 = vadd.f32 %v286, 1.0
    %v299 = vadd.f32 %v288, 1.0
    %v300 = vadd.f32 %v290, 1.0
    %v301 = vadd.f32 %v292, 1.0
    %v302 = vadd.f32 %v294, 1.0
    %v303 = vrcp.pop %v295
    %v304 = vmul.f32 1.0, %v303
    %v305 = vrcp.pop %v296
    %v306 = vmul.f32 1.0, %v305
    %v307 = vrcp.pop %v297
    %v308 = vmul.f32 1.0, %v307
    %v309 = vrcp.pop %v298
    %v310 = vmul.f32 1.0, %v309
    %v311 = vrcp.pop %v299
    %v312 = vmul.f32 1.0, %v311
    %v313 = vrcp.pop %v300
    %v314 = vmul.f32 1.0, %v313
    %v315 = vrcp.pop %v301
    %v316 = vmul.f32 1.0, %v315
    %v317 = vrcp.pop %v302
    %v318 = vmul.f32 1.0, %v317
    %v319 = vmul.f32 %v263, %v304
    %v320 = vmul.f32 %v264, %v306
    %v321 = vmul.f32 %v265, %v308
    %v322 = vmul.f32 %v266, %v310
    %v323 = vmul.f32 %v267, %v312
    %v324 = vmul.f32 %v268, %v314
    %v325 = vmul.f32 %v269, %v316
    %v326 = vmul.f32 %v270, %v318
    %v327 = vld [vmem:[%s4] sm:$0xff]
    %v328 = vld [vmem:[%s13] sm:$0xff]
    %330 = vset.pattern.permute.xlu0 0
    %331 = vperm.xlu0 %330, %v328
    %v332 = vpop.permute.xlu0 %331
    %vm334 = vcmask 64512
    %v336 = vsel %vm334, %v327, 0
    %338 = vmatprep.subr.mxu0 0.0
    %339 = vmatpush1.msra.mxu0 0.0
    %340 = vmatprep.subr.mxu0 0.0
    %341 = vmatpush1.msra.mxu0 0.0
    %342 = vmatprep.subr.mxu0 0.0
    %343 = vmatpush1.msra.mxu0 0.0
    %344 = vmatprep.subr.mxu0 0.0
    %345 = vmatpush1.msra.mxu0 0.0
    %346 = vmatprep.subr.mxu0 0.0
    %347 = vmatpush1.msra.mxu0 0.0
    %348 = vmatprep.subr.mxu0 0.0
    %349 = vmatpush1.msra.mxu0 0.0
    %350 = vmatprep.subr.mxu0 0.0
    %351 = vmatpush1.msra.mxu0 0.0
    %352 = vmatprep.subr.mxu0 0.0
    %353 = vmatpush1.msra.mxu0 0.0
    %354 = vmatprep.subr.mxu0 0.0
    %355 = vmatpush1.msra.mxu0 0.0
    %356 = vmatprep.subr.mxu0 0.0
    %357 = vmatpush1.msra.mxu0 0.0
    %358 = vmatprep.subr.mxu0 0.0
    %359 = vmatpush1.msra.mxu0 0.0
    %360 = vmatprep.subr.mxu0 0.0
    %361 = vmatpush1.msra.mxu0 0.0
    %362 = vmatprep.subr.mxu0 0.0
    %363 = vmatpush1.msra.mxu0 0.0
    %364 = vmatprep.subr.mxu0 0.0
    %365 = vmatpush1.msra.mxu0 0.0
    %366 = vmatprep.subr.mxu0 0.0
    %367 = vmatpush1.msra.mxu0 0.0
    %368 = vmatprep.subr.mxu0 %v320
    %369 = vmatpush1.msra.mxu0 %v319
    %370 = vmatprep.subr.mxu0 0.0
    %371 = vmatpush2.msra.mxu0 0.0
    %372 = vmatprep.subr.mxu0 0.0
    %373 = vmatpush2.msra.mxu0 0.0
    %374 = vmatprep.subr.mxu0 0.0
    %375 = vmatpush2.msra.mxu0 0.0
    %376 = vmatprep.subr.mxu0 0.0
    %377 = vmatpush2.msra.mxu0 0.0
    %378 = vmatprep.subr.mxu0 0.0
    %379 = vmatpush2.msra.mxu0 0.0
    %380 = vmatprep.subr.mxu0 0.0
    %381 = vmatpush2.msra.mxu0 0.0
    %382 = vmatprep.subr.mxu0 0.0
    %383 = vmatpush2.msra.mxu0 0.0
    %384 = vmatprep.subr.mxu0 0.0
    %385 = vmatpush2.msra.mxu0 0.0
    %386 = vmatprep.subr.mxu0 0.0
    %387 = vmatpush2.msra.mxu0 0.0
    %388 = vmatprep.subr.mxu0 0.0
    %389 = vmatpush2.msra.mxu0 0.0
    %390 = vmatprep.subr.mxu0 0.0
    %391 = vmatpush2.msra.mxu0 0.0
    %392 = vmatprep.subr.mxu0 0.0
    %393 = vmatpush2.msra.mxu0 0.0
    %394 = vmatprep.subr.mxu0 0.0
    %395 = vmatpush2.msra.mxu0 0.0
    %396 = vmatprep.subr.mxu0 0.0
    %397 = vmatpush2.msra.mxu0 0.0
    %398 = vmatprep.subr.mxu0 0.0
    %399 = vmatpush2.msra.mxu0 0.0
    %400 = vmatprep.subr.mxu0 0.0
    %401 = vmatpush2.msra.mxu0 0.0
    %402 = vmatprep.mubr.f32.mxu0 0.0
    %403 = vmatmul.mubr.f32.gmra.mxu0 %v336
    %v404 = vpop.f32.mrf.mxu0
    %v405 = vadd.f32 %v332, %v404
    %v406 = vpop.f32.mrf.mxu0
    %v407 = vadd.f32 %v332, %v406
    %408 = vdwg.mxu0
    %v409 = vmul.f32 %v405, 0.5
    %v410 = vmul.f32 %v407, 0.5
    %v411 = vmul.f32 %v405, 0.70710677
    %v412 = vmul.f32 %v407, 0.70710677
    %vm413 = vcmp.ge.f32.partialorder %v411, 0.0
    %vm414 = vcmp.ge.f32.partialorder %v412, 0.0
    %v415 = vsel %vm413, 1.0, -1.0
    %v416 = vsel %vm414, 1.0, -1.0
    %v417 = vand.u32 2147483647, %v411
    %v418 = vand.u32 2147483647, %v412
    %v419 = vmul.f32 %v417, 0.3275911
    %v420 = vmul.f32 %v418, 0.3275911
    %v421 = vadd.f32 %v419, 1.0
    %v422 = vadd.f32 %v420, 1.0
    %v423 = vrcp.pop %v421
    %v424 = vmul.f32 1.0, %v423
    %v425 = vrcp.pop %v422
    %v426 = vmul.f32 1.0, %v425
    %v427 = vmul.f32 %v424, 1.0614054
    %v428 = vmul.f32 %v426, 1.0614054
    %v429 = vadd.f32 %v427, -1.4531521
    %v430 = vadd.f32 %v428, -1.4531521
    %v431 = vmul.f32 %v429, %v424
    %v432 = vmul.f32 %v430, %v426
    %v433 = vadd.f32 %v431, 1.4214138
    %v434 = vadd.f32 %v432, 1.4214138
    %v435 = vmul.f32 %v433, %v424
    %v436 = vmul.f32 %v434, %v426
    %v437 = vadd.f32 %v435, -0.28449672
    %v438 = vadd.f32 %v436, -0.28449672
    %v439 = vmul.f32 %v437, %v424
    %v440 = vmul.f32 %v438, %v426
    %v441 = vadd.f32 %v439, 0.2548296
    %v442 = vadd.f32 %v440, 0.2548296
    %v443 = vmul.f32 %v441, %v424
    %v444 = vmul.f32 %v442, %v426
    %v445 = vsub.f32 0.0, %v417
    %v446 = vsub.f32 0.0, %v418
    %v447 = vmul.f32 %v445, %v417
    %v448 = vmul.f32 %v446, %v418
    %v449 = vmul.f32 %v447, 1.442695
    %v450 = vpow.pop %v449
    %v451 = vmul.f32 %v448, 1.442695
    %v452 = vpow.pop %v451
    %v453 = vmul.f32 %v443, %v450
    %v454 = vmul.f32 %v444, %v452
    %v455 = vsub.f32 1.0, %v453
    %v456 = vsub.f32 1.0, %v454
    %v457 = vmul.f32 %v415, %v455
    %v458 = vmul.f32 %v416, %v456
    %v459 = vadd.f32 %v457, 1.0
    %v460 = vadd.f32 %v458, 1.0
    %v461 = vmul.f32 %v409, %v459
    %v462 = vmul.f32 %v410, %v460
    %v463 = vadd.f32 %v461, %v462
    %464 = vadd.xlane.f32.xlu0 %v463
    %v465 = vpop.xlane.xlu0 %464
    %v466 = vrcp.pop 256.0
    %v467 = vmul.f32 %v465, %v466
    %s468 = scalar_lea.vmem %s13, 8
    %v469 = vld [vmem:[%s468] sm:$0xff]
    %v470 = vld [vmem:[%s9] sm:$0xff]
    %v471 = vlaneseq
    %v472 = vshrl.u32 %v471, 7
    %v473 = vsub.s32 0, %v472
    %v474 = vrot.slane %v467, %v473
    %v475 = vmul.f32 %v470, %v474
    %v476 = vadd.f32 %v469, %v475
    %v477 = vlaneseq
    %v478 = vshrl.u32 %v477, 7
    %v479 = vsub.s32 1, %v478
    %v480 = vrot.slane %v467, %v479
    %v481 = vmul.f32 %v470, %v480
    %483 = vrot.lane.b32.xlu0 %v481, 127
    %v484 = vpop.permute.xlu0 %483
    %v486 = vadd.f32 %v476, %v484
    %v487 = vlaneseq
    %v488 = vshrl.u32 %v487, 7
    %v489 = vsub.s32 2, %v488
    %v490 = vrot.slane %v467, %v489
    %v491 = vmul.f32 %v470, %v490
    %493 = vrot.lane.b32.xlu0 %v491, 126
    %v494 = vpop.permute.xlu0 %493
    %v496 = vadd.f32 %v486, %v494
    %v497 = vlaneseq
    %v498 = vshrl.u32 %v497, 7
    %v499 = vsub.s32 3, %v498
    %v500 = vrot.slane %v467, %v499
    %v501 = vmul.f32 %v470, %v500
    %503 = vrot.lane.b32.xlu0 %v501, 125
    %v504 = vpop.permute.xlu0 %503
    %v506 = vadd.f32 %v496, %v504
    %v507 = vlaneseq
    %v508 = vshrl.u32 %v507, 7
    %v509 = vsub.s32 4, %v508
    %v510 = vrot.slane %v467, %v509
    %v511 = vmul.f32 %v470, %v510
    %513 = vrot.lane.b32.xlu0 %v511, 124
    %v514 = vpop.permute.xlu0 %513
    %v516 = vadd.f32 %v506, %v514
    %v517 = vlaneseq
    %v518 = vshrl.u32 %v517, 7
    %v519 = vsub.s32 5, %v518
    %v520 = vrot.slane %v467, %v519
    %v521 = vmul.f32 %v470, %v520
    %523 = vrot.lane.b32.xlu0 %v521, 123
    %v524 = vpop.permute.xlu0 %523
    %v526 = vadd.f32 %v516, %v524
    %v527 = vlaneseq
    %v528 = vshrl.u32 %v527, 7
    %v529 = vsub.s32 6, %v528
    %v530 = vrot.slane %v467, %v529
    %v531 = vmul.f32 %v470, %v530
    %533 = vrot.lane.b32.xlu0 %v531, 122
    %v534 = vpop.permute.xlu0 %533
    %v536 = vadd.f32 %v526, %v534
    %v537 = vlaneseq
    %v538 = vshrl.u32 %v537, 7
    %v539 = vsub.s32 7, %v538
    %v540 = vrot.slane %v467, %v539
    %v541 = vmul.f32 %v470, %v540
    %543 = vrot.lane.b32.xlu0 %v541, 121
    %v544 = vpop.permute.xlu0 %543
    %v546 = vadd.f32 %v536, %v544
    %v547 = vld [vmem:[#allocation5] sm:$0xff]
    %v548 = vld [vmem:[#allocation5 + $0x8] sm:$0xff]
    %v549 = vld [vmem:[#allocation5 + $0x10] sm:$0xff]
    %v550 = vld [vmem:[#allocation5 + $0x18] sm:$0xff]
    %v551 = vld [vmem:[#allocation5 + $0x20] sm:$0xff]
    %v552 = vld [vmem:[#allocation5 + $0x28] sm:$0xff]
    %v553 = vld [vmem:[#allocation5 + $0x30] sm:$0xff]
    %v554 = vld [vmem:[#allocation5 + $0x38] sm:$0xff]
    %v555 = vld [vmem:[#allocation5 + $0x40] sm:$0xff]
    %v556 = vld [vmem:[#allocation5 + $0x48] sm:$0xff]
    %v557 = vld [vmem:[#allocation5 + $0x50] sm:$0xff]
    %v558 = vld [vmem:[#allocation5 + $0x58] sm:$0xff]
    %v559 = vld [vmem:[#allocation5 + $0x60] sm:$0xff]
    %v560 = vld [vmem:[#allocation5 + $0x68] sm:$0xff]
    %v561 = vld [vmem:[#allocation5 + $0x70] sm:$0xff]
    %v562 = vld [vmem:[#allocation5 + $0x78] sm:$0xff]
    %v563 = vld [vmem:[#allocation5 + $0x80] sm:$0xff]
    %v564 = vld [vmem:[#allocation5 + $0x88] sm:$0xff]
    %v565 = vld [vmem:[#allocation5 + $0x90] sm:$0xff]
    %v566 = vld [vmem:[#allocation5 + $0x98] sm:$0xff]
    %v567 = vld [vmem:[#allocation5 + $0xa0] sm:$0xff]
    %v568 = vld [vmem:[#allocation5 + $0xa8] sm:$0xff]
    %v569 = vld [vmem:[#allocation5 + $0xb0] sm:$0xff]
    %v570 = vld [vmem:[#allocation5 + $0xb8] sm:$0xff]
    %v571 = vld [vmem:[#allocation5 + $0xc0] sm:$0xff]
    %v572 = vld [vmem:[#allocation5 + $0xc8] sm:$0xff]
    %v573 = vld [vmem:[#allocation5 + $0xd0] sm:$0xff]
    %v574 = vld [vmem:[#allocation5 + $0xd8] sm:$0xff]
    %v575 = vld [vmem:[#allocation5 + $0xe0] sm:$0xff]
    %v576 = vld [vmem:[#allocation5 + $0xe8] sm:$0xff]
    %v577 = vld [vmem:[#allocation5 + $0xf0] sm:$0xff]
    %v578 = vld [vmem:[#allocation5 + $0xf8] sm:$0xff]
    %v579 = vld [vmem:[#allocation5 + $0x100] sm:$0xff]
    %v580 = vld [vmem:[#allocation5 + $0x108] sm:$0xff]
    %v581 = vld [vmem:[#allocation5 + $0x110] sm:$0xff]
    %v582 = vld [vmem:[#allocation5 + $0x118] sm:$0xff]
    %v583 = vld [vmem:[#allocation5 + $0x120] sm:$0xff]
    %v584 = vld [vmem:[#allocation5 + $0x128] sm:$0xff]
    %v585 = vld [vmem:[#allocation5 + $0x130] sm:$0xff]
    %v586 = vld [vmem:[#allocation5 + $0x138] sm:$0xff]
    %v587 = vld [vmem:[#allocation5 + $0x140] sm:$0xff]
    %v588 = vld [vmem:[#allocation5 + $0x148] sm:$0xff]
    %v589 = vld [vmem:[#allocation5 + $0x150] sm:$0xff]
    %v590 = vld [vmem:[#allocation5 + $0x158] sm:$0xff]
    %v591 = vld [vmem:[#allocation5 + $0x160] sm:$0xff]
    %v592 = vld [vmem:[#allocation5 + $0x168] sm:$0xff]
    %v593 = vld [vmem:[#allocation5 + $0x170] sm:$0xff]
    %v594 = vld [vmem:[#allocation5 + $0x178] sm:$0xff]
    %v595 = vld [vmem:[#allocation5 + $0x180] sm:$0xff]
    %v596 = vld [vmem:[#allocation5 + $0x188] sm:$0xff]
    %v597 = vld [vmem:[#allocation5 + $0x190] sm:$0xff]
    %v598 = vld [vmem:[#allocation5 + $0x198] sm:$0xff]
    %v599 = vld [vmem:[#allocation5 + $0x1a0] sm:$0xff]
    %v600 = vld [vmem:[#allocation5 + $0x1a8] sm:$0xff]
    %v601 = vld [vmem:[#allocation5 + $0x1b0] sm:$0xff]
    %v602 = vld [vmem:[#allocation5 + $0x1b8] sm:$0xff]
    %v603 = vld [vmem:[#allocation5 + $0x1c0] sm:$0xff]
    %v604 = vld [vmem:[#allocation5 + $0x1c8] sm:$0xff]
    %v605 = vld [vmem:[#allocation5 + $0x1d0] sm:$0xff]
    %v606 = vld [vmem:[#allocation5 + $0x1d8] sm:$0xff]
    %v607 = vld [vmem:[#allocation5 + $0x1e0] sm:$0xff]
    %v608 = vld [vmem:[#allocation5 + $0x1e8] sm:$0xff]
    %v609 = vld [vmem:[#allocation5 + $0x1f0] sm:$0xff]
    %v610 = vld [vmem:[#allocation5 + $0x1f8] sm:$0xff]
    %611 = vmatprep.subr.mxu0 %v578
    %612 = vmatpush1.msra.mxu0 %v577
    %613 = vmatprep.subr.mxu0 %v576
    %614 = vmatpush1.msra.mxu0 %v575
    %615 = vmatprep.subr.mxu0 %v574
    %616 = vmatpush1.msra.mxu0 %v573
    %617 = vmatprep.subr.mxu0 %v572
    %618 = vmatpush1.msra.mxu0 %v571
    %619 = vmatprep.subr.mxu0 %v570
    %620 = vmatpush1.msra.mxu0 %v569
    %621 = vmatprep.subr.mxu0 %v568
    %622 = vmatpush1.msra.mxu0 %v567
    %623 = vmatprep.subr.mxu0 %v566
    %624 = vmatpush1.msra.mxu0 %v565
    %625 = vmatprep.subr.mxu0 %v564
    %626 = vmatpush1.msra.mxu0 %v563
    %627 = vmatprep.subr.mxu0 %v562
    %628 = vmatpush1.msra.mxu0 %v561
    %629 = vmatprep.subr.mxu0 %v560
    %630 = vmatpush1.msra.mxu0 %v559
    %631 = vmatprep.subr.mxu0 %v558
    %632 = vmatpush1.msra.mxu0 %v557
    %633 = vmatprep.subr.mxu0 %v556
    %634 = vmatpush1.msra.mxu0 %v555
    %635 = vmatprep.subr.mxu0 %v554
    %636 = vmatpush1.msra.mxu0 %v553
    %637 = vmatprep.subr.mxu0 %v552
    %638 = vmatpush1.msra.mxu0 %v551
    %639 = vmatprep.subr.mxu0 %v550
    %640 = vmatpush1.msra.mxu0 %v549
    %641 = vmatprep.subr.mxu0 %v548
    %642 = vmatpush1.msra.mxu0 %v547
    %643 = vmatprep.subr.mxu0 %v610
    %644 = vmatpush2.msra.mxu0 %v609
    %645 = vmatprep.subr.mxu0 %v608
    %646 = vmatpush2.msra.mxu0 %v607
    %647 = vmatprep.subr.mxu0 %v606
    %648 = vmatpush2.msra.mxu0 %v605
    %649 = vmatprep.subr.mxu0 %v604
    %650 = vmatpush2.msra.mxu0 %v603
    %651 = vmatprep.subr.mxu0 %v602
    %652 = vmatpush2.msra.mxu0 %v601
    %653 = vmatprep.subr.mxu0 %v600
    %654 = vmatpush2.msra.mxu0 %v599
    %655 = vmatprep.subr.mxu0 %v598
    %656 = vmatpush2.msra.mxu0 %v597
    %657 = vmatprep.subr.mxu0 %v596
    %658 = vmatpush2.msra.mxu0 %v595
    %659 = vmatprep.subr.mxu0 %v594
    %660 = vmatpush2.msra.mxu0 %v593
    %661 = vmatprep.subr.mxu0 %v592
    %662 = vmatpush2.msra.mxu0 %v591
    %663 = vmatprep.subr.mxu0 %v590
    %664 = vmatpush2.msra.mxu0 %v589
    %665 = vmatprep.subr.mxu0 %v588
    %666 = vmatpush2.msra.mxu0 %v587
    %667 = vmatprep.subr.mxu0 %v586
    %668 = vmatpush2.msra.mxu0 %v585
    %669 = vmatprep.subr.mxu0 %v584
    %670 = vmatpush2.msra.mxu0 %v583
    %671 = vmatprep.subr.mxu0 %v582
    %672 = vmatpush2.msra.mxu0 %v581
    %673 = vmatprep.subr.mxu0 %v580
    %674 = vmatpush2.msra.mxu0 %v579
    %675 = vmatprep.mubr.f32.mxu0 %v462
    %676 = vmatmul.mubr.f32.gmra.mxu0 %v461
    %v677 = vpop.f32.mrf.mxu0
    %v678 = vadd.f32 0.0, %v677
    %v679 = vpop.f32.mrf.mxu0
    %v680 = vadd.f32 0.0, %v679
    %681 = vdwg.mxu0
    %s682 = scalar_lea.vmem [#allocation5], 512
    %v683 = vld [vmem:[%s682] sm:$0xff]
    %v684 = vld [vmem:[%s682 + $0x8] sm:$0xff]
    %v685 = vld [vmem:[%s682 + $0x10] sm:$0xff]
    %v686 = vld [vmem:[%s682 + $0x18] sm:$0xff]
    %v687 = vld [vmem:[%s682 + $0x20] sm:$0xff]
    %v688 = vld [vmem:[%s682 + $0x28] sm:$0xff]
    %v689 = vld [vmem:[%s682 + $0x30] sm:$0xff]
    %v690 = vld [vmem:[%s682 + $0x38] sm:$0xff]
    %v691 = vld [vmem:[%s682 + $0x40] sm:$0xff]
    %v692 = vld [vmem:[%s682 + $0x48] sm:$0xff]
    %v693 = vld [vmem:[%s682 + $0x50] sm:$0xff]
    %v694 = vld [vmem:[%s682 + $0x58] sm:$0xff]
    %v695 = vld [vmem:[%s682 + $0x60] sm:$0xff]
    %v696 = vld [vmem:[%s682 + $0x68] sm:$0xff]
    %v697 = vld [vmem:[%s682 + $0x70] sm:$0xff]
    %v698 = vld [vmem:[%s682 + $0x78] sm:$0xff]
    %v699 = vld [vmem:[%s682 + $0x80] sm:$0xff]
    %v700 = vld [vmem:[%s682 + $0x88] sm:$0xff]
    %v701 = vld [vmem:[%s682 + $0x90] sm:$0xff]
    %v702 = vld [vmem:[%s682 + $0x98] sm:$0xff]
    %v703 = vld [vmem:[%s682 + $0xa0] sm:$0xff]
    %v704 = vld [vmem:[%s682 + $0xa8] sm:$0xff]
    %v705 = vld [vmem:[%s682 + $0xb0] sm:$0xff]
    %v706 = vld [vmem:[%s682 + $0xb8] sm:$0xff]
    %v707 = vld [vmem:[%s682 + $0xc0] sm:$0xff]
    %v708 = vld [vmem:[%s682 + $0xc8] sm:$0xff]
    %v709 = vld [vmem:[%s682 + $0xd0] sm:$0xff]
    %v710 = vld [vmem:[%s682 + $0xd8] sm:$0xff]
    %v711 = vld [vmem:[%s682 + $0xe0] sm:$0xff]
    %v712 = vld [vmem:[%s682 + $0xe8] sm:$0xff]
    %v713 = vld [vmem:[%s682 + $0xf0] sm:$0xff]
    %v714 = vld [vmem:[%s682 + $0xf8] sm:$0xff]
    %v715 = vld [vmem:[%s682 + $0x100] sm:$0xff]
    %v716 = vld [vmem:[%s682 + $0x108] sm:$0xff]
    %v717 = vld [vmem:[%s682 + $0x110] sm:$0xff]
    %v718 = vld [vmem:[%s682 + $0x118] sm:$0xff]
    %v719 = vld [vmem:[%s682 + $0x120] sm:$0xff]
    %v720 = vld [vmem:[%s682 + $0x128] sm:$0xff]
    %v721 = vld [vmem:[%s682 + $0x130] sm:$0xff]
    %v722 = vld [vmem:[%s682 + $0x138] sm:$0xff]
    %v723 = vld [vmem:[%s682 + $0x140] sm:$0xff]
    %v724 = vld [vmem:[%s682 + $0x148] sm:$0xff]
    %v725 = vld [vmem:[%s682 + $0x150] sm:$0xff]
    %v726 = vld [vmem:[%s682 + $0x158] sm:$0xff]
    %v727 = vld [vmem:[%s682 + $0x160] sm:$0xff]
    %v728 = vld [vmem:[%s682 + $0x168] sm:$0xff]
    %v729 = vld [vmem:[%s682 + $0x170] sm:$0xff]
    %v730 = vld [vmem:[%s682 + $0x178] sm:$0xff]
    %v731 = vld [vmem:[%s682 + $0x180] sm:$0xff]
    %v732 = vld [vmem:[%s682 + $0x188] sm:$0xff]
    %v733 = vld [vmem:[%s682 + $0x190] sm:$0xff]
    %v734 = vld [vmem:[%s682 + $0x198] sm:$0xff]
    %v735 = vld [vmem:[%s682 + $0x1a0] sm:$0xff]
    %v736 = vld [vmem:[%s682 + $0x1a8] sm:$0xff]
    %v737 = vld [vmem:[%s682 + $0x1b0] sm:$0xff]
    %v738 = vld [vmem:[%s682 + $0x1b8] sm:$0xff]
    %v739 = vld [vmem:[%s682 + $0x1c0] sm:$0xff]
    %v740 = vld [vmem:[%s682 + $0x1c8] sm:$0xff]
    %v741 = vld [vmem:[%s682 + $0x1d0] sm:$0xff]
    %v742 = vld [vmem:[%s682 + $0x1d8] sm:$0xff]
    %v743 = vld [vmem:[%s682 + $0x1e0] sm:$0xff]
    %v744 = vld [vmem:[%s682 + $0x1e8] sm:$0xff]
    %v745 = vld [vmem:[%s682 + $0x1f0] sm:$0xff]
    %v746 = vld [vmem:[%s682 + $0x1f8] sm:$0xff]
    %747 = vmatprep.subr.mxu0 %v714
    %748 = vmatpush1.msra.mxu0 %v713
    %749 = vmatprep.subr.mxu0 %v712
    %750 = vmatpush1.msra.mxu0 %v711
    %751 = vmatprep.subr.mxu0 %v710
    %752 = vmatpush1.msra.mxu0 %v709
    %753 = vmatprep.subr.mxu0 %v708
    %754 = vmatpush1.msra.mxu0 %v707
    %755 = vmatprep.subr.mxu0 %v706
    %756 = vmatpush1.msra.mxu0 %v705
    %757 = vmatprep.subr.mxu0 %v704
    %758 = vmatpush1.msra.mxu0 %v703
    %759 = vmatprep.subr.mxu0 %v702
    %760 = vmatpush1.msra.mxu0 %v701
    %761 = vmatprep.subr.mxu0 %v700
    %762 = vmatpush1.msra.mxu0 %v699
    %763 = vmatprep.subr.mxu0 %v698
    %764 = vmatpush1.msra.mxu0 %v697
    %765 = vmatprep.subr.mxu0 %v696
    %766 = vmatpush1.msra.mxu0 %v695
    %767 = vmatprep.subr.mxu0 %v694
    %768 = vmatpush1.msra.mxu0 %v693
    %769 = vmatprep.subr.mxu0 %v692
    %770 = vmatpush1.msra.mxu0 %v691
    %771 = vmatprep.subr.mxu0 %v690
    %772 = vmatpush1.msra.mxu0 %v689
    %773 = vmatprep.subr.mxu0 %v688
    %774 = vmatpush1.msra.mxu0 %v687
    %775 = vmatprep.subr.mxu0 %v686
    %776 = vmatpush1.msra.mxu0 %v685
    %777 = vmatprep.subr.mxu0 %v684
    %778 = vmatpush1.msra.mxu0 %v683
    %779 = vmatprep.subr.mxu0 %v746
    %780 = vmatpush2.msra.mxu0 %v745
    %781 = vmatprep.subr.mxu0 %v744
    %782 = vmatpush2.msra.mxu0 %v743
    %783 = vmatprep.subr.mxu0 %v742
    %784 = vmatpush2.msra.mxu0 %v741
    %785 = vmatprep.subr.mxu0 %v740
    %786 = vmatpush2.msra.mxu0 %v739
    %787 = vmatprep.subr.mxu0 %v738
    %788 = vmatpush2.msra.mxu0 %v737
    %789 = vmatprep.subr.mxu0 %v736
    %790 = vmatpush2.msra.mxu0 %v735
    %791 = vmatprep.subr.mxu0 %v734
    %792 = vmatpush2.msra.mxu0 %v733
    %793 = vmatprep.subr.mxu0 %v732
    %794 = vmatpush2.msra.mxu0 %v731
    %795 = vmatprep.subr.mxu0 %v730
    %796 = vmatpush2.msra.mxu0 %v729
    %797 = vmatprep.subr.mxu0 %v728
    %798 = vmatpush2.msra.mxu0 %v727
    %799 = vmatprep.subr.mxu0 %v726
    %800 = vmatpush2.msra.mxu0 %v725
    %801 = vmatprep.subr.mxu0 %v724
    %802 = vmatpush2.msra.mxu0 %v723
    %803 = vmatprep.subr.mxu0 %v722
    %804 = vmatpush2.msra.mxu0 %v721
    %805 = vmatprep.subr.mxu0 %v720
    %806 = vmatpush2.msra.mxu0 %v719
    %807 = vmatprep.subr.mxu0 %v718
    %808 = vmatpush2.msra.mxu0 %v717
    %809 = vmatprep.subr.mxu0 %v716
    %810 = vmatpush2.msra.mxu0 %v715
    %811 = vmatprep.mubr.f32.mxu0 %v462
    %812 = vmatmul.mubr.f32.gmra.mxu0 %v461
    %v813 = vpop.f32.mrf.mxu0
    %v814 = vadd.f32 0.0, %v813
    %v815 = vpop.f32.mrf.mxu0
    %v816 = vadd.f32 0.0, %v815
    %817 = vdwg.mxu0
    %819 = vset.pattern.permute.xlu0 0
    %820 = vperm.xlu0 %819, %v546
    %v821 = vpop.permute.xlu0 %820
    %v823 = vmul.f32 %v821, %v678
    %v824 = vmul.f32 %v821, %v680
    %v825 = vmul.f32 %v821, %v814
    %v826 = vmul.f32 %v821, %v816
    %827 = vmatprep.subr.mxu0 %v578
    %828 = vmatpush1.msra.mxu0 %v577
    %829 = vmatprep.subr.mxu0 %v576
    %830 = vmatpush1.msra.mxu0 %v575
    %831 = vmatprep.subr.mxu0 %v574
    %832 = vmatpush1.msra.mxu0 %v573
    %833 = vmatprep.subr.mxu0 %v572
    %834 = vmatpush1.msra.mxu0 %v571
    %835 = vmatprep.subr.mxu0 %v570
    %836 = vmatpush1.msra.mxu0 %v569
    %837 = vmatprep.subr.mxu0 %v568
    %838 = vmatpush1.msra.mxu0 %v567
    %839 = vmatprep.subr.mxu0 %v566
    %840 = vmatpush1.msra.mxu0 %v565
    %841 = vmatprep.subr.mxu0 %v564
    %842 = vmatpush1.msra.mxu0 %v563
    %843 = vmatprep.subr.mxu0 %v562
    %844 = vmatpush1.msra.mxu0 %v561
    %845 = vmatprep.subr.mxu0 %v560
    %846 = vmatpush1.msra.mxu0 %v559
    %847 = vmatprep.subr.mxu0 %v558
    %848 = vmatpush1.msra.mxu0 %v557
    %849 = vmatprep.subr.mxu0 %v556
    %850 = vmatpush1.msra.mxu0 %v555
    %851 = vmatprep.subr.mxu0 %v554
    %852 = vmatpush1.msra.mxu0 %v553
    %853 = vmatprep.subr.mxu0 %v552
    %854 = vmatpush1.msra.mxu0 %v551
    %855 = vmatprep.subr.mxu0 %v550
    %856 = vmatpush1.msra.mxu0 %v549
    %857 = vmatprep.subr.mxu0 %v548
    %858 = vmatpush1.msra.mxu0 %v547
    %859 = vmatprep.subr.mxu0 %v610
    %860 = vmatpush2.msra.mxu0 %v609
    %861 = vmatprep.subr.mxu0 %v608
    %862 = vmatpush2.msra.mxu0 %v607
    %863 = vmatprep.subr.mxu0 %v606
    %864 = vmatpush2.msra.mxu0 %v605
    %865 = vmatprep.subr.mxu0 %v604
    %866 = vmatpush2.msra.mxu0 %v603
    %867 = vmatprep.subr.mxu0 %v602
    %868 = vmatpush2.msra.mxu0 %v601
    %869 = vmatprep.subr.mxu0 %v600
    %870 = vmatpush2.msra.mxu0 %v599
    %871 = vmatprep.subr.mxu0 %v598
    %872 = vmatpush2.msra.mxu0 %v597
    %873 = vmatprep.subr.mxu0 %v596
    %874 = vmatpush2.msra.mxu0 %v595
    %875 = vmatprep.subr.mxu0 %v594
    %876 = vmatpush2.msra.mxu0 %v593
    %877 = vmatprep.subr.mxu0 %v592
    %878 = vmatpush2.msra.mxu0 %v591
    %879 = vmatprep.subr.mxu0 %v590
    %880 = vmatpush2.msra.mxu0 %v589
    %881 = vmatprep.subr.mxu0 %v588
    %882 = vmatpush2.msra.mxu0 %v587
    %883 = vmatprep.subr.mxu0 %v586
    %884 = vmatpush2.msra.mxu0 %v585
    %885 = vmatprep.subr.mxu0 %v584
    %886 = vmatpush2.msra.mxu0 %v583
    %887 = vmatprep.subr.mxu0 %v582
    %888 = vmatpush2.msra.mxu0 %v581
    %889 = vmatprep.subr.mxu0 %v580
    %890 = vmatpush2.msra.mxu0 %v579
    %891 = vmatprep.mubr.f32.mxu0 %v824
    %892 = vmatmul.mubr.f32.gmra.mxu0 %v823
    %v893 = vpop.f32.mrf.mxu0
    %v894 = vadd.f32 0.0, %v893
    %v895 = vpop.f32.mrf.mxu0
    %v896 = vadd.f32 0.0, %v895
    %897 = vmatprep.mubr.f32.mxu0 %v826
    %898 = vmatmul.mubr.f32.gmra.mxu0 %v825
    %v899 = vpop.f32.mrf.mxu0
    %v900 = vadd.f32 0.0, %v899
    %v901 = vpop.f32.mrf.mxu0
    %v902 = vadd.f32 0.0, %v901
    %903 = vdwg.mxu0
    %904 = vmatprep.subr.mxu0 %v714
    %905 = vmatpush1.msra.mxu0 %v713
    %906 = vmatprep.subr.mxu0 %v712
    %907 = vmatpush1.msra.mxu0 %v711
    %908 = vmatprep.subr.mxu0 %v710
    %909 = vmatpush1.msra.mxu0 %v709
    %910 = vmatprep.subr.mxu0 %v708
    %911 = vmatpush1.msra.mxu0 %v707
    %912 = vmatprep.subr.mxu0 %v706
    %913 = vmatpush1.msra.mxu0 %v705
    %914 = vmatprep.subr.mxu0 %v704
    %915 = vmatpush1.msra.mxu0 %v703
    %916 = vmatprep.subr.mxu0 %v702
    %917 = vmatpush1.msra.mxu0 %v701
    %918 = vmatprep.subr.mxu0 %v700
    %919 = vmatpush1.msra.mxu0 %v699
    %920 = vmatprep.subr.mxu0 %v698
    %921 = vmatpush1.msra.mxu0 %v697
    %922 = vmatprep.subr.mxu0 %v696
    %923 = vmatpush1.msra.mxu0 %v695
    %924 = vmatprep.subr.mxu0 %v694
    %925 = vmatpush1.msra.mxu0 %v693
    %926 = vmatprep.subr.mxu0 %v692
    %927 = vmatpush1.msra.mxu0 %v691
    %928 = vmatprep.subr.mxu0 %v690
    %929 = vmatpush1.msra.mxu0 %v689
    %930 = vmatprep.subr.mxu0 %v688
    %931 = vmatpush1.msra.mxu0 %v687
    %932 = vmatprep.subr.mxu0 %v686
    %933 = vmatpush1.msra.mxu0 %v685
    %934 = vmatprep.subr.mxu0 %v684
    %935 = vmatpush1.msra.mxu0 %v683
    %936 = vmatprep.subr.mxu0 %v746
    %937 = vmatpush2.msra.mxu0 %v745
    %938 = vmatprep.subr.mxu0 %v744
    %939 = vmatpush2.msra.mxu0 %v743
    %940 = vmatprep.subr.mxu0 %v742
    %941 = vmatpush2.msra.mxu0 %v741
    %942 = vmatprep.subr.mxu0 %v740
    %943 = vmatpush2.msra.mxu0 %v739
    %944 = vmatprep.subr.mxu0 %v738
    %945 = vmatpush2.msra.mxu0 %v737
    %946 = vmatprep.subr.mxu0 %v736
    %947 = vmatpush2.msra.mxu0 %v735
    %948 = vmatprep.subr.mxu0 %v734
    %949 = vmatpush2.msra.mxu0 %v733
    %950 = vmatprep.subr.mxu0 %v732
    %951 = vmatpush2.msra.mxu0 %v731
    %952 = vmatprep.subr.mxu0 %v730
    %953 = vmatpush2.msra.mxu0 %v729
    %954 = vmatprep.subr.mxu0 %v728
    %955 = vmatpush2.msra.mxu0 %v727
    %956 = vmatprep.subr.mxu0 %v726
    %957 = vmatpush2.msra.mxu0 %v725
    %958 = vmatprep.subr.mxu0 %v724
    %959 = vmatpush2.msra.mxu0 %v723
    %960 = vmatprep.subr.mxu0 %v722
    %961 = vmatpush2.msra.mxu0 %v721
    %962 = vmatprep.subr.mxu0 %v720
    %963 = vmatpush2.msra.mxu0 %v719
    %964 = vmatprep.subr.mxu0 %v718
    %965 = vmatpush2.msra.mxu0 %v717
    %966 = vmatprep.subr.mxu0 %v716
    %967 = vmatpush2.msra.mxu0 %v715
    %968 = vmatprep.mubr.f32.mxu0 %v824
    %969 = vmatmul.mubr.f32.gmra.mxu0 %v823
    %v970 = vpop.f32.mrf.mxu0
    %v971 = vadd.f32 0.0, %v970
    %v972 = vpop.f32.mrf.mxu0
    %v973 = vadd.f32 0.0, %v972
    %974 = vmatprep.mubr.f32.mxu0 %v826
    %975 = vmatmul.mubr.f32.gmra.mxu0 %v825
    %v976 = vpop.f32.mrf.mxu0
    %v977 = vadd.f32 0.0, %v976
    %v978 = vpop.f32.mrf.mxu0
    %v979 = vadd.f32 0.0, %v978
    %980 = vdwg.mxu0
    %v981 = vadd.f32 %v894, %v977
    %v982 = vadd.f32 %v896, %v979
    %v983 = vmul.f32 %v981, 0.00390625
    %v984 = vmul.f32 %v982, 0.00390625
    %v985 = vsub.f32 %v900, %v971
    %v986 = vsub.f32 %v902, %v973
    %v987 = vmul.f32 %v985, 0.00390625
    %v988 = vmul.f32 %v986, 0.00390625
    %v989 = vmul.f32 %v983, %v983
    %v990 = vmul.f32 %v984, %v984
    %v991 = vmul.f32 %v987, %v987
    %v992 = vmul.f32 %v988, %v988
    %v993 = vadd.f32 %v989, %v991
    %v994 = vadd.f32 %v990, %v992
    %v995 = vrsqrt.pop %v993
    %v996 = vmul.f32 %v993, %v995
    %vm997 = vcmp.eq.f32.partialorder %v993, inf
    %v998 = vsel %vm997, %v993, %v996
    %vm999 = vcmp.eq.f32.partialorder %v993, 0.0
    %v1000 = vand.u32 %v993, 2147483648
    %v1001 = vsel %vm999, %v1000, %v998
    %v1002 = vrsqrt.pop %v994
    %v1003 = vmul.f32 %v994, %v1002
    %vm1004 = vcmp.eq.f32.partialorder %v994, inf
    %v1005 = vsel %vm1004, %v994, %v1003
    %vm1006 = vcmp.eq.f32.partialorder %v994, 0.0
    %v1007 = vand.u32 %v994, 2147483648
    %v1008 = vsel %vm1006, %v1007, %v1005
    %v1009 = vld [vmem:[%s5] sm:$0xff]
    %s1010 = scalar_lea.vmem %s13, 16
    %v1011 = vld [vmem:[%s1010] sm:$0xff]
    %1013 = vset.pattern.permute.xlu0 0
    %1014 = vperm.xlu0 %1013, %v1011
    %v1015 = vpop.permute.xlu0 %1014
    %v1018 = vsel %vm334, %v1009, 0
    %1020 = vmatprep.subr.mxu0 0.0
    %1021 = vmatpush1.msra.mxu0 0.0
    %1022 = vmatprep.subr.mxu0 0.0
    %1023 = vmatpush1.msra.mxu0 0.0
    %1024 = vmatprep.subr.mxu0 0.0
    %1025 = vmatpush1.msra.mxu0 0.0
    %1026 = vmatprep.subr.mxu0 0.0
    %1027 = vmatpush1.msra.mxu0 0.0
    %1028 = vmatprep.subr.mxu0 0.0
    %1029 = vmatpush1.msra.mxu0 0.0
    %1030 = vmatprep.subr.mxu0 0.0
    %1031 = vmatpush1.msra.mxu0 0.0
    %1032 = vmatprep.subr.mxu0 0.0
    %1033 = vmatpush1.msra.mxu0 0.0
    %1034 = vmatprep.subr.mxu0 0.0
    %1035 = vmatpush1.msra.mxu0 0.0
    %1036 = vmatprep.subr.mxu0 0.0
    %1037 = vmatpush1.msra.mxu0 0.0
    %1038 = vmatprep.subr.mxu0 0.0
    %1039 = vmatpush1.msra.mxu0 0.0
    %1040 = vmatprep.subr.mxu0 0.0
    %1041 = vmatpush1.msra.mxu0 0.0
    %1042 = vmatprep.subr.mxu0 0.0
    %1043 = vmatpush1.msra.mxu0 0.0
    %1044 = vmatprep.subr.mxu0 0.0
    %1045 = vmatpush1.msra.mxu0 0.0
    %1046 = vmatprep.subr.mxu0 0.0
    %1047 = vmatpush1.msra.mxu0 0.0
    %1048 = vmatprep.subr.mxu0 0.0
    %1049 = vmatpush1.msra.mxu0 0.0
    %1050 = vmatprep.subr.mxu0 %v1008
    %1051 = vmatpush1.msra.mxu0 %v1001
    %1052 = vmatprep.subr.mxu0 0.0
    %1053 = vmatpush2.msra.mxu0 0.0
    %1054 = vmatprep.subr.mxu0 0.0
    %1055 = vmatpush2.msra.mxu0 0.0
    %1056 = vmatprep.subr.mxu0 0.0
    %1057 = vmatpush2.msra.mxu0 0.0
    %1058 = vmatprep.subr.mxu0 0.0
    %1059 = vmatpush2.msra.mxu0 0.0
    %1060 = vmatprep.subr.mxu0 0.0
    %1061 = vmatpush2.msra.mxu0 0.0
    %1062 = vmatprep.subr.mxu0 0.0
    %1063 = vmatpush2.msra.mxu0 0.0
    %1064 = vmatprep.subr.mxu0 0.0
    %1065 = vmatpush2.msra.mxu0 0.0
    %1066 = vmatprep.subr.mxu0 0.0
    %1067 = vmatpush2.msra.mxu0 0.0
    %1068 = vmatprep.subr.mxu0 0.0
    %1069 = vmatpush2.msra.mxu0 0.0
    %1070 = vmatprep.subr.mxu0 0.0
    %1071 = vmatpush2.msra.mxu0 0.0
    %1072 = vmatprep.subr.mxu0 0.0
    %1073 = vmatpush2.msra.mxu0 0.0
    %1074 = vmatprep.subr.mxu0 0.0
    %1075 = vmatpush2.msra.mxu0 0.0
    %1076 = vmatprep.subr.mxu0 0.0
    %1077 = vmatpush2.msra.mxu0 0.0
    %1078 = vmatprep.subr.mxu0 0.0
    %1079 = vmatpush2.msra.mxu0 0.0
    %1080 = vmatprep.subr.mxu0 0.0
    %1081 = vmatpush2.msra.mxu0 0.0
    %1082 = vmatprep.subr.mxu0 0.0
    %1083 = vmatpush2.msra.mxu0 0.0
    %1084 = vmatprep.mubr.f32.mxu0 0.0
    %1085 = vmatmul.mubr.f32.gmra.mxu0 %v1018
    %v1086 = vpop.f32.mrf.mxu0
    %v1087 = vadd.f32 %v1015, %v1086
    %v1088 = vpop.f32.mrf.mxu0
    %v1089 = vadd.f32 %v1015, %v1088
    %1090 = vdwg.mxu0
    %s1091 = smul.u32 4, 4
    %s1092 = smul.u32 %s1091, 32
    %s1093 = smul.u32 %s1092, 2
    %s1094 = sshll.u32 %s1093, 4
    %1095 = dma.done [#allocation4], %s1094
    %s1096 = scalar_lea.vmem %s13, 24
    %v1097 = vld [vmem:[%s1096] sm:$0xff]
    %v1098 = vpack.c.bf16 %v1001, %v1001
    %v1099 = vpack.c.bf16 %v1008, %v1008
    %v1100 = vld [vmem:[#allocation2] sm:$0xff]
    %v1101 = vld [vmem:[#allocation2 + $0x8] sm:$0xff]
    %v1102 = vld [vmem:[#allocation2 + $0x10] sm:$0xff]
    %v1103 = vld [vmem:[#allocation2 + $0x18] sm:$0xff]
    %v1104 = vld [vmem:[#allocation2 + $0x20] sm:$0xff]
    %v1105 = vld [vmem:[#allocation2 + $0x28] sm:$0xff]
    %v1106 = vld [vmem:[#allocation2 + $0x30] sm:$0xff]
    %v1107 = vld [vmem:[#allocation2 + $0x38] sm:$0xff]
    %v1108 = vld [vmem:[#allocation2 + $0x40] sm:$0xff]
    %v1109 = vld [vmem:[#allocation2 + $0x48] sm:$0xff]
    %v1110 = vld [vmem:[#allocation2 + $0x50] sm:$0xff]
    %v1111 = vld [vmem:[#allocation2 + $0x58] sm:$0xff]
    %v1112 = vld [vmem:[#allocation2 + $0x60] sm:$0xff]
    %v1113 = vld [vmem:[#allocation2 + $0x68] sm:$0xff]
    %v1114 = vld [vmem:[#allocation2 + $0x70] sm:$0xff]
    %v1115 = vld [vmem:[#allocation2 + $0x78] sm:$0xff]
    %v1116 = vld [vmem:[#allocation2 + $0x80] sm:$0xff]
    %v1117 = vld [vmem:[#allocation2 + $0x88] sm:$0xff]
    %v1118 = vld [vmem:[#allocation2 + $0x90] sm:$0xff]
    %v1119 = vld [vmem:[#allocation2 + $0x98] sm:$0xff]
    %v1120 = vld [vmem:[#allocation2 + $0xa0] sm:$0xff]
    %v1121 = vld [vmem:[#allocation2 + $0xa8] sm:$0xff]
    %v1122 = vld [vmem:[#allocation2 + $0xb0] sm:$0xff]
    %v1123 = vld [vmem:[#allocation2 + $0xb8] sm:$0xff]
    %v1124 = vld [vmem:[#allocation2 + $0xc0] sm:$0xff]
    %v1125 = vld [vmem:[#allocation2 + $0xc8] sm:$0xff]
    %v1126 = vld [vmem:[#allocation2 + $0xd0] sm:$0xff]
    %v1127 = vld [vmem:[#allocation2 + $0xd8] sm:$0xff]
    %v1128 = vld [vmem:[#allocation2 + $0xe0] sm:$0xff]
    %v1129 = vld [vmem:[#allocation2 + $0xe8] sm:$0xff]
    %v1130 = vld [vmem:[#allocation2 + $0xf0] sm:$0xff]
    %v1131 = vld [vmem:[#allocation2 + $0xf8] sm:$0xff]
    %v1164 = vunpack.c.l.b16 %v1100
    %v1165 = vunpack.c.h.b16 %v1100
    %v1166 = vunpack.c.l.b16 %v1101
    %v1167 = vunpack.c.h.b16 %v1101
    %v1168 = vunpack.c.l.b16 %v1102
    %v1169 = vunpack.c.h.b16 %v1102
    %v1170 = vunpack.c.l.b16 %v1103
    %v1171 = vunpack.c.h.b16 %v1103
    %v1172 = vunpack.c.l.b16 %v1104
    %v1173 = vunpack.c.h.b16 %v1104
    %v1174 = vunpack.c.l.b16 %v1105
    %v1175 = vunpack.c.h.b16 %v1105
    %v1176 = vunpack.c.l.b16 %v1106
    %v1177 = vunpack.c.h.b16 %v1106
    %v1178 = vunpack.c.l.b16 %v1107
    %v1179 = vunpack.c.h.b16 %v1107
    %v1180 = vunpack.c.l.b16 %v1108
    %v1181 = vunpack.c.h.b16 %v1108
    %v1182 = vunpack.c.l.b16 %v1109
    %v1183 = vunpack.c.h.b16 %v1109
    %v1184 = vunpack.c.l.b16 %v1110
    %v1185 = vunpack.c.h.b16 %v1110
    %v1186 = vunpack.c.l.b16 %v1111
    %v1187 = vunpack.c.h.b16 %v1111
    %v1188 = vunpack.c.l.b16 %v1112
    %v1189 = vunpack.c.h.b16 %v1112
    %v1190 = vunpack.c.l.b16 %v1113
    %v1191 = vunpack.c.h.b16 %v1113
    %v1192 = vunpack.c.l.b16 %v1114
    %v1193 = vunpack.c.h.b16 %v1114
    %v1194 = vunpack.c.l.b16 %v1115
    %v1195 = vunpack.c.h.b16 %v1115
    %v1196 = vunpack.c.l.b16 %v1116
    %v1197 = vunpack.c.h.b16 %v1116
    %v1198 = vunpack.c.l.b16 %v1117
    %v1199 = vunpack.c.h.b16 %v1117
    %v1200 = vunpack.c.l.b16 %v1118
    %v1201 = vunpack.c.h.b16 %v1118
    %v1202 = vunpack.c.l.b16 %v1119
    %v1203 = vunpack.c.h.b16 %v1119
    %v1204 = vunpack.c.l.b16 %v1120
    %v1205 = vunpack.c.h.b16 %v1120
    %v1206 = vunpack.c.l.b16 %v1121
    %v1207 = vunpack.c.h.b16 %v1121
    %v1208 = vunpack.c.l.b16 %v1122
    %v1209 = vunpack.c.h.b16 %v1122
    %v1210 = vunpack.c.l.b16 %v1123
    %v1211 = vunpack.c.h.b16 %v1123
    %v1212 = vunpack.c.l.b16 %v1124
    %v1213 = vunpack.c.h.b16 %v1124
    %v1214 = vunpack.c.l.b16 %v1125
    %v1215 = vunpack.c.h.b16 %v1125
    %v1216 = vunpack.c.l.b16 %v1126
    %v1217 = vunpack.c.h.b16 %v1126
    %v1218 = vunpack.c.l.b16 %v1127
    %v1219 = vunpack.c.h.b16 %v1127
    %v1220 = vunpack.c.l.b16 %v1128
    %v1221 = vunpack.c.h.b16 %v1128
    %v1222 = vunpack.c.l.b16 %v1129
    %v1223 = vunpack.c.h.b16 %v1129
    %v1224 = vunpack.c.l.b16 %v1130
    %v1225 = vunpack.c.h.b16 %v1130
    %v1226 = vunpack.c.l.b16 %v1131
    %v1227 = vunpack.c.h.b16 %v1131
    %v1228 = vpack.c.b16 %v1166, %v1164
    %v1229 = vpack.c.b16 %v1167, %v1165
    %v1230 = vpack.c.b16 %v1170, %v1168
    %v1231 = vpack.c.b16 %v1171, %v1169
    %v1232 = vpack.c.b16 %v1174, %v1172
    %v1233 = vpack.c.b16 %v1175, %v1173
    %v1234 = vpack.c.b16 %v1178, %v1176
    %v1235 = vpack.c.b16 %v1179, %v1177
    %v1236 = vpack.c.b16 %v1182, %v1180
    %v1237 = vpack.c.b16 %v1183, %v1181
    %v1238 = vpack.c.b16 %v1186, %v1184
    %v1239 = vpack.c.b16 %v1187, %v1185
    %v1240 = vpack.c.b16 %v1190, %v1188
    %v1241 = vpack.c.b16 %v1191, %v1189
    %v1242 = vpack.c.b16 %v1194, %v1192
    %v1243 = vpack.c.b16 %v1195, %v1193
    %v1244 = vpack.c.b16 %v1198, %v1196
    %v1245 = vpack.c.b16 %v1199, %v1197
    %v1246 = vpack.c.b16 %v1202, %v1200
    %v1247 = vpack.c.b16 %v1203, %v1201
    %v1248 = vpack.c.b16 %v1206, %v1204
    %v1249 = vpack.c.b16 %v1207, %v1205
    %v1250 = vpack.c.b16 %v1210, %v1208
    %v1251 = vpack.c.b16 %v1211, %v1209
    %v1252 = vpack.c.b16 %v1214, %v1212
    %v1253 = vpack.c.b16 %v1215, %v1213
    %v1254 = vpack.c.b16 %v1218, %v1216
    %v1255 = vpack.c.b16 %v1219, %v1217
    %v1256 = vpack.c.b16 %v1222, %v1220
    %v1257 = vpack.c.b16 %v1223, %v1221
    %v1258 = vpack.c.b16 %v1226, %v1224
    %v1259 = vpack.c.b16 %v1227, %v1225
    %1292 = vmatprep.subr.bf16.mxu0 %v1243
    %1293 = vmatpush1.bf16.msra.mxu0 %v1242
    %1294 = vmatprep.subr.bf16.mxu0 %v1241
    %1295 = vmatpush1.bf16.msra.mxu0 %v1240
    %1296 = vmatprep.subr.bf16.mxu0 %v1239
    %1297 = vmatpush1.bf16.msra.mxu0 %v1238
    %1298 = vmatprep.subr.bf16.mxu0 %v1237
    %1299 = vmatpush1.bf16.msra.mxu0 %v1236
    %1300 = vmatprep.subr.bf16.mxu0 %v1235
    %1301 = vmatpush1.bf16.msra.mxu0 %v1234
    %1302 = vmatprep.subr.bf16.mxu0 %v1233
    %1303 = vmatpush1.bf16.msra.mxu0 %v1232
    %1304 = vmatprep.subr.bf16.mxu0 %v1231
    %1305 = vmatpush1.bf16.msra.mxu0 %v1230
    %1306 = vmatprep.subr.bf16.mxu0 %v1229
    %1307 = vmatpush1.bf16.msra.mxu0 %v1228
    %1308 = vmatprep.subr.bf16.mxu0 %v1259
    %1309 = vmatpush2.bf16.msra.mxu0 %v1258
    %1310 = vmatprep.subr.bf16.mxu0 %v1257
    %1311 = vmatpush2.bf16.msra.mxu0 %v1256
    %1312 = vmatprep.subr.bf16.mxu0 %v1255
    %1313 = vmatpush2.bf16.msra.mxu0 %v1254
    %1314 = vmatprep.subr.bf16.mxu0 %v1253
    %1315 = vmatpush2.bf16.msra.mxu0 %v1252
    %1316 = vmatprep.subr.bf16.mxu0 %v1251
    %1317 = vmatpush2.bf16.msra.mxu0 %v1250
    %1318 = vmatprep.subr.bf16.mxu0 %v1249
    %1319 = vmatpush2.bf16.msra.mxu0 %v1248
    %1320 = vmatprep.subr.bf16.mxu0 %v1247
    %1321 = vmatpush2.bf16.msra.mxu0 %v1246
    %1322 = vmatprep.subr.bf16.mxu0 %v1245
    %1323 = vmatpush2.bf16.msra.mxu0 %v1244
    %1324 = vmatprep.mubr.bf16.mxu0 %v1099
    %1325 = vmatmul.mubr.bf16.gmra.mxu0 %v1098
    %v1326 = vpop.f32.mrf.mxu0
    %v1327 = vadd.f32 0.0, %v1326
    %v1328 = vpop.f32.mrf.mxu0
    %v1329 = vadd.f32 0.0, %v1328
    %v1330 = vpop.f32.mrf.mxu0
    %v1331 = vpop.f32.mrf.mxu0
    %1332 = vdwg.mxu0
    %1334 = vset.pattern.permute.xlu0 0
    %1335 = vperm.xlu0 %1334, %v1097
    %v1336 = vpop.permute.xlu0 %1335
    %v1338 = vadd.f32 %v1336, %v1327
    %v1339 = vadd.f32 %v1336, %v1329
    %s1340 = scalar_lea.vmem [#allocation2], 256
    %v1341 = vld [vmem:[%s1340] sm:$0xff]
    %v1342 = vld [vmem:[%s1340 + $0x8] sm:$0xff]
    %v1343 = vld [vmem:[%s1340 + $0x10] sm:$0xff]
    %v1344 = vld [vmem:[%s1340 + $0x18] sm:$0xff]
    %v1345 = vld [vmem:[%s1340 + $0x20] sm:$0xff]
    %v1346 = vld [vmem:[%s1340 + $0x28] sm:$0xff]
    %v1347 = vld [vmem:[%s1340 + $0x30] sm:$0xff]
    %v1348 = vld [vmem:[%s1340 + $0x38] sm:$0xff]
    %v1349 = vld [vmem:[%s1340 + $0x40] sm:$0xff]
    %v1350 = vld [vmem:[%s1340 + $0x48] sm:$0xff]
    %v1351 = vld [vmem:[%s1340 + $0x50] sm:$0xff]
    %v1352 = vld [vmem:[%s1340 + $0x58] sm:$0xff]
    %v1353 = vld [vmem:[%s1340 + $0x60] sm:$0xff]
    %v1354 = vld [vmem:[%s1340 + $0x68] sm:$0xff]
    %v1355 = vld [vmem:[%s1340 + $0x70] sm:$0xff]
    %v1356 = vld [vmem:[%s1340 + $0x78] sm:$0xff]
    %v1357 = vld [vmem:[%s1340 + $0x80] sm:$0xff]
    %v1358 = vld [vmem:[%s1340 + $0x88] sm:$0xff]
    %v1359 = vld [vmem:[%s1340 + $0x90] sm:$0xff]
    %v1360 = vld [vmem:[%s1340 + $0x98] sm:$0xff]
    %v1361 = vld [vmem:[%s1340 + $0xa0] sm:$0xff]
    %v1362 = vld [vmem:[%s1340 + $0xa8] sm:$0xff]
    %v1363 = vld [vmem:[%s1340 + $0xb0] sm:$0xff]
    %v1364 = vld [vmem:[%s1340 + $0xb8] sm:$0xff]
    %v1365 = vld [vmem:[%s1340 + $0xc0] sm:$0xff]
    %v1366 = vld [vmem:[%s1340 + $0xc8] sm:$0xff]
    %v1367 = vld [vmem:[%s1340 + $0xd0] sm:$0xff]
    %v1368 = vld [vmem:[%s1340 + $0xd8] sm:$0xff]
    %v1369 = vld [vmem:[%s1340 + $0xe0] sm:$0xff]
    %v1370 = vld [vmem:[%s1340 + $0xe8] sm:$0xff]
    %v1371 = vld [vmem:[%s1340 + $0xf0] sm:$0xff]
    %v1372 = vld [vmem:[%s1340 + $0xf8] sm:$0xff]
    %v1375 = vrot.slane %v1098, 1
    %v1376 = vrot.slane %v1099, 1
    %v1411 = vunpack.c.l.b16 %v1341
    %v1412 = vunpack.c.h.b16 %v1341
    %v1413 = vunpack.c.l.b16 %v1342
    %v1414 = vunpack.c.h.b16 %v1342
    %v1415 = vunpack.c.l.b16 %v1343
    %v1416 = vunpack.c.h.b16 %v1343
    %v1417 = vunpack.c.l.b16 %v1344
    %v1418 = vunpack.c.h.b16 %v1344
    %v1419 = vunpack.c.l.b16 %v1345
    %v1420 = vunpack.c.h.b16 %v1345
    %v1421 = vunpack.c.l.b16 %v1346
    %v1422 = vunpack.c.h.b16 %v1346
    %v1423 = vunpack.c.l.b16 %v1347
    %v1424 = vunpack.c.h.b16 %v1347
    %v1425 = vunpack.c.l.b16 %v1348
    %v1426 = vunpack.c.h.b16 %v1348
    %v1427 = vunpack.c.l.b16 %v1349
    %v1428 = vunpack.c.h.b16 %v1349
    %v1429 = vunpack.c.l.b16 %v1350
    %v1430 = vunpack.c.h.b16 %v1350
    %v1431 = vunpack.c.l.b16 %v1351
    %v1432 = vunpack.c.h.b16 %v1351
    %v1433 = vunpack.c.l.b16 %v1352
    %v1434 = vunpack.c.h.b16 %v1352
    %v1435 = vunpack.c.l.b16 %v1353
    %v1436 = vunpack.c.h.b16 %v1353
    %v1437 = vunpack.c.l.b16 %v1354
    %v1438 = vunpack.c.h.b16 %v1354
    %v1439 = vunpack.c.l.b16 %v1355
    %v1440 = vunpack.c.h.b16 %v1355
    %v1441 = vunpack.c.l.b16 %v1356
    %v1442 = vunpack.c.h.b16 %v1356
    %v1443 = vunpack.c.l.b16 %v1357
    %v1444 = vunpack.c.h.b16 %v1357
    %v1445 = vunpack.c.l.b16 %v1358
    %v1446 = vunpack.c.h.b16 %v1358
    %v1447 = vunpack.c.l.b16 %v1359
    %v1448 = vunpack.c.h.b16 %v1359
    %v1449 = vunpack.c.l.b16 %v1360
    %v1450 = vunpack.c.h.b16 %v1360
    %v1451 = vunpack.c.l.b16 %v1361
    %v1452 = vunpack.c.h.b16 %v1361
    %v1453 = vunpack.c.l.b16 %v1362
    %v1454 = vunpack.c.h.b16 %v1362
    %v1455 = vunpack.c.l.b16 %v1363
    %v1456 = vunpack.c.h.b16 %v1363
    %v1457 = vunpack.c.l.b16 %v1364
    %v1458 = vunpack.c.h.b16 %v1364
    %v1459 = vunpack.c.l.b16 %v1365
    %v1460 = vunpack.c.h.b16 %v1365
    %v1461 = vunpack.c.l.b16 %v1366
    %v1462 = vunpack.c.h.b16 %v1366
    %v1463 = vunpack.c.l.b16 %v1367
    %v1464 = vunpack.c.h.b16 %v1367
    %v1465 = vunpack.c.l.b16 %v1368
    %v1466 = vunpack.c.h.b16 %v1368
    %v1467 = vunpack.c.l.b16 %v1369
    %v1468 = vunpack.c.h.b16 %v1369
    %v1469 = vunpack.c.l.b16 %v1370
    %v1470 = vunpack.c.h.b16 %v1370
    %v1471 = vunpack.c.l.b16 %v1371
    %v1472 = vunpack.c.h.b16 %v1371
    %v1473 = vunpack.c.l.b16 %v1372
    %v1474 = vunpack.c.h.b16 %v1372
    %v1475 = vpack.c.b16 %v1413, %v1411
    %v1476 = vpack.c.b16 %v1414, %v1412
    %v1477 = vpack.c.b16 %v1417, %v1415
    %v1478 = vpack.c.b16 %v1418, %v1416
    %v1479 = vpack.c.b16 %v1421, %v1419
    %v1480 = vpack.c.b16 %v1422, %v1420
    %v1481 = vpack.c.b16 %v1425, %v1423
    %v1482 = vpack.c.b16 %v1426, %v1424
    %v1483 = vpack.c.b16 %v1429, %v1427
    %v1484 = vpack.c.b16 %v1430, %v1428
    %v1485 = vpack.c.b16 %v1433, %v1431
    %v1486 = vpack.c.b16 %v1434, %v1432
    %v1487 = vpack.c.b16 %v1437, %v1435
    %v1488 = vpack.c.b16 %v1438, %v1436
    %v1489 = vpack.c.b16 %v1441, %v1439
    %v1490 = vpack.c.b16 %v1442, %v1440
    %v1491 = vpack.c.b16 %v1445, %v1443
    %v1492 = vpack.c.b16 %v1446, %v1444
    %v1493 = vpack.c.b16 %v1449, %v1447
    %v1494 = vpack.c.b16 %v1450, %v1448
    %v1495 = vpack.c.b16 %v1453, %v1451
    %v1496 = vpack.c.b16 %v1454, %v1452
    %v1497 = vpack.c.b16 %v1457, %v1455
    %v1498 = vpack.c.b16 %v1458, %v1456
    %v1499 = vpack.c.b16 %v1461, %v1459
    %v1500 = vpack.c.b16 %v1462, %v1460
    %v1501 = vpack.c.b16 %v1465, %v1463
    %v1502 = vpack.c.b16 %v1466, %v1464
    %v1503 = vpack.c.b16 %v1469, %v1467
    %v1504 = vpack.c.b16 %v1470, %v1468
    %v1505 = vpack.c.b16 %v1473, %v1471
    %v1506 = vpack.c.b16 %v1474, %v1472
    %1539 = vmatprep.subr.bf16.mxu0 %v1490
    %1540 = vmatpush1.bf16.msra.mxu0 %v1489
    %1541 = vmatprep.subr.bf16.mxu0 %v1488
    %1542 = vmatpush1.bf16.msra.mxu0 %v1487
    %1543 = vmatprep.subr.bf16.mxu0 %v1486
    %1544 = vmatpush1.bf16.msra.mxu0 %v1485
    %1545 = vmatprep.subr.bf16.mxu0 %v1484
    %1546 = vmatpush1.bf16.msra.mxu0 %v1483
    %1547 = vmatprep.subr.bf16.mxu0 %v1482
    %1548 = vmatpush1.bf16.msra.mxu0 %v1481
    %1549 = vmatprep.subr.bf16.mxu0 %v1480
    %1550 = vmatpush1.bf16.msra.mxu0 %v1479
    %1551 = vmatprep.subr.bf16.mxu0 %v1478
    %1552 = vmatpush1.bf16.msra.mxu0 %v1477
    %1553 = vmatprep.subr.bf16.mxu0 %v1476
    %1554 = vmatpush1.bf16.msra.mxu0 %v1475
    %1555 = vmatprep.subr.bf16.mxu0 %v1506
    %1556 = vmatpush2.bf16.msra.mxu0 %v1505
    %1557 = vmatprep.subr.bf16.mxu0 %v1504
    %1558 = vmatpush2.bf16.msra.mxu0 %v1503
    %1559 = vmatprep.subr.bf16.mxu0 %v1502
    %1560 = vmatpush2.bf16.msra.mxu0 %v1501
    %1561 = vmatprep.subr.bf16.mxu0 %v1500
    %1562 = vmatpush2.bf16.msra.mxu0 %v1499
    %1563 = vmatprep.subr.bf16.mxu0 %v1498
    %1564 = vmatpush2.bf16.msra.mxu0 %v1497
    %1565 = vmatprep.subr.bf16.mxu0 %v1496
    %1566 = vmatpush2.bf16.msra.mxu0 %v1495
    %1567 = vmatprep.subr.bf16.mxu0 %v1494
    %1568 = vmatpush2.bf16.msra.mxu0 %v1493
    %1569 = vmatprep.subr.bf16.mxu0 %v1492
    %1570 = vmatpush2.bf16.msra.mxu0 %v1491
    %1571 = vmatprep.mubr.bf16.mxu0 %v1376
    %1572 = vmatmul.mubr.bf16.gmra.mxu0 %v1375
    %v1573 = vpop.f32.mrf.mxu0
    %v1574 = vadd.f32 0.0, %v1573
    %v1575 = vpop.f32.mrf.mxu0
    %v1576 = vadd.f32 0.0, %v1575
    %v1577 = vpop.f32.mrf.mxu0
    %v1578 = vpop.f32.mrf.mxu0
    %1579 = vdwg.mxu0
    %v1582 = vrot.slane %v1574, 6
    %v1583 = vrot.slane %v1576, 6
    %v1586 = vadd.f32 %v1336, %v1582
    %v1587 = vadd.f32 %v1336, %v1583
    %s1588 = scalar_lea.vmem [#allocation2], 512
    %v1589 = vld [vmem:[%s1588] sm:$0xff]
    %v1590 = vld [vmem:[%s1588 + $0x8] sm:$0xff]
    %v1591 = vld [vmem:[%s1588 + $0x10] sm:$0xff]
    %v1592 = vld [vmem:[%s1588 + $0x18] sm:$0xff]
    %v1593 = vld [vmem:[%s1588 + $0x20] sm:$0xff]
    %v1594 = vld [vmem:[%s1588 + $0x28] sm:$0xff]
    %v1595 = vld [vmem:[%s1588 + $0x30] sm:$0xff]
    %v1596 = vld [vmem:[%s1588 + $0x38] sm:$0xff]
    %v1597 = vld [vmem:[%s1588 + $0x40] sm:$0xff]
    %v1598 = vld [vmem:[%s1588 + $0x48] sm:$0xff]
    %v1599 = vld [vmem:[%s1588 + $0x50] sm:$0xff]
    %v1600 = vld [vmem:[%s1588 + $0x58] sm:$0xff]
    %v1601 = vld [vmem:[%s1588 + $0x60] sm:$0xff]
    %v1602 = vld [vmem:[%s1588 + $0x68] sm:$0xff]
    %v1603 = vld [vmem:[%s1588 + $0x70] sm:$0xff]
    %v1604 = vld [vmem:[%s1588 + $0x78] sm:$0xff]
    %v1605 = vld [vmem:[%s1588 + $0x80] sm:$0xff]
    %v1606 = vld [vmem:[%s1588 + $0x88] sm:$0xff]
    %v1607 = vld [vmem:[%s1588 + $0x90] sm:$0xff]
    %v1608 = vld [vmem:[%s1588 + $0x98] sm:$0xff]
    %v1609 = vld [vmem:[%s1588 + $0xa0] sm:$0xff]
    %v1610 = vld [vmem:[%s1588 + $0xa8] sm:$0xff]
    %v1611 = vld [vmem:[%s1588 + $0xb0] sm:$0xff]
    %v1612 = vld [vmem:[%s1588 + $0xb8] sm:$0xff]
    %v1613 = vld [vmem:[%s1588 + $0xc0] sm:$0xff]
    %v1614 = vld [vmem:[%s1588 + $0xc8] sm:$0xff]
    %v1615 = vld [vmem:[%s1588 + $0xd0] sm:$0xff]
    %v1616 = vld [vmem:[%s1588 + $0xd8] sm:$0xff]
    %v1617 = vld [vmem:[%s1588 + $0xe0] sm:$0xff]
    %v1618 = vld [vmem:[%s1588 + $0xe8] sm:$0xff]
    %v1619 = vld [vmem:[%s1588 + $0xf0] sm:$0xff]
    %v1620 = vld [vmem:[%s1588 + $0xf8] sm:$0xff]
    %v1621 = vrot.slane %v1098, 2
    %v1622 = vrot.slane %v1099, 2
    %v1657 = vunpack.c.l.b16 %v1589
    %v1658 = vunpack.c.h.b16 %v1589
    %v1659 = vunpack.c.l.b16 %v1590
    %v1660 = vunpack.c.h.b16 %v1590
    %v1661 = vunpack.c.l.b16 %v1591
    %v1662 = vunpack.c.h.b16 %v1591
    %v1663 = vunpack.c.l.b16 %v1592
    %v1664 = vunpack.c.h.b16 %v1592
    %v1665 = vunpack.c.l.b16 %v1593
    %v1666 = vunpack.c.h.b16 %v1593
    %v1667 = vunpack.c.l.b16 %v1594
    %v1668 = vunpack.c.h.b16 %v1594
    %v1669 = vunpack.c.l.b16 %v1595
    %v1670 = vunpack.c.h.b16 %v1595
    %v1671 = vunpack.c.l.b16 %v1596
    %v1672 = vunpack.c.h.b16 %v1596
    %v1673 = vunpack.c.l.b16 %v1597
    %v1674 = vunpack.c.h.b16 %v1597
    %v1675 = vunpack.c.l.b16 %v1598
    %v1676 = vunpack.c.h.b16 %v1598
    %v1677 = vunpack.c.l.b16 %v1599
    %v1678 = vunpack.c.h.b16 %v1599
    %v1679 = vunpack.c.l.b16 %v1600
    %v1680 = vunpack.c.h.b16 %v1600
    %v1681 = vunpack.c.l.b16 %v1601
    %v1682 = vunpack.c.h.b16 %v1601
    %v1683 = vunpack.c.l.b16 %v1602
    %v1684 = vunpack.c.h.b16 %v1602
    %v1685 = vunpack.c.l.b16 %v1603
    %v1686 = vunpack.c.h.b16 %v1603
    %v1687 = vunpack.c.l.b16 %v1604
    %v1688 = vunpack.c.h.b16 %v1604
    %v1689 = vunpack.c.l.b16 %v1605
    %v1690 = vunpack.c.h.b16 %v1605
    %v1691 = vunpack.c.l.b16 %v1606
    %v1692 = vunpack.c.h.b16 %v1606
    %v1693 = vunpack.c.l.b16 %v1607
    %v1694 = vunpack.c.h.b16 %v1607
    %v1695 = vunpack.c.l.b16 %v1608
    %v1696 = vunpack.c.h.b16 %v1608
    %v1697 = vunpack.c.l.b16 %v1609
    %v1698 = vunpack.c.h.b16 %v1609
    %v1699 = vunpack.c.l.b16 %v1610
    %v1700 = vunpack.c.h.b16 %v1610
    %v1701 = vunpack.c.l.b16 %v1611
    %v1702 = vunpack.c.h.b16 %v1611
    %v1703 = vunpack.c.l.b16 %v1612
    %v1704 = vunpack.c.h.b16 %v1612
    %v1705 = vunpack.c.l.b16 %v1613
    %v1706 = vunpack.c.h.b16 %v1613
    %v1707 = vunpack.c.l.b16 %v1614
    %v1708 = vunpack.c.h.b16 %v1614
    %v1709 = vunpack.c.l.b16 %v1615
    %v1710 = vunpack.c.h.b16 %v1615
    %v1711 = vunpack.c.l.b16 %v1616
    %v1712 = vunpack.c.h.b16 %v1616
    %v1713 = vunpack.c.l.b16 %v1617
    %v1714 = vunpack.c.h.b16 %v1617
    %v1715 = vunpack.c.l.b16 %v1618
    %v1716 = vunpack.c.h.b16 %v1618
    %v1717 = vunpack.c.l.b16 %v1619
    %v1718 = vunpack.c.h.b16 %v1619
    %v1719 = vunpack.c.l.b16 %v1620
    %v1720 = vunpack.c.h.b16 %v1620
    %v1721 = vpack.c.b16 %v1659, %v1657
    %v1722 = vpack.c.b16 %v1660, %v1658
    %v1723 = vpack.c.b16 %v1663, %v1661
    %v1724 = vpack.c.b16 %v1664, %v1662
    %v1725 = vpack.c.b16 %v1667, %v1665
    %v1726 = vpack.c.b16 %v1668, %v1666
    %v1727 = vpack.c.b16 %v1671, %v1669
    %v1728 = vpack.c.b16 %v1672, %v1670
    %v1729 = vpack.c.b16 %v1675, %v1673
    %v1730 = vpack.c.b16 %v1676, %v1674
    %v1731 = vpack.c.b16 %v1679, %v1677
    %v1732 = vpack.c.b16 %v1680, %v1678
    %v1733 = vpack.c.b16 %v1683, %v1681
    %v1734 = vpack.c.b16 %v1684, %v1682
    %v1735 = vpack.c.b16 %v1687, %v1685
    %v1736 = vpack.c.b16 %v1688, %v1686
    %v1737 = vpack.c.b16 %v1691, %v1689
    %v1738 = vpack.c.b16 %v1692, %v1690
    %v1739 = vpack.c.b16 %v1695, %v1693
    %v1740 = vpack.c.b16 %v1696, %v1694
    %v1741 = vpack.c.b16 %v1699, %v1697
    %v1742 = vpack.c.b16 %v1700, %v1698
    %v1743 = vpack.c.b16 %v1703, %v1701
    %v1744 = vpack.c.b16 %v1704, %v1702
    %v1745 = vpack.c.b16 %v1707, %v1705
    %v1746 = vpack.c.b16 %v1708, %v1706
    %v1747 = vpack.c.b16 %v1711, %v1709
    %v1748 = vpack.c.b16 %v1712, %v1710
    %v1749 = vpack.c.b16 %v1715, %v1713
    %v1750 = vpack.c.b16 %v1716, %v1714
    %v1751 = vpack.c.b16 %v1719, %v1717
    %v1752 = vpack.c.b16 %v1720, %v1718
    %1785 = vmatprep.subr.bf16.mxu0 %v1736
    %1786 = vmatpush1.bf16.msra.mxu0 %v1735
    %1787 = vmatprep.subr.bf16.mxu0 %v1734
    %1788 = vmatpush1.bf16.msra.mxu0 %v1733
    %1789 = vmatprep.subr.bf16.mxu0 %v1732
    %1790 = vmatpush1.bf16.msra.mxu0 %v1731
    %1791 = vmatprep.subr.bf16.mxu0 %v1730
    %1792 = vmatpush1.bf16.msra.mxu0 %v1729
    %1793 = vmatprep.subr.bf16.mxu0 %v1728
    %1794 = vmatpush1.bf16.msra.mxu0 %v1727
    %1795 = vmatprep.subr.bf16.mxu0 %v1726
    %1796 = vmatpush1.bf16.msra.mxu0 %v1725
    %1797 = vmatprep.subr.bf16.mxu0 %v1724
    %1798 = vmatpush1.bf16.msra.mxu0 %v1723
    %1799 = vmatprep.subr.bf16.mxu0 %v1722
    %1800 = vmatpush1.bf16.msra.mxu0 %v1721
    %1801 = vmatprep.subr.bf16.mxu0 %v1752
    %1802 = vmatpush2.bf16.msra.mxu0 %v1751
    %1803 = vmatprep.subr.bf16.mxu0 %v1750
    %1804 = vmatpush2.bf16.msra.mxu0 %v1749
    %1805 = vmatprep.subr.bf16.mxu0 %v1748
    %1806 = vmatpush2.bf16.msra.mxu0 %v1747
    %1807 = vmatprep.subr.bf16.mxu0 %v1746
    %1808 = vmatpush2.bf16.msra.mxu0 %v1745
    %1809 = vmatprep.subr.bf16.mxu0 %v1744
    %1810 = vmatpush2.bf16.msra.mxu0 %v1743
    %1811 = vmatprep.subr.bf16.mxu0 %v1742
    %1812 = vmatpush2.bf16.msra.mxu0 %v1741
    %1813 = vmatprep.subr.bf16.mxu0 %v1740
    %1814 = vmatpush2.bf16.msra.mxu0 %v1739
    %1815 = vmatprep.subr.bf16.mxu0 %v1738
    %1816 = vmatpush2.bf16.msra.mxu0 %v1737
    %1817 = vmatprep.mubr.bf16.mxu0 %v1622
    %1818 = vmatmul.mubr.bf16.gmra.mxu0 %v1621
    %v1819 = vpop.f32.mrf.mxu0
    %v1820 = vadd.f32 0.0, %v1819
    %v1821 = vpop.f32.mrf.mxu0
    %v1822 = vadd.f32 0.0, %v1821
    %v1823 = vpop.f32.mrf.mxu0
    %v1824 = vpop.f32.mrf.mxu0
    %1825 = vdwg.mxu0
    %v1828 = vrot.slane %v1820, 4
    %v1829 = vrot.slane %v1822, 4
    %v1832 = vadd.f32 %v1336, %v1828
    %v1833 = vadd.f32 %v1336, %v1829
    %s1834 = scalar_lea.vmem [#allocation2], 768
    %v1835 = vld [vmem:[%s1834] sm:$0xff]
    %v1836 = vld [vmem:[%s1834 + $0x8] sm:$0xff]
    %v1837 = vld [vmem:[%s1834 + $0x10] sm:$0xff]
    %v1838 = vld [vmem:[%s1834 + $0x18] sm:$0xff]
    %v1839 = vld [vmem:[%s1834 + $0x20] sm:$0xff]
    %v1840 = vld [vmem:[%s1834 + $0x28] sm:$0xff]
    %v1841 = vld [vmem:[%s1834 + $0x30] sm:$0xff]
    %v1842 = vld [vmem:[%s1834 + $0x38] sm:$0xff]
    %v1843 = vld [vmem:[%s1834 + $0x40] sm:$0xff]
    %v1844 = vld [vmem:[%s1834 + $0x48] sm:$0xff]
    %v1845 = vld [vmem:[%s1834 + $0x50] sm:$0xff]
    %v1846 = vld [vmem:[%s1834 + $0x58] sm:$0xff]
    %v1847 = vld [vmem:[%s1834 + $0x60] sm:$0xff]
    %v1848 = vld [vmem:[%s1834 + $0x68] sm:$0xff]
    %v1849 = vld [vmem:[%s1834 + $0x70] sm:$0xff]
    %v1850 = vld [vmem:[%s1834 + $0x78] sm:$0xff]
    %v1851 = vld [vmem:[%s1834 + $0x80] sm:$0xff]
    %v1852 = vld [vmem:[%s1834 + $0x88] sm:$0xff]
    %v1853 = vld [vmem:[%s1834 + $0x90] sm:$0xff]
    %v1854 = vld [vmem:[%s1834 + $0x98] sm:$0xff]
    %v1855 = vld [vmem:[%s1834 + $0xa0] sm:$0xff]
    %v1856 = vld [vmem:[%s1834 + $0xa8] sm:$0xff]
    %v1857 = vld [vmem:[%s1834 + $0xb0] sm:$0xff]
    %v1858 = vld [vmem:[%s1834 + $0xb8] sm:$0xff]
    %v1859 = vld [vmem:[%s1834 + $0xc0] sm:$0xff]
    %v1860 = vld [vmem:[%s1834 + $0xc8] sm:$0xff]
    %v1861 = vld [vmem:[%s1834 + $0xd0] sm:$0xff]
    %v1862 = vld [vmem:[%s1834 + $0xd8] sm:$0xff]
    %v1863 = vld [vmem:[%s1834 + $0xe0] sm:$0xff]
    %v1864 = vld [vmem:[%s1834 + $0xe8] sm:$0xff]
    %v1865 = vld [vmem:[%s1834 + $0xf0] sm:$0xff]
    %v1866 = vld [vmem:[%s1834 + $0xf8] sm:$0xff]
    %v1867 = vrot.slane %v1098, 3
    %v1868 = vrot.slane %v1099, 3
    %v1903 = vunpack.c.l.b16 %v1835
    %v1904 = vunpack.c.h.b16 %v1835
    %v1905 = vunpack.c.l.b16 %v1836
    %v1906 = vunpack.c.h.b16 %v1836
    %v1907 = vunpack.c.l.b16 %v1837
    %v1908 = vunpack.c.h.b16 %v1837
    %v1909 = vunpack.c.l.b16 %v1838
    %v1910 = vunpack.c.h.b16 %v1838
    %v1911 = vunpack.c.l.b16 %v1839
    %v1912 = vunpack.c.h.b16 %v1839
    %v1913 = vunpack.c.l.b16 %v1840
    %v1914 = vunpack.c.h.b16 %v1840
    %v1915 = vunpack.c.l.b16 %v1841
    %v1916 = vunpack.c.h.b16 %v1841
    %v1917 = vunpack.c.l.b16 %v1842
    %v1918 = vunpack.c.h.b16 %v1842
    %v1919 = vunpack.c.l.b16 %v1843
    %v1920 = vunpack.c.h.b16 %v1843
    %v1921 = vunpack.c.l.b16 %v1844
    %v1922 = vunpack.c.h.b16 %v1844
    %v1923 = vunpack.c.l.b16 %v1845
    %v1924 = vunpack.c.h.b16 %v1845
    %v1925 = vunpack.c.l.b16 %v1846
    %v1926 = vunpack.c.h.b16 %v1846
    %v1927 = vunpack.c.l.b16 %v1847
    %v1928 = vunpack.c.h.b16 %v1847
    %v1929 = vunpack.c.l.b16 %v1848
    %v1930 = vunpack.c.h.b16 %v1848
    %v1931 = vunpack.c.l.b16 %v1849
    %v1932 = vunpack.c.h.b16 %v1849
    %v1933 = vunpack.c.l.b16 %v1850
    %v1934 = vunpack.c.h.b16 %v1850
    %v1935 = vunpack.c.l.b16 %v1851
    %v1936 = vunpack.c.h.b16 %v1851
    %v1937 = vunpack.c.l.b16 %v1852
    %v1938 = vunpack.c.h.b16 %v1852
    %v1939 = vunpack.c.l.b16 %v1853
    %v1940 = vunpack.c.h.b16 %v1853
    %v1941 = vunpack.c.l.b16 %v1854
    %v1942 = vunpack.c.h.b16 %v1854
    %v1943 = vunpack.c.l.b16 %v1855
    %v1944 = vunpack.c.h.b16 %v1855
    %v1945 = vunpack.c.l.b16 %v1856
    %v1946 = vunpack.c.h.b16 %v1856
    %v1947 = vunpack.c.l.b16 %v1857
    %v1948 = vunpack.c.h.b16 %v1857
    %v1949 = vunpack.c.l.b16 %v1858
    %v1950 = vunpack.c.h.b16 %v1858
    %v1951 = vunpack.c.l.b16 %v1859
    %v1952 = vunpack.c.h.b16 %v1859
    %v1953 = vunpack.c.l.b16 %v1860
    %v1954 = vunpack.c.h.b16 %v1860
    %v1955 = vunpack.c.l.b16 %v1861
    %v1956 = vunpack.c.h.b16 %v1861
    %v1957 = vunpack.c.l.b16 %v1862
    %v1958 = vunpack.c.h.b16 %v1862
    %v1959 = vunpack.c.l.b16 %v1863
    %v1960 = vunpack.c.h.b16 %v1863
    %v1961 = vunpack.c.l.b16 %v1864
    %v1962 = vunpack.c.h.b16 %v1864
    %v1963 = vunpack.c.l.b16 %v1865
    %v1964 = vunpack.c.h.b16 %v1865
    %v1965 = vunpack.c.l.b16 %v1866
    %v1966 = vunpack.c.h.b16 %v1866
    %v1967 = vpack.c.b16 %v1905, %v1903
    %v1968 = vpack.c.b16 %v1906, %v1904
    %v1969 = vpack.c.b16 %v1909, %v1907
    %v1970 = vpack.c.b16 %v1910, %v1908
    %v1971 = vpack.c.b16 %v1913, %v1911
    %v1972 = vpack.c.b16 %v1914, %v1912
    %v1973 = vpack.c.b16 %v1917, %v1915
    %v1974 = vpack.c.b16 %v1918, %v1916
    %v1975 = vpack.c.b16 %v1921, %v1919
    %v1976 = vpack.c.b16 %v1922, %v1920
    %v1977 = vpack.c.b16 %v1925, %v1923
    %v1978 = vpack.c.b16 %v1926, %v1924
    %v1979 = vpack.c.b16 %v1929, %v1927
    %v1980 = vpack.c.b16 %v1930, %v1928
    %v1981 = vpack.c.b16 %v1933, %v1931
    %v1982 = vpack.c.b16 %v1934, %v1932
    %v1983 = vpack.c.b16 %v1937, %v1935
    %v1984 = vpack.c.b16 %v1938, %v1936
    %v1985 = vpack.c.b16 %v1941, %v1939
    %v1986 = vpack.c.b16 %v1942, %v1940
    %v1987 = vpack.c.b16 %v1945, %v1943
    %v1988 = vpack.c.b16 %v1946, %v1944
    %v1989 = vpack.c.b16 %v1949, %v1947
    %v1990 = vpack.c.b16 %v1950, %v1948
    %v1991 = vpack.c.b16 %v1953, %v1951
    %v1992 = vpack.c.b16 %v1954, %v1952
    %v1993 = vpack.c.b16 %v1957, %v1955
    %v1994 = vpack.c.b16 %v1958, %v1956
    %v1995 = vpack.c.b16 %v1961, %v1959
    %v1996 = vpack.c.b16 %v1962, %v1960
    %v1997 = vpack.c.b16 %v1965, %v1963
    %v1998 = vpack.c.b16 %v1966, %v1964
    %2031 = vmatprep.subr.bf16.mxu0 %v1982
    %2032 = vmatpush1.bf16.msra.mxu0 %v1981
    %2033 = vmatprep.subr.bf16.mxu0 %v1980
    %2034 = vmatpush1.bf16.msra.mxu0 %v1979
    %2035 = vmatprep.subr.bf16.mxu0 %v1978
    %2036 = vmatpush1.bf16.msra.mxu0 %v1977
    %2037 = vmatprep.subr.bf16.mxu0 %v1976
    %2038 = vmatpush1.bf16.msra.mxu0 %v1975
    %2039 = vmatprep.subr.bf16.mxu0 %v1974
    %2040 = vmatpush1.bf16.msra.mxu0 %v1973
    %2041 = vmatprep.subr.bf16.mxu0 %v1972
    %2042 = vmatpush1.bf16.msra.mxu0 %v1971
    %2043 = vmatprep.subr.bf16.mxu0 %v1970
    %2044 = vmatpush1.bf16.msra.mxu0 %v1969
    %2045 = vmatprep.subr.bf16.mxu0 %v1968
    %2046 = vmatpush1.bf16.msra.mxu0 %v1967
    %2047 = vmatprep.subr.bf16.mxu0 %v1998
    %2048 = vmatpush2.bf16.msra.mxu0 %v1997
    %2049 = vmatprep.subr.bf16.mxu0 %v1996
    %2050 = vmatpush2.bf16.msra.mxu0 %v1995
    %2051 = vmatprep.subr.bf16.mxu0 %v1994
    %2052 = vmatpush2.bf16.msra.mxu0 %v1993
    %2053 = vmatprep.subr.bf16.mxu0 %v1992
    %2054 = vmatpush2.bf16.msra.mxu0 %v1991
    %2055 = vmatprep.subr.bf16.mxu0 %v1990
    %2056 = vmatpush2.bf16.msra.mxu0 %v1989
    %2057 = vmatprep.subr.bf16.mxu0 %v1988
    %2058 = vmatpush2.bf16.msra.mxu0 %v1987
    %2059 = vmatprep.subr.bf16.mxu0 %v1986
    %2060 = vmatpush2.bf16.msra.mxu0 %v1985
    %2061 = vmatprep.subr.bf16.mxu0 %v1984
    %2062 = vmatpush2.bf16.msra.mxu0 %v1983
    %2063 = vmatprep.mubr.bf16.mxu0 %v1868
    %2064 = vmatmul.mubr.bf16.gmra.mxu0 %v1867
    %v2065 = vpop.f32.mrf.mxu0
    %v2066 = vadd.f32 0.0, %v2065
    %v2067 = vpop.f32.mrf.mxu0
    %v2068 = vadd.f32 0.0, %v2067
    %v2069 = vpop.f32.mrf.mxu0
    %v2070 = vpop.f32.mrf.mxu0
    %2071 = vdwg.mxu0
    %v2074 = vrot.slane %v2066, 2
    %v2075 = vrot.slane %v2068, 2
    %v2078 = vadd.f32 %v1336, %v2074
    %v2079 = vadd.f32 %v1336, %v2075
    %vm2080 = vcmask 1041408
    %v2081 = vsel %vm2080, %v1338, %v1586
    %v2082 = vsel %vm2080, %v1339, %v1587
    %vm2083 = vcmask 1043456
    %v2084 = vsel %vm2083, %v2081, %v1832
    %v2085 = vsel %vm2083, %v2082, %v1833
    %vm2086 = vcmask 1045504
    %v2087 = vsel %vm2086, %v2084, %v2078
    %v2088 = vsel %vm2086, %v2085, %v2079
    %v2089 = vadd.f32 %v1087, %v2087
    %v2090 = vadd.f32 %v1089, %v2088
    %v2091 = vld [vmem:[%s14] sm:$0x3]
    %v2092 = vld [vmem:[%s10] sm:$0x3]
    %v2093 = vlaneseq
    %v2094 = vshrl.u32 %v2093, 7
    %v2095 = vsub.s32 0, %v2094
    %v2096 = vrot.slane %v546, %v2095
    %v2097 = vmul.f32 %v2092, %v2096
    %v2098 = vadd.f32 %v2091, %v2097
    %v2099 = vlaneseq
    %v2100 = vshrl.u32 %v2099, 7
    %v2101 = vsub.s32 1, %v2100
    %v2102 = vrot.slane %v546, %v2101
    %2104 = vrot.lane.b32.xlu0 %v2102, 1
    %v2105 = vpop.permute.xlu0 %2104
    %v2107 = vmul.f32 %v2092, %v2105
    %2109 = vrot.lane.b32.xlu0 %v2107, 127
    %v2110 = vpop.permute.xlu0 %2109
    %v2112 = vadd.f32 %v2098, %v2110
    %v2113 = vlaneseq
    %v2114 = vshrl.u32 %v2113, 7
    %v2115 = vsub.s32 2, %v2114
    %v2116 = vrot.slane %v546, %v2115
    %2118 = vrot.lane.b32.xlu0 %v2116, 2
    %v2119 = vpop.permute.xlu0 %2118
    %v2121 = vmul.f32 %v2092, %v2119
    %2123 = vrot.lane.b32.xlu0 %v2121, 126
    %v2124 = vpop.permute.xlu0 %2123
    %v2126 = vadd.f32 %v2112, %v2124
    %v2127 = vlaneseq
    %v2128 = vshrl.u32 %v2127, 7
    %v2129 = vsub.s32 3, %v2128
    %v2130 = vrot.slane %v546, %v2129
    %2132 = vrot.lane.b32.xlu0 %v2130, 3
    %v2133 = vpop.permute.xlu0 %2132
    %v2135 = vmul.f32 %v2092, %v2133
    %2137 = vrot.lane.b32.xlu0 %v2135, 125
    %v2138 = vpop.permute.xlu0 %2137
    %v2140 = vadd.f32 %v2126, %v2138
    %v2141 = vlaneseq
    %v2142 = vshrl.u32 %v2141, 7
    %v2143 = vsub.s32 4, %v2142
    %v2144 = vrot.slane %v546, %v2143
    %2146 = vrot.lane.b32.xlu0 %v2144, 4
    %v2147 = vpop.permute.xlu0 %2146
    %v2149 = vmul.f32 %v2092, %v2147
    %2151 = vrot.lane.b32.xlu0 %v2149, 124
    %v2152 = vpop.permute.xlu0 %2151
    %v2154 = vadd.f32 %v2140, %v2152
    %v2155 = vlaneseq
    %v2156 = vshrl.u32 %v2155, 7
    %v2157 = vsub.s32 5, %v2156
    %v2158 = vrot.slane %v546, %v2157
    %2160 = vrot.lane.b32.xlu0 %v2158, 5
    %v2161 = vpop.permute.xlu0 %2160
    %v2163 = vmul.f32 %v2092, %v2161
    %2165 = vrot.lane.b32.xlu0 %v2163, 123
    %v2166 = vpop.permute.xlu0 %2165
    %v2168 = vadd.f32 %v2154, %v2166
    %v2169 = vlaneseq
    %v2170 = vshrl.u32 %v2169, 7
    %v2171 = vsub.s32 6, %v2170
    %v2172 = vrot.slane %v546, %v2171
    %2174 = vrot.lane.b32.xlu0 %v2172, 6
    %v2175 = vpop.permute.xlu0 %2174
    %v2177 = vmul.f32 %v2092, %v2175
    %2179 = vrot.lane.b32.xlu0 %v2177, 122
    %v2180 = vpop.permute.xlu0 %2179
    %v2182 = vadd.f32 %v2168, %v2180
    %v2183 = vlaneseq
    %v2184 = vshrl.u32 %v2183, 7
    %v2185 = vsub.s32 7, %v2184
    %v2186 = vrot.slane %v546, %v2185
    %2188 = vrot.lane.b32.xlu0 %v2186, 7
    %v2189 = vpop.permute.xlu0 %2188
    %v2191 = vmul.f32 %v2092, %v2189
    %2193 = vrot.lane.b32.xlu0 %v2191, 121
    %v2194 = vpop.permute.xlu0 %2193
    %v2196 = vadd.f32 %v2182, %v2194
    %v2197 = vmax.f32 %v2196, 0.0
    %s2198 = scalar_lea.vmem %s13, 56
    %v2199 = vld [vmem:[%s2198] sm:$0xff]
    %v2200 = vld [vmem:[%s11] sm:$0xff]
    %v2201 = vlaneseq
    %v2202 = vshrl.u32 %v2201, 7
    %v2203 = vsub.s32 0, %v2202
    %v2204 = vrot.slane %v2197, %v2203
    %v2205 = vmul.f32 %v2200, %v2204
    %v2206 = vadd.f32 %v2199, %v2205
    %v2207 = vlaneseq
    %v2208 = vshrl.u32 %v2207, 7
    %v2209 = vsub.s32 1, %v2208
    %v2210 = vrot.slane %v2197, %v2209
    %2212 = vrot.lane.b32.xlu0 %v2210, 1
    %v2213 = vpop.permute.xlu0 %2212
    %v2215 = vmul.f32 %v2200, %v2213
    %2217 = vrot.lane.b32.xlu0 %v2215, 127
    %v2218 = vpop.permute.xlu0 %2217
    %v2220 = vadd.f32 %v2206, %v2218
    %v2221 = vxor.u32 %v2220, 2147483648
    %v2222 = vmul.f32 %v2221, 1.442695
    %v2223 = vpow.pop %v2222
    %v2224 = vadd.f32 %v2223, 1.0
    %v2225 = vrcp.pop %v2224
    %v2226 = vmul.f32 1.0, %v2225
    %2228 = vset.pattern.permute.xlu0 0
    %2229 = vperm.xlu0 %2228, %v2226
    %v2230 = vpop.permute.xlu0 %2229
    %v2232 = vmul.f32 %v2089, %v2230
    %v2233 = vmul.f32 %v2090, %v2230
    %v2234 = vld [vmem:[%s6] sm:$0xff]
    %s2235 = scalar_lea.vmem %s13, 64
    %v2236 = vld [vmem:[%s2235] sm:$0xff]
    %2238 = vset.pattern.permute.xlu0 0
    %2239 = vperm.xlu0 %2238, %v2236
    %v2240 = vpop.permute.xlu0 %2239
    %v2243 = vsel %vm334, %v2234, 0
    %2245 = vmatprep.subr.mxu0 0.0
    %2246 = vmatpush1.msra.mxu0 0.0
    %2247 = vmatprep.subr.mxu0 0.0
    %2248 = vmatpush1.msra.mxu0 0.0
    %2249 = vmatprep.subr.mxu0 0.0
    %2250 = vmatpush1.msra.mxu0 0.0
    %2251 = vmatprep.subr.mxu0 0.0
    %2252 = vmatpush1.msra.mxu0 0.0
    %2253 = vmatprep.subr.mxu0 0.0
    %2254 = vmatpush1.msra.mxu0 0.0
    %2255 = vmatprep.subr.mxu0 0.0
    %2256 = vmatpush1.msra.mxu0 0.0
    %2257 = vmatprep.subr.mxu0 0.0
    %2258 = vmatpush1.msra.mxu0 0.0
    %2259 = vmatprep.subr.mxu0 0.0
    %2260 = vmatpush1.msra.mxu0 0.0
    %2261 = vmatprep.subr.mxu0 0.0
    %2262 = vmatpush1.msra.mxu0 0.0
    %2263 = vmatprep.subr.mxu0 0.0
    %2264 = vmatpush1.msra.mxu0 0.0
    %2265 = vmatprep.subr.mxu0 0.0
    %2266 = vmatpush1.msra.mxu0 0.0
    %2267 = vmatprep.subr.mxu0 0.0
    %2268 = vmatpush1.msra.mxu0 0.0
    %2269 = vmatprep.subr.mxu0 0.0
    %2270 = vmatpush1.msra.mxu0 0.0
    %2271 = vmatprep.subr.mxu0 0.0
    %2272 = vmatpush1.msra.mxu0 0.0
    %2273 = vmatprep.subr.mxu0 0.0
    %2274 = vmatpush1.msra.mxu0 0.0
    %2275 = vmatprep.subr.mxu0 %v2233
    %2276 = vmatpush1.msra.mxu0 %v2232
    %2277 = vmatprep.subr.mxu0 0.0
    %2278 = vmatpush2.msra.mxu0 0.0
    %2279 = vmatprep.subr.mxu0 0.0
    %2280 = vmatpush2.msra.mxu0 0.0
    %2281 = vmatprep.subr.mxu0 0.0
    %2282 = vmatpush2.msra.mxu0 0.0
    %2283 = vmatprep.subr.mxu0 0.0
    %2284 = vmatpush2.msra.mxu0 0.0
    %2285 = vmatprep.subr.mxu0 0.0
    %2286 = vmatpush2.msra.mxu0 0.0
    %2287 = vmatprep.subr.mxu0 0.0
    %2288 = vmatpush2.msra.mxu0 0.0
    %2289 = vmatprep.subr.mxu0 0.0
    %2290 = vmatpush2.msra.mxu0 0.0
    %2291 = vmatprep.subr.mxu0 0.0
    %2292 = vmatpush2.msra.mxu0 0.0
    %2293 = vmatprep.subr.mxu0 0.0
    %2294 = vmatpush2.msra.mxu0 0.0
    %2295 = vmatprep.subr.mxu0 0.0
    %2296 = vmatpush2.msra.mxu0 0.0
    %2297 = vmatprep.subr.mxu0 0.0
    %2298 = vmatpush2.msra.mxu0 0.0
    %2299 = vmatprep.subr.mxu0 0.0
    %2300 = vmatpush2.msra.mxu0 0.0
    %2301 = vmatprep.subr.mxu0 0.0
    %2302 = vmatpush2.msra.mxu0 0.0
    %2303 = vmatprep.subr.mxu0 0.0
    %2304 = vmatpush2.msra.mxu0 0.0
    %2305 = vmatprep.subr.mxu0 0.0
    %2306 = vmatpush2.msra.mxu0 0.0
    %2307 = vmatprep.subr.mxu0 0.0
    %2308 = vmatpush2.msra.mxu0 0.0
    %2309 = vmatprep.mubr.f32.mxu0 0.0
    %2310 = vmatmul.mubr.f32.gmra.mxu0 %v2243
    %v2311 = vpop.f32.mrf.mxu0
    %v2312 = vadd.f32 %v2240, %v2311
    %v2313 = vpop.f32.mrf.mxu0
    %v2314 = vadd.f32 %v2240, %v2313
    %2315 = vdwg.mxu0
    %v2316 = vld [vmem:[%s7] sm:$0xff]
    %s2317 = scalar_lea.vmem %s13, 72
    %v2318 = vld [vmem:[%s2317] sm:$0xff]
    %2320 = vset.pattern.permute.xlu0 0
    %2321 = vperm.xlu0 %2320, %v2318
    %v2322 = vpop.permute.xlu0 %2321
    %v2325 = vsel %vm334, %v2316, 0
    %2327 = vmatprep.subr.mxu0 0.0
    %2328 = vmatpush1.msra.mxu0 0.0
    %2329 = vmatprep.subr.mxu0 0.0
    %2330 = vmatpush1.msra.mxu0 0.0
    %2331 = vmatprep.subr.mxu0 0.0
    %2332 = vmatpush1.msra.mxu0 0.0
    %2333 = vmatprep.subr.mxu0 0.0
    %2334 = vmatpush1.msra.mxu0 0.0
    %2335 = vmatprep.subr.mxu0 0.0
    %2336 = vmatpush1.msra.mxu0 0.0
    %2337 = vmatprep.subr.mxu0 0.0
    %2338 = vmatpush1.msra.mxu0 0.0
    %2339 = vmatprep.subr.mxu0 0.0
    %2340 = vmatpush1.msra.mxu0 0.0
    %2341 = vmatprep.subr.mxu0 0.0
    %2342 = vmatpush1.msra.mxu0 0.0
    %2343 = vmatprep.subr.mxu0 0.0
    %2344 = vmatpush1.msra.mxu0 0.0
    %2345 = vmatprep.subr.mxu0 0.0
    %2346 = vmatpush1.msra.mxu0 0.0
    %2347 = vmatprep.subr.mxu0 0.0
    %2348 = vmatpush1.msra.mxu0 0.0
    %2349 = vmatprep.subr.mxu0 0.0
    %2350 = vmatpush1.msra.mxu0 0.0
    %2351 = vmatprep.subr.mxu0 0.0
    %2352 = vmatpush1.msra.mxu0 0.0
    %2353 = vmatprep.subr.mxu0 0.0
    %2354 = vmatpush1.msra.mxu0 0.0
    %2355 = vmatprep.subr.mxu0 0.0
    %2356 = vmatpush1.msra.mxu0 0.0
    %2357 = vmatprep.subr.mxu0 %v2233
    %2358 = vmatpush1.msra.mxu0 %v2232
    %2359 = vmatprep.subr.mxu0 0.0
    %2360 = vmatpush2.msra.mxu0 0.0
    %2361 = vmatprep.subr.mxu0 0.0
    %2362 = vmatpush2.msra.mxu0 0.0
    %2363 = vmatprep.subr.mxu0 0.0
    %2364 = vmatpush2.msra.mxu0 0.0
    %2365 = vmatprep.subr.mxu0 0.0
    %2366 = vmatpush2.msra.mxu0 0.0
    %2367 = vmatprep.subr.mxu0 0.0
    %2368 = vmatpush2.msra.mxu0 0.0
    %2369 = vmatprep.subr.mxu0 0.0
    %2370 = vmatpush2.msra.mxu0 0.0
    %2371 = vmatprep.subr.mxu0 0.0
    %2372 = vmatpush2.msra.mxu0 0.0
    %2373 = vmatprep.subr.mxu0 0.0
    %2374 = vmatpush2.msra.mxu0 0.0
    %2375 = vmatprep.subr.mxu0 0.0
    %2376 = vmatpush2.msra.mxu0 0.0
    %2377 = vmatprep.subr.mxu0 0.0
    %2378 = vmatpush2.msra.mxu0 0.0
    %2379 = vmatprep.subr.mxu0 0.0
    %2380 = vmatpush2.msra.mxu0 0.0
    %2381 = vmatprep.subr.mxu0 0.0
    %2382 = vmatpush2.msra.mxu0 0.0
    %2383 = vmatprep.subr.mxu0 0.0
    %2384 = vmatpush2.msra.mxu0 0.0
    %2385 = vmatprep.subr.mxu0 0.0
    %2386 = vmatpush2.msra.mxu0 0.0
    %2387 = vmatprep.subr.mxu0 0.0
    %2388 = vmatpush2.msra.mxu0 0.0
    %2389 = vmatprep.subr.mxu0 0.0
    %2390 = vmatpush2.msra.mxu0 0.0
    %2391 = vmatprep.mubr.f32.mxu0 0.0
    %2392 = vmatmul.mubr.f32.gmra.mxu0 %v2325
    %v2393 = vpop.f32.mrf.mxu0
    %v2394 = vadd.f32 %v2322, %v2393
    %v2395 = vpop.f32.mrf.mxu0
    %v2396 = vadd.f32 %v2322, %v2395
    %2397 = vdwg.mxu0
    %v2398 = vld [vmem:[#allocation5] sm:$0xff]
    %v2399 = vld [vmem:[#allocation5 + $0x8] sm:$0xff]
    %v2400 = vld [vmem:[#allocation5 + $0x10] sm:$0xff]
    %v2401 = vld [vmem:[#allocation5 + $0x18] sm:$0xff]
    %v2402 = vld [vmem:[#allocation5 + $0x20] sm:$0xff]
    %v2403 = vld [vmem:[#allocation5 + $0x28] sm:$0xff]
    %v2404 = vld [vmem:[#allocation5 + $0x30] sm:$0xff]
    %v2405 = vld [vmem:[#allocation5 + $0x38] sm:$0xff]
    %v2406 = vld [vmem:[#allocation5 + $0x40] sm:$0xff]
    %v2407 = vld [vmem:[#allocation5 + $0x48] sm:$0xff]
    %v2408 = vld [vmem:[#allocation5 + $0x50] sm:$0xff]
    %v2409 = vld [vmem:[#allocation5 + $0x58] sm:$0xff]
    %v2410 = vld [vmem:[#allocation5 + $0x60] sm:$0xff]
    %v2411 = vld [vmem:[#allocation5 + $0x68] sm:$0xff]
    %v2412 = vld [vmem:[#allocation5 + $0x70] sm:$0xff]
    %v2413 = vld [vmem:[#allocation5 + $0x78] sm:$0xff]
    %v2414 = vld [vmem:[#allocation5 + $0x80] sm:$0xff]
    %v2415 = vld [vmem:[#allocation5 + $0x88] sm:$0xff]
    %v2416 = vld [vmem:[#allocation5 + $0x90] sm:$0xff]
    %v2417 = vld [vmem:[#allocation5 + $0x98] sm:$0xff]
    %v2418 = vld [vmem:[#allocation5 + $0xa0] sm:$0xff]
    %v2419 = vld [vmem:[#allocation5 + $0xa8] sm:$0xff]
    %v2420 = vld [vmem:[#allocation5 + $0xb0] sm:$0xff]
    %v2421 = vld [vmem:[#allocation5 + $0xb8] sm:$0xff]
    %v2422 = vld [vmem:[#allocation5 + $0xc0] sm:$0xff]
    %v2423 = vld [vmem:[#allocation5 + $0xc8] sm:$0xff]
    %v2424 = vld [vmem:[#allocation5 + $0xd0] sm:$0xff]
    %v2425 = vld [vmem:[#allocation5 + $0xd8] sm:$0xff]
    %v2426 = vld [vmem:[#allocation5 + $0xe0] sm:$0xff]
    %v2427 = vld [vmem:[#allocation5 + $0xe8] sm:$0xff]
    %v2428 = vld [vmem:[#allocation5 + $0xf0] sm:$0xff]
    %v2429 = vld [vmem:[#allocation5 + $0xf8] sm:$0xff]
    %v2430 = vld [vmem:[#allocation5 + $0x100] sm:$0xff]
    %v2431 = vld [vmem:[#allocation5 + $0x108] sm:$0xff]
    %v2432 = vld [vmem:[#allocation5 + $0x110] sm:$0xff]
    %v2433 = vld [vmem:[#allocation5 + $0x118] sm:$0xff]
    %v2434 = vld [vmem:[#allocation5 + $0x120] sm:$0xff]
    %v2435 = vld [vmem:[#allocation5 + $0x128] sm:$0xff]
    %v2436 = vld [vmem:[#allocation5 + $0x130] sm:$0xff]
    %v2437 = vld [vmem:[#allocation5 + $0x138] sm:$0xff]
    %v2438 = vld [vmem:[#allocation5 + $0x140] sm:$0xff]
    %v2439 = vld [vmem:[#allocation5 + $0x148] sm:$0xff]
    %v2440 = vld [vmem:[#allocation5 + $0x150] sm:$0xff]
    %v2441 = vld [vmem:[#allocation5 + $0x158] sm:$0xff]
    %v2442 = vld [vmem:[#allocation5 + $0x160] sm:$0xff]
    %v2443 = vld [vmem:[#allocation5 + $0x168] sm:$0xff]
    %v2444 = vld [vmem:[#allocation5 + $0x170] sm:$0xff]
    %v2445 = vld [vmem:[#allocation5 + $0x178] sm:$0xff]
    %v2446 = vld [vmem:[#allocation5 + $0x180] sm:$0xff]
    %v2447 = vld [vmem:[#allocation5 + $0x188] sm:$0xff]
    %v2448 = vld [vmem:[#allocation5 + $0x190] sm:$0xff]
    %v2449 = vld [vmem:[#allocation5 + $0x198] sm:$0xff]
    %v2450 = vld [vmem:[#allocation5 + $0x1a0] sm:$0xff]
    %v2451 = vld [vmem:[#allocation5 + $0x1a8] sm:$0xff]
    %v2452 = vld [vmem:[#allocation5 + $0x1b0] sm:$0xff]
    %v2453 = vld [vmem:[#allocation5 + $0x1b8] sm:$0xff]
    %v2454 = vld [vmem:[#allocation5 + $0x1c0] sm:$0xff]
    %v2455 = vld [vmem:[#allocation5 + $0x1c8] sm:$0xff]
    %v2456 = vld [vmem:[#allocation5 + $0x1d0] sm:$0xff]
    %v2457 = vld [vmem:[#allocation5 + $0x1d8] sm:$0xff]
    %v2458 = vld [vmem:[#allocation5 + $0x1e0] sm:$0xff]
    %v2459 = vld [vmem:[#allocation5 + $0x1e8] sm:$0xff]
    %v2460 = vld [vmem:[#allocation5 + $0x1f0] sm:$0xff]
    %v2461 = vld [vmem:[#allocation5 + $0x1f8] sm:$0xff]
    %2462 = vmatprep.subr.mxu0 %v2429
    %2463 = vmatpush1.msra.mxu0 %v2428
    %2464 = vmatprep.subr.mxu0 %v2427
    %2465 = vmatpush1.msra.mxu0 %v2426
    %2466 = vmatprep.subr.mxu0 %v2425
    %2467 = vmatpush1.msra.mxu0 %v2424
    %2468 = vmatprep.subr.mxu0 %v2423
    %2469 = vmatpush1.msra.mxu0 %v2422
    %2470 = vmatprep.subr.mxu0 %v2421
    %2471 = vmatpush1.msra.mxu0 %v2420
    %2472 = vmatprep.subr.mxu0 %v2419
    %2473 = vmatpush1.msra.mxu0 %v2418
    %2474 = vmatprep.subr.mxu0 %v2417
    %2475 = vmatpush1.msra.mxu0 %v2416
    %2476 = vmatprep.subr.mxu0 %v2415
    %2477 = vmatpush1.msra.mxu0 %v2414
    %2478 = vmatprep.subr.mxu0 %v2413
    %2479 = vmatpush1.msra.mxu0 %v2412
    %2480 = vmatprep.subr.mxu0 %v2411
    %2481 = vmatpush1.msra.mxu0 %v2410
    %2482 = vmatprep.subr.mxu0 %v2409
    %2483 = vmatpush1.msra.mxu0 %v2408
    %2484 = vmatprep.subr.mxu0 %v2407
    %2485 = vmatpush1.msra.mxu0 %v2406
    %2486 = vmatprep.subr.mxu0 %v2405
    %2487 = vmatpush1.msra.mxu0 %v2404
    %2488 = vmatprep.subr.mxu0 %v2403
    %2489 = vmatpush1.msra.mxu0 %v2402
    %2490 = vmatprep.subr.mxu0 %v2401
    %2491 = vmatpush1.msra.mxu0 %v2400
    %2492 = vmatprep.subr.mxu0 %v2399
    %2493 = vmatpush1.msra.mxu0 %v2398
    %2494 = vmatprep.subr.mxu0 %v2461
    %2495 = vmatpush2.msra.mxu0 %v2460
    %2496 = vmatprep.subr.mxu0 %v2459
    %2497 = vmatpush2.msra.mxu0 %v2458
    %2498 = vmatprep.subr.mxu0 %v2457
    %2499 = vmatpush2.msra.mxu0 %v2456
    %2500 = vmatprep.subr.mxu0 %v2455
    %2501 = vmatpush2.msra.mxu0 %v2454
    %2502 = vmatprep.subr.mxu0 %v2453
    %2503 = vmatpush2.msra.mxu0 %v2452
    %2504 = vmatprep.subr.mxu0 %v2451
    %2505 = vmatpush2.msra.mxu0 %v2450
    %2506 = vmatprep.subr.mxu0 %v2449
    %2507 = vmatpush2.msra.mxu0 %v2448
    %2508 = vmatprep.subr.mxu0 %v2447
    %2509 = vmatpush2.msra.mxu0 %v2446
    %2510 = vmatprep.subr.mxu0 %v2445
    %2511 = vmatpush2.msra.mxu0 %v2444
    %2512 = vmatprep.subr.mxu0 %v2443
    %2513 = vmatpush2.msra.mxu0 %v2442
    %2514 = vmatprep.subr.mxu0 %v2441
    %2515 = vmatpush2.msra.mxu0 %v2440
    %2516 = vmatprep.subr.mxu0 %v2439
    %2517 = vmatpush2.msra.mxu0 %v2438
    %2518 = vmatprep.subr.mxu0 %v2437
    %2519 = vmatpush2.msra.mxu0 %v2436
    %2520 = vmatprep.subr.mxu0 %v2435
    %2521 = vmatpush2.msra.mxu0 %v2434
    %2522 = vmatprep.subr.mxu0 %v2433
    %2523 = vmatpush2.msra.mxu0 %v2432
    %2524 = vmatprep.subr.mxu0 %v2431
    %2525 = vmatpush2.msra.mxu0 %v2430
    %2526 = vmatprep.mubr.f32.mxu0 %v2396
    %2527 = vmatmul.mubr.f32.gmra.mxu0 %v2394
    %v2528 = vpop.f32.mrf.mxu0
    %v2529 = vadd.f32 0.0, %v2528
    %v2530 = vpop.f32.mrf.mxu0
    %v2531 = vadd.f32 0.0, %v2530
    %2532 = vdwg.mxu0
    %v2533 = vld [vmem:[%s682] sm:$0xff]
    %v2534 = vld [vmem:[%s682 + $0x8] sm:$0xff]
    %v2535 = vld [vmem:[%s682 + $0x10] sm:$0xff]
    %v2536 = vld [vmem:[%s682 + $0x18] sm:$0xff]
    %v2537 = vld [vmem:[%s682 + $0x20] sm:$0xff]
    %v2538 = vld [vmem:[%s682 + $0x28] sm:$0xff]
    %v2539 = vld [vmem:[%s682 + $0x30] sm:$0xff]
    %v2540 = vld [vmem:[%s682 + $0x38] sm:$0xff]
    %v2541 = vld [vmem:[%s682 + $0x40] sm:$0xff]
    %v2542 = vld [vmem:[%s682 + $0x48] sm:$0xff]
    %v2543 = vld [vmem:[%s682 + $0x50] sm:$0xff]
    %v2544 = vld [vmem:[%s682 + $0x58] sm:$0xff]
    %v2545 = vld [vmem:[%s682 + $0x60] sm:$0xff]
    %v2546 = vld [vmem:[%s682 + $0x68] sm:$0xff]
    %v2547 = vld [vmem:[%s682 + $0x70] sm:$0xff]
    %v2548 = vld [vmem:[%s682 + $0x78] sm:$0xff]
    %v2549 = vld [vmem:[%s682 + $0x80] sm:$0xff]
    %v2550 = vld [vmem:[%s682 + $0x88] sm:$0xff]
    %v2551 = vld [vmem:[%s682 + $0x90] sm:$0xff]
    %v2552 = vld [vmem:[%s682 + $0x98] sm:$0xff]
    %v2553 = vld [vmem:[%s682 + $0xa0] sm:$0xff]
    %v2554 = vld [vmem:[%s682 + $0xa8] sm:$0xff]
    %v2555 = vld [vmem:[%s682 + $0xb0] sm:$0xff]
    %v2556 = vld [vmem:[%s682 + $0xb8] sm:$0xff]
    %v2557 = vld [vmem:[%s682 + $0xc0] sm:$0xff]
    %v2558 = vld [vmem:[%s682 + $0xc8] sm:$0xff]
    %v2559 = vld [vmem:[%s682 + $0xd0] sm:$0xff]
    %v2560 = vld [vmem:[%s682 + $0xd8] sm:$0xff]
    %v2561 = vld [vmem:[%s682 + $0xe0] sm:$0xff]
    %v2562 = vld [vmem:[%s682 + $0xe8] sm:$0xff]
    %v2563 = vld [vmem:[%s682 + $0xf0] sm:$0xff]
    %v2564 = vld [vmem:[%s682 + $0xf8] sm:$0xff]
    %v2565 = vld [vmem:[%s682 + $0x100] sm:$0xff]
    %v2566 = vld [vmem:[%s682 + $0x108] sm:$0xff]
    %v2567 = vld [vmem:[%s682 + $0x110] sm:$0xff]
    %v2568 = vld [vmem:[%s682 + $0x118] sm:$0xff]
    %v2569 = vld [vmem:[%s682 + $0x120] sm:$0xff]
    %v2570 = vld [vmem:[%s682 + $0x128] sm:$0xff]
    %v2571 = vld [vmem:[%s682 + $0x130] sm:$0xff]
    %v2572 = vld [vmem:[%s682 + $0x138] sm:$0xff]
    %v2573 = vld [vmem:[%s682 + $0x140] sm:$0xff]
    %v2574 = vld [vmem:[%s682 + $0x148] sm:$0xff]
    %v2575 = vld [vmem:[%s682 + $0x150] sm:$0xff]
    %v2576 = vld [vmem:[%s682 + $0x158] sm:$0xff]
    %v2577 = vld [vmem:[%s682 + $0x160] sm:$0xff]
    %v2578 = vld [vmem:[%s682 + $0x168] sm:$0xff]
    %v2579 = vld [vmem:[%s682 + $0x170] sm:$0xff]
    %v2580 = vld [vmem:[%s682 + $0x178] sm:$0xff]
    %v2581 = vld [vmem:[%s682 + $0x180] sm:$0xff]
    %v2582 = vld [vmem:[%s682 + $0x188] sm:$0xff]
    %v2583 = vld [vmem:[%s682 + $0x190] sm:$0xff]
    %v2584 = vld [vmem:[%s682 + $0x198] sm:$0xff]
    %v2585 = vld [vmem:[%s682 + $0x1a0] sm:$0xff]
    %v2586 = vld [vmem:[%s682 + $0x1a8] sm:$0xff]
    %v2587 = vld [vmem:[%s682 + $0x1b0] sm:$0xff]
    %v2588 = vld [vmem:[%s682 + $0x1b8] sm:$0xff]
    %v2589 = vld [vmem:[%s682 + $0x1c0] sm:$0xff]
    %v2590 = vld [vmem:[%s682 + $0x1c8] sm:$0xff]
    %v2591 = vld [vmem:[%s682 + $0x1d0] sm:$0xff]
    %v2592 = vld [vmem:[%s682 + $0x1d8] sm:$0xff]
    %v2593 = vld [vmem:[%s682 + $0x1e0] sm:$0xff]
    %v2594 = vld [vmem:[%s682 + $0x1e8] sm:$0xff]
    %v2595 = vld [vmem:[%s682 + $0x1f0] sm:$0xff]
    %v2596 = vld [vmem:[%s682 + $0x1f8] sm:$0xff]
    %2597 = vmatprep.subr.mxu0 %v2564
    %2598 = vmatpush1.msra.mxu0 %v2563
    %2599 = vmatprep.subr.mxu0 %v2562
    %2600 = vmatpush1.msra.mxu0 %v2561
    %2601 = vmatprep.subr.mxu0 %v2560
    %2602 = vmatpush1.msra.mxu0 %v2559
    %2603 = vmatprep.subr.mxu0 %v2558
    %2604 = vmatpush1.msra.mxu0 %v2557
    %2605 = vmatprep.subr.mxu0 %v2556
    %2606 = vmatpush1.msra.mxu0 %v2555
    %2607 = vmatprep.subr.mxu0 %v2554
    %2608 = vmatpush1.msra.mxu0 %v2553
    %2609 = vmatprep.subr.mxu0 %v2552
    %2610 = vmatpush1.msra.mxu0 %v2551
    %2611 = vmatprep.subr.mxu0 %v2550
    %2612 = vmatpush1.msra.mxu0 %v2549
    %2613 = vmatprep.subr.mxu0 %v2548
    %2614 = vmatpush1.msra.mxu0 %v2547
    %2615 = vmatprep.subr.mxu0 %v2546
    %2616 = vmatpush1.msra.mxu0 %v2545
    %2617 = vmatprep.subr.mxu0 %v2544
    %2618 = vmatpush1.msra.mxu0 %v2543
    %2619 = vmatprep.subr.mxu0 %v2542
    %2620 = vmatpush1.msra.mxu0 %v2541
    %2621 = vmatprep.subr.mxu0 %v2540
    %2622 = vmatpush1.msra.mxu0 %v2539
    %2623 = vmatprep.subr.mxu0 %v2538
    %2624 = vmatpush1.msra.mxu0 %v2537
    %2625 = vmatprep.subr.mxu0 %v2536
    %2626 = vmatpush1.msra.mxu0 %v2535
    %2627 = vmatprep.subr.mxu0 %v2534
    %2628 = vmatpush1.msra.mxu0 %v2533
    %2629 = vmatprep.subr.mxu0 %v2596
    %2630 = vmatpush2.msra.mxu0 %v2595
    %2631 = vmatprep.subr.mxu0 %v2594
    %2632 = vmatpush2.msra.mxu0 %v2593
    %2633 = vmatprep.subr.mxu0 %v2592
    %2634 = vmatpush2.msra.mxu0 %v2591
    %2635 = vmatprep.subr.mxu0 %v2590
    %2636 = vmatpush2.msra.mxu0 %v2589
    %2637 = vmatprep.subr.mxu0 %v2588
    %2638 = vmatpush2.msra.mxu0 %v2587
    %2639 = vmatprep.subr.mxu0 %v2586
    %2640 = vmatpush2.msra.mxu0 %v2585
    %2641 = vmatprep.subr.mxu0 %v2584
    %2642 = vmatpush2.msra.mxu0 %v2583
    %2643 = vmatprep.subr.mxu0 %v2582
    %2644 = vmatpush2.msra.mxu0 %v2581
    %2645 = vmatprep.subr.mxu0 %v2580
    %2646 = vmatpush2.msra.mxu0 %v2579
    %2647 = vmatprep.subr.mxu0 %v2578
    %2648 = vmatpush2.msra.mxu0 %v2577
    %2649 = vmatprep.subr.mxu0 %v2576
    %2650 = vmatpush2.msra.mxu0 %v2575
    %2651 = vmatprep.subr.mxu0 %v2574
    %2652 = vmatpush2.msra.mxu0 %v2573
    %2653 = vmatprep.subr.mxu0 %v2572
    %2654 = vmatpush2.msra.mxu0 %v2571
    %2655 = vmatprep.subr.mxu0 %v2570
    %2656 = vmatpush2.msra.mxu0 %v2569
    %2657 = vmatprep.subr.mxu0 %v2568
    %2658 = vmatpush2.msra.mxu0 %v2567
    %2659 = vmatprep.subr.mxu0 %v2566
    %2660 = vmatpush2.msra.mxu0 %v2565
    %2661 = vmatprep.mubr.f32.mxu0 %v2396
    %2662 = vmatmul.mubr.f32.gmra.mxu0 %v2394
    %v2663 = vpop.f32.mrf.mxu0
    %v2664 = vadd.f32 0.0, %v2663
    %v2665 = vpop.f32.mrf.mxu0
    %v2666 = vadd.f32 0.0, %v2665
    %2667 = vdwg.mxu0
    %v2668 = vmul.f32 %v2312, %v2529
    %v2669 = vmul.f32 %v2314, %v2531
    %v2670 = vmul.f32 %v2312, %v2664
    %v2671 = vmul.f32 %v2314, %v2666
    %2672 = vmatprep.subr.mxu0 %v2429
    %2673 = vmatpush1.msra.mxu0 %v2428
    %2674 = vmatprep.subr.mxu0 %v2427
    %2675 = vmatpush1.msra.mxu0 %v2426
    %2676 = vmatprep.subr.mxu0 %v2425
    %2677 = vmatpush1.msra.mxu0 %v2424
    %2678 = vmatprep.subr.mxu0 %v2423
    %2679 = vmatpush1.msra.mxu0 %v2422
    %2680 = vmatprep.subr.mxu0 %v2421
    %2681 = vmatpush1.msra.mxu0 %v2420
    %2682 = vmatprep.subr.mxu0 %v2419
    %2683 = vmatpush1.msra.mxu0 %v2418
    %2684 = vmatprep.subr.mxu0 %v2417
    %2685 = vmatpush1.msra.mxu0 %v2416
    %2686 = vmatprep.subr.mxu0 %v2415
    %2687 = vmatpush1.msra.mxu0 %v2414
    %2688 = vmatprep.subr.mxu0 %v2413
    %2689 = vmatpush1.msra.mxu0 %v2412
    %2690 = vmatprep.subr.mxu0 %v2411
    %2691 = vmatpush1.msra.mxu0 %v2410
    %2692 = vmatprep.subr.mxu0 %v2409
    %2693 = vmatpush1.msra.mxu0 %v2408
    %2694 = vmatprep.subr.mxu0 %v2407
    %2695 = vmatpush1.msra.mxu0 %v2406
    %2696 = vmatprep.subr.mxu0 %v2405
    %2697 = vmatpush1.msra.mxu0 %v2404
    %2698 = vmatprep.subr.mxu0 %v2403
    %2699 = vmatpush1.msra.mxu0 %v2402
    %2700 = vmatprep.subr.mxu0 %v2401
    %2701 = vmatpush1.msra.mxu0 %v2400
    %2702 = vmatprep.subr.mxu0 %v2399
    %2703 = vmatpush1.msra.mxu0 %v2398
    %2704 = vmatprep.subr.mxu0 %v2461
    %2705 = vmatpush2.msra.mxu0 %v2460
    %2706 = vmatprep.subr.mxu0 %v2459
    %2707 = vmatpush2.msra.mxu0 %v2458
    %2708 = vmatprep.subr.mxu0 %v2457
    %2709 = vmatpush2.msra.mxu0 %v2456
    %2710 = vmatprep.subr.mxu0 %v2455
    %2711 = vmatpush2.msra.mxu0 %v2454
    %2712 = vmatprep.subr.mxu0 %v2453
    %2713 = vmatpush2.msra.mxu0 %v2452
    %2714 = vmatprep.subr.mxu0 %v2451
    %2715 = vmatpush2.msra.mxu0 %v2450
    %2716 = vmatprep.subr.mxu0 %v2449
    %2717 = vmatpush2.msra.mxu0 %v2448
    %2718 = vmatprep.subr.mxu0 %v2447
    %2719 = vmatpush2.msra.mxu0 %v2446
    %2720 = vmatprep.subr.mxu0 %v2445
    %2721 = vmatpush2.msra.mxu0 %v2444
    %2722 = vmatprep.subr.mxu0 %v2443
    %2723 = vmatpush2.msra.mxu0 %v2442
    %2724 = vmatprep.subr.mxu0 %v2441
    %2725 = vmatpush2.msra.mxu0 %v2440
    %2726 = vmatprep.subr.mxu0 %v2439
    %2727 = vmatpush2.msra.mxu0 %v2438
    %2728 = vmatprep.subr.mxu0 %v2437
    %2729 = vmatpush2.msra.mxu0 %v2436
    %2730 = vmatprep.subr.mxu0 %v2435
    %2731 = vmatpush2.msra.mxu0 %v2434
    %2732 = vmatprep.subr.mxu0 %v2433
    %2733 = vmatpush2.msra.mxu0 %v2432
    %2734 = vmatprep.subr.mxu0 %v2431
    %2735 = vmatpush2.msra.mxu0 %v2430
    %2736 = vmatprep.mubr.f32.mxu0 %v2669
    %2737 = vmatmul.mubr.f32.gmra.mxu0 %v2668
    %v2738 = vpop.f32.mrf.mxu0
    %v2739 = vadd.f32 0.0, %v2738
    %v2740 = vpop.f32.mrf.mxu0
    %v2741 = vadd.f32 0.0, %v2740
    %2742 = vmatprep.mubr.f32.mxu0 %v2671
    %2743 = vmatmul.mubr.f32.gmra.mxu0 %v2670
    %v2744 = vpop.f32.mrf.mxu0
    %v2745 = vadd.f32 0.0, %v2744
    %v2746 = vpop.f32.mrf.mxu0
    %v2747 = vadd.f32 0.0, %v2746
    %2748 = vdwg.mxu0
    %2749 = vmatprep.subr.mxu0 %v2564
    %2750 = vmatpush1.msra.mxu0 %v2563
    %2751 = vmatprep.subr.mxu0 %v2562
    %2752 = vmatpush1.msra.mxu0 %v2561
    %2753 = vmatprep.subr.mxu0 %v2560
    %2754 = vmatpush1.msra.mxu0 %v2559
    %2755 = vmatprep.subr.mxu0 %v2558
    %2756 = vmatpush1.msra.mxu0 %v2557
    %2757 = vmatprep.subr.mxu0 %v2556
    %2758 = vmatpush1.msra.mxu0 %v2555
    %2759 = vmatprep.subr.mxu0 %v2554
    %2760 = vmatpush1.msra.mxu0 %v2553
    %2761 = vmatprep.subr.mxu0 %v2552
    %2762 = vmatpush1.msra.mxu0 %v2551
    %2763 = vmatprep.subr.mxu0 %v2550
    %2764 = vmatpush1.msra.mxu0 %v2549
    %2765 = vmatprep.subr.mxu0 %v2548
    %2766 = vmatpush1.msra.mxu0 %v2547
    %2767 = vmatprep.subr.mxu0 %v2546
    %2768 = vmatpush1.msra.mxu0 %v2545
    %2769 = vmatprep.subr.mxu0 %v2544
    %2770 = vmatpush1.msra.mxu0 %v2543
    %2771 = vmatprep.subr.mxu0 %v2542
    %2772 = vmatpush1.msra.mxu0 %v2541
    %2773 = vmatprep.subr.mxu0 %v2540
    %2774 = vmatpush1.msra.mxu0 %v2539
    %2775 = vmatprep.subr.mxu0 %v2538
    %2776 = vmatpush1.msra.mxu0 %v2537
    %2777 = vmatprep.subr.mxu0 %v2536
    %2778 = vmatpush1.msra.mxu0 %v2535
    %2779 = vmatprep.subr.mxu0 %v2534
    %2780 = vmatpush1.msra.mxu0 %v2533
    %2781 = vmatprep.subr.mxu0 %v2596
    %2782 = vmatpush2.msra.mxu0 %v2595
    %2783 = vmatprep.subr.mxu0 %v2594
    %2784 = vmatpush2.msra.mxu0 %v2593
    %2785 = vmatprep.subr.mxu0 %v2592
    %2786 = vmatpush2.msra.mxu0 %v2591
    %2787 = vmatprep.subr.mxu0 %v2590
    %2788 = vmatpush2.msra.mxu0 %v2589
    %2789 = vmatprep.subr.mxu0 %v2588
    %2790 = vmatpush2.msra.mxu0 %v2587
    %2791 = vmatprep.subr.mxu0 %v2586
    %2792 = vmatpush2.msra.mxu0 %v2585
    %2793 = vmatprep.subr.mxu0 %v2584
    %2794 = vmatpush2.msra.mxu0 %v2583
    %2795 = vmatprep.subr.mxu0 %v2582
    %2796 = vmatpush2.msra.mxu0 %v2581
    %2797 = vmatprep.subr.mxu0 %v2580
    %2798 = vmatpush2.msra.mxu0 %v2579
    %2799 = vmatprep.subr.mxu0 %v2578
    %2800 = vmatpush2.msra.mxu0 %v2577
    %2801 = vmatprep.subr.mxu0 %v2576
    %2802 = vmatpush2.msra.mxu0 %v2575
    %2803 = vmatprep.subr.mxu0 %v2574
    %2804 = vmatpush2.msra.mxu0 %v2573
    %2805 = vmatprep.subr.mxu0 %v2572
    %2806 = vmatpush2.msra.mxu0 %v2571
    %2807 = vmatprep.subr.mxu0 %v2570
    %2808 = vmatpush2.msra.mxu0 %v2569
    %2809 = vmatprep.subr.mxu0 %v2568
    %2810 = vmatpush2.msra.mxu0 %v2567
    %2811 = vmatprep.subr.mxu0 %v2566
    %2812 = vmatpush2.msra.mxu0 %v2565
    %2813 = vmatprep.mubr.f32.mxu0 %v2669
    %2814 = vmatmul.mubr.f32.gmra.mxu0 %v2668
    %v2815 = vpop.f32.mrf.mxu0
    %v2816 = vadd.f32 0.0, %v2815
    %v2817 = vpop.f32.mrf.mxu0
    %v2818 = vadd.f32 0.0, %v2817
    %2819 = vmatprep.mubr.f32.mxu0 %v2671
    %2820 = vmatmul.mubr.f32.gmra.mxu0 %v2670
    %v2821 = vpop.f32.mrf.mxu0
    %v2822 = vadd.f32 0.0, %v2821
    %v2823 = vpop.f32.mrf.mxu0
    %v2824 = vadd.f32 0.0, %v2823
    %2825 = vdwg.mxu0
    %v2826 = vadd.f32 %v2739, %v2822
    %v2827 = vadd.f32 %v2741, %v2824
    %v2828 = vmul.f32 %v2826, 0.00390625
    %v2829 = vmul.f32 %v2827, 0.00390625
    %v2830 = vsub.f32 %v2745, %v2816
    %v2831 = vsub.f32 %v2747, %v2818
    %v2832 = vmul.f32 %v2830, 0.00390625
    %v2833 = vmul.f32 %v2831, 0.00390625
    %v2834 = vmul.f32 %v2828, %v2828
    %v2835 = vmul.f32 %v2829, %v2829
    %v2836 = vmul.f32 %v2832, %v2832
    %v2837 = vmul.f32 %v2833, %v2833
    %v2838 = vadd.f32 %v2834, %v2836
    %v2839 = vadd.f32 %v2835, %v2837
    %v2840 = vrsqrt.pop %v2838
    %v2841 = vmul.f32 %v2838, %v2840
    %vm2842 = vcmp.eq.f32.partialorder %v2838, inf
    %v2843 = vsel %vm2842, %v2838, %v2841
    %vm2844 = vcmp.eq.f32.partialorder %v2838, 0.0
    %v2845 = vand.u32 %v2838, 2147483648
    %v2846 = vsel %vm2844, %v2845, %v2843
    %v2847 = vrsqrt.pop %v2839
    %v2848 = vmul.f32 %v2839, %v2847
    %vm2849 = vcmp.eq.f32.partialorder %v2839, inf
    %v2850 = vsel %vm2849, %v2839, %v2848
    %vm2851 = vcmp.eq.f32.partialorder %v2839, 0.0
    %v2852 = vand.u32 %v2839, 2147483648
    %v2853 = vsel %vm2851, %v2852, %v2850
    %s2854 = scalar_lea.vmem %s13, 80
    %v2855 = vld [vmem:[%s2854] sm:$0xff]
    %2857 = vset.pattern.permute.xlu0 0
    %2858 = vperm.xlu0 %2857, %v2855
    %v2859 = vpop.permute.xlu0 %2858
    %v2861 = vmul.f32 %v2846, %v2859
    %v2862 = vmul.f32 %v2853, %v2859
    %s2863 = scalar_lea.vmem %s13, 88
    %v2864 = vld [vmem:[%s2863] sm:$0xff]
    %2866 = vset.pattern.permute.xlu0 0
    %2867 = vperm.xlu0 %2866, %v2864
    %v2868 = vpop.permute.xlu0 %2867
    %v2870 = vmul.f32 %v2232, %v2868
    %v2871 = vmul.f32 %v2233, %v2868
    %v2872 = vadd.f32 %v2861, %v2870
    %v2873 = vadd.f32 %v2862, %v2871
    %s2874 = sshll.u32 %s1093, 4
    %2875 = dma.done %s80, %s2874
    %s2876 = scalar_lea.vmem %s13, 32
    %v2877 = vld [vmem:[%s2876] sm:$0xff]
    %v2878 = vpack.c.bf16 %v461, %v461
    %v2879 = vpack.c.bf16 %v462, %v462
    %v2880 = vld [vmem:[#allocation3] sm:$0xff]
    %v2881 = vld [vmem:[#allocation3 + $0x8] sm:$0xff]
    %v2882 = vld [vmem:[#allocation3 + $0x10] sm:$0xff]
    %v2883 = vld [vmem:[#allocation3 + $0x18] sm:$0xff]
    %v2884 = vld [vmem:[#allocation3 + $0x20] sm:$0xff]
    %v2885 = vld [vmem:[#allocation3 + $0x28] sm:$0xff]
    %v2886 = vld [vmem:[#allocation3 + $0x30] sm:$0xff]
    %v2887 = vld [vmem:[#allocation3 + $0x38] sm:$0xff]
    %v2888 = vld [vmem:[#allocation3 + $0x40] sm:$0xff]
    %v2889 = vld [vmem:[#allocation3 + $0x48] sm:$0xff]
    %v2890 = vld [vmem:[#allocation3 + $0x50] sm:$0xff]
    %v2891 = vld [vmem:[#allocation3 + $0x58] sm:$0xff]
    %v2892 = vld [vmem:[#allocation3 + $0x60] sm:$0xff]
    %v2893 = vld [vmem:[#allocation3 + $0x68] sm:$0xff]
    %v2894 = vld [vmem:[#allocation3 + $0x70] sm:$0xff]
    %v2895 = vld [vmem:[#allocation3 + $0x78] sm:$0xff]
    %v2896 = vld [vmem:[#allocation3 + $0x80] sm:$0xff]
    %v2897 = vld [vmem:[#allocation3 + $0x88] sm:$0xff]
    %v2898 = vld [vmem:[#allocation3 + $0x90] sm:$0xff]
    %v2899 = vld [vmem:[#allocation3 + $0x98] sm:$0xff]
    %v2900 = vld [vmem:[#allocation3 + $0xa0] sm:$0xff]
    %v2901 = vld [vmem:[#allocation3 + $0xa8] sm:$0xff]
    %v2902 = vld [vmem:[#allocation3 + $0xb0] sm:$0xff]
    %v2903 = vld [vmem:[#allocation3 + $0xb8] sm:$0xff]
    %v2904 = vld [vmem:[#allocation3 + $0xc0] sm:$0xff]
    %v2905 = vld [vmem:[#allocation3 + $0xc8] sm:$0xff]
    %v2906 = vld [vmem:[#allocation3 + $0xd0] sm:$0xff]
    %v2907 = vld [vmem:[#allocation3 + $0xd8] sm:$0xff]
    %v2908 = vld [vmem:[#allocation3 + $0xe0] sm:$0xff]
    %v2909 = vld [vmem:[#allocation3 + $0xe8] sm:$0xff]
    %v2910 = vld [vmem:[#allocation3 + $0xf0] sm:$0xff]
    %v2911 = vld [vmem:[#allocation3 + $0xf8] sm:$0xff]
    %v2944 = vunpack.c.l.b16 %v2880
    %v2945 = vunpack.c.h.b16 %v2880
    %v2946 = vunpack.c.l.b16 %v2881
    %v2947 = vunpack.c.h.b16 %v2881
    %v2948 = vunpack.c.l.b16 %v2882
    %v2949 = vunpack.c.h.b16 %v2882
    %v2950 = vunpack.c.l.b16 %v2883
    %v2951 = vunpack.c.h.b16 %v2883
    %v2952 = vunpack.c.l.b16 %v2884
    %v2953 = vunpack.c.h.b16 %v2884
    %v2954 = vunpack.c.l.b16 %v2885
    %v2955 = vunpack.c.h.b16 %v2885
    %v2956 = vunpack.c.l.b16 %v2886
    %v2957 = vunpack.c.h.b16 %v2886
    %v2958 = vunpack.c.l.b16 %v2887
    %v2959 = vunpack.c.h.b16 %v2887
    %v2960 = vunpack.c.l.b16 %v2888
    %v2961 = vunpack.c.h.b16 %v2888
    %v2962 = vunpack.c.l.b16 %v2889
    %v2963 = vunpack.c.h.b16 %v2889
    %v2964 = vunpack.c.l.b16 %v2890
    %v2965 = vunpack.c.h.b16 %v2890
    %v2966 = vunpack.c.l.b16 %v2891
    %v2967 = vunpack.c.h.b16 %v2891
    %v2968 = vunpack.c.l.b16 %v2892
    %v2969 = vunpack.c.h.b16 %v2892
    %v2970 = vunpack.c.l.b16 %v2893
    %v2971 = vunpack.c.h.b16 %v2893
    %v2972 = vunpack.c.l.b16 %v2894
    %v2973 = vunpack.c.h.b16 %v2894
    %v2974 = vunpack.c.l.b16 %v2895
    %v2975 = vunpack.c.h.b16 %v2895
    %v2976 = vunpack.c.l.b16 %v2896
    %v2977 = vunpack.c.h.b16 %v2896
    %v2978 = vunpack.c.l.b16 %v2897
    %v2979 = vunpack.c.h.b16 %v2897
    %v2980 = vunpack.c.l.b16 %v2898
    %v2981 = vunpack.c.h.b16 %v2898
    %v2982 = vunpack.c.l.b16 %v2899
    %v2983 = vunpack.c.h.b16 %v2899
    %v2984 = vunpack.c.l.b16 %v2900
    %v2985 = vunpack.c.h.b16 %v2900
    %v2986 = vunpack.c.l.b16 %v2901
    %v2987 = vunpack.c.h.b16 %v2901
    %v2988 = vunpack.c.l.b16 %v2902
    %v2989 = vunpack.c.h.b16 %v2902
    %v2990 = vunpack.c.l.b16 %v2903
    %v2991 = vunpack.c.h.b16 %v2903
    %v2992 = vunpack.c.l.b16 %v2904
    %v2993 = vunpack.c.h.b16 %v2904
    %v2994 = vunpack.c.l.b16 %v2905
    %v2995 = vunpack.c.h.b16 %v2905
    %v2996 = vunpack.c.l.b16 %v2906
    %v2997 = vunpack.c.h.b16 %v2906
    %v2998 = vunpack.c.l.b16 %v2907
    %v2999 = vunpack.c.h.b16 %v2907
    %v3000 = vunpack.c.l.b16 %v2908
    %v3001 = vunpack.c.h.b16 %v2908
    %v3002 = vunpack.c.l.b16 %v2909
    %v3003 = vunpack.c.h.b16 %v2909
    %v3004 = vunpack.c.l.b16 %v2910
    %v3005 = vunpack.c.h.b16 %v2910
    %v3006 = vunpack.c.l.b16 %v2911
    %v3007 = vunpack.c.h.b16 %v2911
    %v3008 = vpack.c.b16 %v2946, %v2944
    %v3009 = vpack.c.b16 %v2947, %v2945
    %v3010 = vpack.c.b16 %v2950, %v2948
    %v3011 = vpack.c.b16 %v2951, %v2949
    %v3012 = vpack.c.b16 %v2954, %v2952
    %v3013 = vpack.c.b16 %v2955, %v2953
    %v3014 = vpack.c.b16 %v2958, %v2956
    %v3015 = vpack.c.b16 %v2959, %v2957
    %v3016 = vpack.c.b16 %v2962, %v2960
    %v3017 = vpack.c.b16 %v2963, %v2961
    %v3018 = vpack.c.b16 %v2966, %v2964
    %v3019 = vpack.c.b16 %v2967, %v2965
    %v3020 = vpack.c.b16 %v2970, %v2968
    %v3021 = vpack.c.b16 %v2971, %v2969
    %v3022 = vpack.c.b16 %v2974, %v2972
    %v3023 = vpack.c.b16 %v2975, %v2973
    %v3024 = vpack.c.b16 %v2978, %v2976
    %v3025 = vpack.c.b16 %v2979, %v2977
    %v3026 = vpack.c.b16 %v2982, %v2980
    %v3027 = vpack.c.b16 %v2983, %v2981
    %v3028 = vpack.c.b16 %v2986, %v2984
    %v3029 = vpack.c.b16 %v2987, %v2985
    %v3030 = vpack.c.b16 %v2990, %v2988
    %v3031 = vpack.c.b16 %v2991, %v2989
    %v3032 = vpack.c.b16 %v2994, %v2992
    %v3033 = vpack.c.b16 %v2995, %v2993
    %v3034 = vpack.c.b16 %v2998, %v2996
    %v3035 = vpack.c.b16 %v2999, %v2997
    %v3036 = vpack.c.b16 %v3002, %v3000
    %v3037 = vpack.c.b16 %v3003, %v3001
    %v3038 = vpack.c.b16 %v3006, %v3004
    %v3039 = vpack.c.b16 %v3007, %v3005
    %3072 = vmatprep.subr.bf16.mxu0 %v3023
    %3073 = vmatpush1.bf16.msra.mxu0 %v3022
    %3074 = vmatprep.subr.bf16.mxu0 %v3021
    %3075 = vmatpush1.bf16.msra.mxu0 %v3020
    %3076 = vmatprep.subr.bf16.mxu0 %v3019
    %3077 = vmatpush1.bf16.msra.mxu0 %v3018
    %3078 = vmatprep.subr.bf16.mxu0 %v3017
    %3079 = vmatpush1.bf16.msra.mxu0 %v3016
    %3080 = vmatprep.subr.bf16.mxu0 %v3015
    %3081 = vmatpush1.bf16.msra.mxu0 %v3014
    %3082 = vmatprep.subr.bf16.mxu0 %v3013
    %3083 = vmatpush1.bf16.msra.mxu0 %v3012
    %3084 = vmatprep.subr.bf16.mxu0 %v3011
    %3085 = vmatpush1.bf16.msra.mxu0 %v3010
    %3086 = vmatprep.subr.bf16.mxu0 %v3009
    %3087 = vmatpush1.bf16.msra.mxu0 %v3008
    %3088 = vmatprep.subr.bf16.mxu0 %v3039
    %3089 = vmatpush2.bf16.msra.mxu0 %v3038
    %3090 = vmatprep.subr.bf16.mxu0 %v3037
    %3091 = vmatpush2.bf16.msra.mxu0 %v3036
    %3092 = vmatprep.subr.bf16.mxu0 %v3035
    %3093 = vmatpush2.bf16.msra.mxu0 %v3034
    %3094 = vmatprep.subr.bf16.mxu0 %v3033
    %3095 = vmatpush2.bf16.msra.mxu0 %v3032
    %3096 = vmatprep.subr.bf16.mxu0 %v3031
    %3097 = vmatpush2.bf16.msra.mxu0 %v3030
    %3098 = vmatprep.subr.bf16.mxu0 %v3029
    %3099 = vmatpush2.bf16.msra.mxu0 %v3028
    %3100 = vmatprep.subr.bf16.mxu0 %v3027
    %3101 = vmatpush2.bf16.msra.mxu0 %v3026
    %3102 = vmatprep.subr.bf16.mxu0 %v3025
    %3103 = vmatpush2.bf16.msra.mxu0 %v3024
    %3104 = vmatprep.mubr.bf16.mxu0 %v2879
    %3105 = vmatmul.mubr.bf16.gmra.mxu0 %v2878
    %v3106 = vpop.f32.mrf.mxu0
    %v3107 = vadd.f32 0.0, %v3106
    %v3108 = vpop.f32.mrf.mxu0
    %v3109 = vadd.f32 0.0, %v3108
    %v3110 = vpop.f32.mrf.mxu0
    %v3111 = vpop.f32.mrf.mxu0
    %3112 = vdwg.mxu0
    %3114 = vset.pattern.permute.xlu0 0
    %3115 = vperm.xlu0 %3114, %v2877
    %v3116 = vpop.permute.xlu0 %3115
    %v3118 = vadd.f32 %v3116, %v3107
    %v3119 = vadd.f32 %v3116, %v3109
    %s3120 = scalar_lea.vmem [#allocation3], 256
    %v3121 = vld [vmem:[%s3120] sm:$0xff]
    %v3122 = vld [vmem:[%s3120 + $0x8] sm:$0xff]
    %v3123 = vld [vmem:[%s3120 + $0x10] sm:$0xff]
    %v3124 = vld [vmem:[%s3120 + $0x18] sm:$0xff]
    %v3125 = vld [vmem:[%s3120 + $0x20] sm:$0xff]
    %v3126 = vld [vmem:[%s3120 + $0x28] sm:$0xff]
    %v3127 = vld [vmem:[%s3120 + $0x30] sm:$0xff]
    %v3128 = vld [vmem:[%s3120 + $0x38] sm:$0xff]
    %v3129 = vld [vmem:[%s3120 + $0x40] sm:$0xff]
    %v3130 = vld [vmem:[%s3120 + $0x48] sm:$0xff]
    %v3131 = vld [vmem:[%s3120 + $0x50] sm:$0xff]
    %v3132 = vld [vmem:[%s3120 + $0x58] sm:$0xff]
    %v3133 = vld [vmem:[%s3120 + $0x60] sm:$0xff]
    %v3134 = vld [vmem:[%s3120 + $0x68] sm:$0xff]
    %v3135 = vld [vmem:[%s3120 + $0x70] sm:$0xff]
    %v3136 = vld [vmem:[%s3120 + $0x78] sm:$0xff]
    %v3137 = vld [vmem:[%s3120 + $0x80] sm:$0xff]
    %v3138 = vld [vmem:[%s3120 + $0x88] sm:$0xff]
    %v3139 = vld [vmem:[%s3120 + $0x90] sm:$0xff]
    %v3140 = vld [vmem:[%s3120 + $0x98] sm:$0xff]
    %v3141 = vld [vmem:[%s3120 + $0xa0] sm:$0xff]
    %v3142 = vld [vmem:[%s3120 + $0xa8] sm:$0xff]
    %v3143 = vld [vmem:[%s3120 + $0xb0] sm:$0xff]
    %v3144 = vld [vmem:[%s3120 + $0xb8] sm:$0xff]
    %v3145 = vld [vmem:[%s3120 + $0xc0] sm:$0xff]
    %v3146 = vld [vmem:[%s3120 + $0xc8] sm:$0xff]
    %v3147 = vld [vmem:[%s3120 + $0xd0] sm:$0xff]
    %v3148 = vld [vmem:[%s3120 + $0xd8] sm:$0xff]
    %v3149 = vld [vmem:[%s3120 + $0xe0] sm:$0xff]
    %v3150 = vld [vmem:[%s3120 + $0xe8] sm:$0xff]
    %v3151 = vld [vmem:[%s3120 + $0xf0] sm:$0xff]
    %v3152 = vld [vmem:[%s3120 + $0xf8] sm:$0xff]
    %v3155 = vrot.slane %v2878, 1
    %v3156 = vrot.slane %v2879, 1
    %v3191 = vunpack.c.l.b16 %v3121
    %v3192 = vunpack.c.h.b16 %v3121
    %v3193 = vunpack.c.l.b16 %v3122
    %v3194 = vunpack.c.h.b16 %v3122
    %v3195 = vunpack.c.l.b16 %v3123
    %v3196 = vunpack.c.h.b16 %v3123
    %v3197 = vunpack.c.l.b16 %v3124
    %v3198 = vunpack.c.h.b16 %v3124
    %v3199 = vunpack.c.l.b16 %v3125
    %v3200 = vunpack.c.h.b16 %v3125
    %v3201 = vunpack.c.l.b16 %v3126
    %v3202 = vunpack.c.h.b16 %v3126
    %v3203 = vunpack.c.l.b16 %v3127
    %v3204 = vunpack.c.h.b16 %v3127
    %v3205 = vunpack.c.l.b16 %v3128
    %v3206 = vunpack.c.h.b16 %v3128
    %v3207 = vunpack.c.l.b16 %v3129
    %v3208 = vunpack.c.h.b16 %v3129
    %v3209 = vunpack.c.l.b16 %v3130
    %v3210 = vunpack.c.h.b16 %v3130
    %v3211 = vunpack.c.l.b16 %v3131
    %v3212 = vunpack.c.h.b16 %v3131
    %v3213 = vunpack.c.l.b16 %v3132
    %v3214 = vunpack.c.h.b16 %v3132
    %v3215 = vunpack.c.l.b16 %v3133
    %v3216 = vunpack.c.h.b16 %v3133
    %v3217 = vunpack.c.l.b16 %v3134
    %v3218 = vunpack.c.h.b16 %v3134
    %v3219 = vunpack.c.l.b16 %v3135
    %v3220 = vunpack.c.h.b16 %v3135
    %v3221 = vunpack.c.l.b16 %v3136
    %v3222 = vunpack.c.h.b16 %v3136
    %v3223 = vunpack.c.l.b16 %v3137
    %v3224 = vunpack.c.h.b16 %v3137
    %v3225 = vunpack.c.l.b16 %v3138
    %v3226 = vunpack.c.h.b16 %v3138
    %v3227 = vunpack.c.l.b16 %v3139
    %v3228 = vunpack.c.h.b16 %v3139
    %v3229 = vunpack.c.l.b16 %v3140
    %v3230 = vunpack.c.h.b16 %v3140
    %v3231 = vunpack.c.l.b16 %v3141
    %v3232 = vunpack.c.h.b16 %v3141
    %v3233 = vunpack.c.l.b16 %v3142
    %v3234 = vunpack.c.h.b16 %v3142
    %v3235 = vunpack.c.l.b16 %v3143
    %v3236 = vunpack.c.h.b16 %v3143
    %v3237 = vunpack.c.l.b16 %v3144
    %v3238 = vunpack.c.h.b16 %v3144
    %v3239 = vunpack.c.l.b16 %v3145
    %v3240 = vunpack.c.h.b16 %v3145
    %v3241 = vunpack.c.l.b16 %v3146
    %v3242 = vunpack.c.h.b16 %v3146
    %v3243 = vunpack.c.l.b16 %v3147
    %v3244 = vunpack.c.h.b16 %v3147
    %v3245 = vunpack.c.l.b16 %v3148
    %v3246 = vunpack.c.h.b16 %v3148
    %v3247 = vunpack.c.l.b16 %v3149
    %v3248 = vunpack.c.h.b16 %v3149
    %v3249 = vunpack.c.l.b16 %v3150
    %v3250 = vunpack.c.h.b16 %v3150
    %v3251 = vunpack.c.l.b16 %v3151
    %v3252 = vunpack.c.h.b16 %v3151
    %v3253 = vunpack.c.l.b16 %v3152
    %v3254 = vunpack.c.h.b16 %v3152
    %v3255 = vpack.c.b16 %v3193, %v3191
    %v3256 = vpack.c.b16 %v3194, %v3192
    %v3257 = vpack.c.b16 %v3197, %v3195
    %v3258 = vpack.c.b16 %v3198, %v3196
    %v3259 = vpack.c.b16 %v3201, %v3199
    %v3260 = vpack.c.b16 %v3202, %v3200
    %v3261 = vpack.c.b16 %v3205, %v3203
    %v3262 = vpack.c.b16 %v3206, %v3204
    %v3263 = vpack.c.b16 %v3209, %v3207
    %v3264 = vpack.c.b16 %v3210, %v3208
    %v3265 = vpack.c.b16 %v3213, %v3211
    %v3266 = vpack.c.b16 %v3214, %v3212
    %v3267 = vpack.c.b16 %v3217, %v3215
    %v3268 = vpack.c.b16 %v3218, %v3216
    %v3269 = vpack.c.b16 %v3221, %v3219
    %v3270 = vpack.c.b16 %v3222, %v3220
    %v3271 = vpack.c.b16 %v3225, %v3223
    %v3272 = vpack.c.b16 %v3226, %v3224
    %v3273 = vpack.c.b16 %v3229, %v3227
    %v3274 = vpack.c.b16 %v3230, %v3228
    %v3275 = vpack.c.b16 %v3233, %v3231
    %v3276 = vpack.c.b16 %v3234, %v3232
    %v3277 = vpack.c.b16 %v3237, %v3235
    %v3278 = vpack.c.b16 %v3238, %v3236
    %v3279 = vpack.c.b16 %v3241, %v3239
    %v3280 = vpack.c.b16 %v3242, %v3240
    %v3281 = vpack.c.b16 %v3245, %v3243
    %v3282 = vpack.c.b16 %v3246, %v3244
    %v3283 = vpack.c.b16 %v3249, %v3247
    %v3284 = vpack.c.b16 %v3250, %v3248
    %v3285 = vpack.c.b16 %v3253, %v3251
    %v3286 = vpack.c.b16 %v3254, %v3252
    %3319 = vmatprep.subr.bf16.mxu0 %v3270
    %3320 = vmatpush1.bf16.msra.mxu0 %v3269
    %3321 = vmatprep.subr.bf16.mxu0 %v3268
    %3322 = vmatpush1.bf16.msra.mxu0 %v3267
    %3323 = vmatprep.subr.bf16.mxu0 %v3266
    %3324 = vmatpush1.bf16.msra.mxu0 %v3265
    %3325 = vmatprep.subr.bf16.mxu0 %v3264
    %3326 = vmatpush1.bf16.msra.mxu0 %v3263
    %3327 = vmatprep.subr.bf16.mxu0 %v3262
    %3328 = vmatpush1.bf16.msra.mxu0 %v3261
    %3329 = vmatprep.subr.bf16.mxu0 %v3260
    %3330 = vmatpush1.bf16.msra.mxu0 %v3259
    %3331 = vmatprep.subr.bf16.mxu0 %v3258
    %3332 = vmatpush1.bf16.msra.mxu0 %v3257
    %3333 = vmatprep.subr.bf16.mxu0 %v3256
    %3334 = vmatpush1.bf16.msra.mxu0 %v3255
    %3335 = vmatprep.subr.bf16.mxu0 %v3286
    %3336 = vmatpush2.bf16.msra.mxu0 %v3285
    %3337 = vmatprep.subr.bf16.mxu0 %v3284
    %3338 = vmatpush2.bf16.msra.mxu0 %v3283
    %3339 = vmatprep.subr.bf16.mxu0 %v3282
    %3340 = vmatpush2.bf16.msra.mxu0 %v3281
    %3341 = vmatprep.subr.bf16.mxu0 %v3280
    %3342 = vmatpush2.bf16.msra.mxu0 %v3279
    %3343 = vmatprep.subr.bf16.mxu0 %v3278
    %3344 = vmatpush2.bf16.msra.mxu0 %v3277
    %3345 = vmatprep.subr.bf16.mxu0 %v3276
    %3346 = vmatpush2.bf16.msra.mxu0 %v3275
    %3347 = vmatprep.subr.bf16.mxu0 %v3274
    %3348 = vmatpush2.bf16.msra.mxu0 %v3273
    %3349 = vmatprep.subr.bf16.mxu0 %v3272
    %3350 = vmatpush2.bf16.msra.mxu0 %v3271
    %3351 = vmatprep.mubr.bf16.mxu0 %v3156
    %3352 = vmatmul.mubr.bf16.gmra.mxu0 %v3155
    %v3353 = vpop.f32.mrf.mxu0
    %v3354 = vadd.f32 0.0, %v3353
    %v3355 = vpop.f32.mrf.mxu0
    %v3356 = vadd.f32 0.0, %v3355
    %v3357 = vpop.f32.mrf.mxu0
    %v3358 = vpop.f32.mrf.mxu0
    %3359 = vdwg.mxu0
    %v3362 = vrot.slane %v3354, 6
    %v3363 = vrot.slane %v3356, 6
    %v3366 = vadd.f32 %v3116, %v3362
    %v3367 = vadd.f32 %v3116, %v3363
    %s3368 = scalar_lea.vmem [#allocation3], 512
    %v3369 = vld [vmem:[%s3368] sm:$0xff]
    %v3370 = vld [vmem:[%s3368 + $0x8] sm:$0xff]
    %v3371 = vld [vmem:[%s3368 + $0x10] sm:$0xff]
    %v3372 = vld [vmem:[%s3368 + $0x18] sm:$0xff]
    %v3373 = vld [vmem:[%s3368 + $0x20] sm:$0xff]
    %v3374 = vld [vmem:[%s3368 + $0x28] sm:$0xff]
    %v3375 = vld [vmem:[%s3368 + $0x30] sm:$0xff]
    %v3376 = vld [vmem:[%s3368 + $0x38] sm:$0xff]
    %v3377 = vld [vmem:[%s3368 + $0x40] sm:$0xff]
    %v3378 = vld [vmem:[%s3368 + $0x48] sm:$0xff]
    %v3379 = vld [vmem:[%s3368 + $0x50] sm:$0xff]
    %v3380 = vld [vmem:[%s3368 + $0x58] sm:$0xff]
    %v3381 = vld [vmem:[%s3368 + $0x60] sm:$0xff]
    %v3382 = vld [vmem:[%s3368 + $0x68] sm:$0xff]
    %v3383 = vld [vmem:[%s3368 + $0x70] sm:$0xff]
    %v3384 = vld [vmem:[%s3368 + $0x78] sm:$0xff]
    %v3385 = vld [vmem:[%s3368 + $0x80] sm:$0xff]
    %v3386 = vld [vmem:[%s3368 + $0x88] sm:$0xff]
    %v3387 = vld [vmem:[%s3368 + $0x90] sm:$0xff]
    %v3388 = vld [vmem:[%s3368 + $0x98] sm:$0xff]
    %v3389 = vld [vmem:[%s3368 + $0xa0] sm:$0xff]
    %v3390 = vld [vmem:[%s3368 + $0xa8] sm:$0xff]
    %v3391 = vld [vmem:[%s3368 + $0xb0] sm:$0xff]
    %v3392 = vld [vmem:[%s3368 + $0xb8] sm:$0xff]
    %v3393 = vld [vmem:[%s3368 + $0xc0] sm:$0xff]
    %v3394 = vld [vmem:[%s3368 + $0xc8] sm:$0xff]
    %v3395 = vld [vmem:[%s3368 + $0xd0] sm:$0xff]
    %v3396 = vld [vmem:[%s3368 + $0xd8] sm:$0xff]
    %v3397 = vld [vmem:[%s3368 + $0xe0] sm:$0xff]
    %v3398 = vld [vmem:[%s3368 + $0xe8] sm:$0xff]
    %v3399 = vld [vmem:[%s3368 + $0xf0] sm:$0xff]
    %v3400 = vld [vmem:[%s3368 + $0xf8] sm:$0xff]
    %v3401 = vrot.slane %v2878, 2
    %v3402 = vrot.slane %v2879, 2
    %v3437 = vunpack.c.l.b16 %v3369
    %v3438 = vunpack.c.h.b16 %v3369
    %v3439 = vunpack.c.l.b16 %v3370
    %v3440 = vunpack.c.h.b16 %v3370
    %v3441 = vunpack.c.l.b16 %v3371
    %v3442 = vunpack.c.h.b16 %v3371
    %v3443 = vunpack.c.l.b16 %v3372
    %v3444 = vunpack.c.h.b16 %v3372
    %v3445 = vunpack.c.l.b16 %v3373
    %v3446 = vunpack.c.h.b16 %v3373
    %v3447 = vunpack.c.l.b16 %v3374
    %v3448 = vunpack.c.h.b16 %v3374
    %v3449 = vunpack.c.l.b16 %v3375
    %v3450 = vunpack.c.h.b16 %v3375
    %v3451 = vunpack.c.l.b16 %v3376
    %v3452 = vunpack.c.h.b16 %v3376
    %v3453 = vunpack.c.l.b16 %v3377
    %v3454 = vunpack.c.h.b16 %v3377
    %v3455 = vunpack.c.l.b16 %v3378
    %v3456 = vunpack.c.h.b16 %v3378
    %v3457 = vunpack.c.l.b16 %v3379
    %v3458 = vunpack.c.h.b16 %v3379
    %v3459 = vunpack.c.l.b16 %v3380
    %v3460 = vunpack.c.h.b16 %v3380
    %v3461 = vunpack.c.l.b16 %v3381
    %v3462 = vunpack.c.h.b16 %v3381
    %v3463 = vunpack.c.l.b16 %v3382
    %v3464 = vunpack.c.h.b16 %v3382
    %v3465 = vunpack.c.l.b16 %v3383
    %v3466 = vunpack.c.h.b16 %v3383
    %v3467 = vunpack.c.l.b16 %v3384
    %v3468 = vunpack.c.h.b16 %v3384
    %v3469 = vunpack.c.l.b16 %v3385
    %v3470 = vunpack.c.h.b16 %v3385
    %v3471 = vunpack.c.l.b16 %v3386
    %v3472 = vunpack.c.h.b16 %v3386
    %v3473 = vunpack.c.l.b16 %v3387
    %v3474 = vunpack.c.h.b16 %v3387
    %v3475 = vunpack.c.l.b16 %v3388
    %v3476 = vunpack.c.h.b16 %v3388
    %v3477 = vunpack.c.l.b16 %v3389
    %v3478 = vunpack.c.h.b16 %v3389
    %v3479 = vunpack.c.l.b16 %v3390
    %v3480 = vunpack.c.h.b16 %v3390
    %v3481 = vunpack.c.l.b16 %v3391
    %v3482 = vunpack.c.h.b16 %v3391
    %v3483 = vunpack.c.l.b16 %v3392
    %v3484 = vunpack.c.h.b16 %v3392
    %v3485 = vunpack.c.l.b16 %v3393
    %v3486 = vunpack.c.h.b16 %v3393
    %v3487 = vunpack.c.l.b16 %v3394
    %v3488 = vunpack.c.h.b16 %v3394
    %v3489 = vunpack.c.l.b16 %v3395
    %v3490 = vunpack.c.h.b16 %v3395
    %v3491 = vunpack.c.l.b16 %v3396
    %v3492 = vunpack.c.h.b16 %v3396
    %v3493 = vunpack.c.l.b16 %v3397
    %v3494 = vunpack.c.h.b16 %v3397
    %v3495 = vunpack.c.l.b16 %v3398
    %v3496 = vunpack.c.h.b16 %v3398
    %v3497 = vunpack.c.l.b16 %v3399
    %v3498 = vunpack.c.h.b16 %v3399
    %v3499 = vunpack.c.l.b16 %v3400
    %v3500 = vunpack.c.h.b16 %v3400
    %v3501 = vpack.c.b16 %v3439, %v3437
    %v3502 = vpack.c.b16 %v3440, %v3438
    %v3503 = vpack.c.b16 %v3443, %v3441
    %v3504 = vpack.c.b16 %v3444, %v3442
    %v3505 = vpack.c.b16 %v3447, %v3445
    %v3506 = vpack.c.b16 %v3448, %v3446
    %v3507 = vpack.c.b16 %v3451, %v3449
    %v3508 = vpack.c.b16 %v3452, %v3450
    %v3509 = vpack.c.b16 %v3455, %v3453
    %v3510 = vpack.c.b16 %v3456, %v3454
    %v3511 = vpack.c.b16 %v3459, %v3457
    %v3512 = vpack.c.b16 %v3460, %v3458
    %v3513 = vpack.c.b16 %v3463, %v3461
    %v3514 = vpack.c.b16 %v3464, %v3462
    %v3515 = vpack.c.b16 %v3467, %v3465
    %v3516 = vpack.c.b16 %v3468, %v3466
    %v3517 = vpack.c.b16 %v3471, %v3469
    %v3518 = vpack.c.b16 %v3472, %v3470
    %v3519 = vpack.c.b16 %v3475, %v3473
    %v3520 = vpack.c.b16 %v3476, %v3474
    %v3521 = vpack.c.b16 %v3479, %v3477
    %v3522 = vpack.c.b16 %v3480, %v3478
    %v3523 = vpack.c.b16 %v3483, %v3481
    %v3524 = vpack.c.b16 %v3484, %v3482
    %v3525 = vpack.c.b16 %v3487, %v3485
    %v3526 = vpack.c.b16 %v3488, %v3486
    %v3527 = vpack.c.b16 %v3491, %v3489
    %v3528 = vpack.c.b16 %v3492, %v3490
    %v3529 = vpack.c.b16 %v3495, %v3493
    %v3530 = vpack.c.b16 %v3496, %v3494
    %v3531 = vpack.c.b16 %v3499, %v3497
    %v3532 = vpack.c.b16 %v3500, %v3498
    %3565 = vmatprep.subr.bf16.mxu0 %v3516
    %3566 = vmatpush1.bf16.msra.mxu0 %v3515
    %3567 = vmatprep.subr.bf16.mxu0 %v3514
    %3568 = vmatpush1.bf16.msra.mxu0 %v3513
    %3569 = vmatprep.subr.bf16.mxu0 %v3512
    %3570 = vmatpush1.bf16.msra.mxu0 %v3511
    %3571 = vmatprep.subr.bf16.mxu0 %v3510
    %3572 = vmatpush1.bf16.msra.mxu0 %v3509
    %3573 = vmatprep.subr.bf16.mxu0 %v3508
    %3574 = vmatpush1.bf16.msra.mxu0 %v3507
    %3575 = vmatprep.subr.bf16.mxu0 %v3506
    %3576 = vmatpush1.bf16.msra.mxu0 %v3505
    %3577 = vmatprep.subr.bf16.mxu0 %v3504
    %3578 = vmatpush1.bf16.msra.mxu0 %v3503
    %3579 = vmatprep.subr.bf16.mxu0 %v3502
    %3580 = vmatpush1.bf16.msra.mxu0 %v3501
    %3581 = vmatprep.subr.bf16.mxu0 %v3532
    %3582 = vmatpush2.bf16.msra.mxu0 %v3531
    %3583 = vmatprep.subr.bf16.mxu0 %v3530
    %3584 = vmatpush2.bf16.msra.mxu0 %v3529
    %3585 = vmatprep.subr.bf16.mxu0 %v3528
    %3586 = vmatpush2.bf16.msra.mxu0 %v3527
    %3587 = vmatprep.subr.bf16.mxu0 %v3526
    %3588 = vmatpush2.bf16.msra.mxu0 %v3525
    %3589 = vmatprep.subr.bf16.mxu0 %v3524
    %3590 = vmatpush2.bf16.msra.mxu0 %v3523
    %3591 = vmatprep.subr.bf16.mxu0 %v3522
    %3592 = vmatpush2.bf16.msra.mxu0 %v3521
    %3593 = vmatprep.subr.bf16.mxu0 %v3520
    %3594 = vmatpush2.bf16.msra.mxu0 %v3519
    %3595 = vmatprep.subr.bf16.mxu0 %v3518
    %3596 = vmatpush2.bf16.msra.mxu0 %v3517
    %3597 = vmatprep.mubr.bf16.mxu0 %v3402
    %3598 = vmatmul.mubr.bf16.gmra.mxu0 %v3401
    %v3599 = vpop.f32.mrf.mxu0
    %v3600 = vadd.f32 0.0, %v3599
    %v3601 = vpop.f32.mrf.mxu0
    %v3602 = vadd.f32 0.0, %v3601
    %v3603 = vpop.f32.mrf.mxu0
    %v3604 = vpop.f32.mrf.mxu0
    %3605 = vdwg.mxu0
    %v3608 = vrot.slane %v3600, 4
    %v3609 = vrot.slane %v3602, 4
    %v3612 = vadd.f32 %v3116, %v3608
    %v3613 = vadd.f32 %v3116, %v3609
    %s3614 = scalar_lea.vmem [#allocation3], 768
    %v3615 = vld [vmem:[%s3614] sm:$0xff]
    %v3616 = vld [vmem:[%s3614 + $0x8] sm:$0xff]
    %v3617 = vld [vmem:[%s3614 + $0x10] sm:$0xff]
    %v3618 = vld [vmem:[%s3614 + $0x18] sm:$0xff]
    %v3619 = vld [vmem:[%s3614 + $0x20] sm:$0xff]
    %v3620 = vld [vmem:[%s3614 + $0x28] sm:$0xff]
    %v3621 = vld [vmem:[%s3614 + $0x30] sm:$0xff]
    %v3622 = vld [vmem:[%s3614 + $0x38] sm:$0xff]
    %v3623 = vld [vmem:[%s3614 + $0x40] sm:$0xff]
    %v3624 = vld [vmem:[%s3614 + $0x48] sm:$0xff]
    %v3625 = vld [vmem:[%s3614 + $0x50] sm:$0xff]
    %v3626 = vld [vmem:[%s3614 + $0x58] sm:$0xff]
    %v3627 = vld [vmem:[%s3614 + $0x60] sm:$0xff]
    %v3628 = vld [vmem:[%s3614 + $0x68] sm:$0xff]
    %v3629 = vld [vmem:[%s3614 + $0x70] sm:$0xff]
    %v3630 = vld [vmem:[%s3614 + $0x78] sm:$0xff]
    %v3631 = vld [vmem:[%s3614 + $0x80] sm:$0xff]
    %v3632 = vld [vmem:[%s3614 + $0x88] sm:$0xff]
    %v3633 = vld [vmem:[%s3614 + $0x90] sm:$0xff]
    %v3634 = vld [vmem:[%s3614 + $0x98] sm:$0xff]
    %v3635 = vld [vmem:[%s3614 + $0xa0] sm:$0xff]
    %v3636 = vld [vmem:[%s3614 + $0xa8] sm:$0xff]
    %v3637 = vld [vmem:[%s3614 + $0xb0] sm:$0xff]
    %v3638 = vld [vmem:[%s3614 + $0xb8] sm:$0xff]
    %v3639 = vld [vmem:[%s3614 + $0xc0] sm:$0xff]
    %v3640 = vld [vmem:[%s3614 + $0xc8] sm:$0xff]
    %v3641 = vld [vmem:[%s3614 + $0xd0] sm:$0xff]
    %v3642 = vld [vmem:[%s3614 + $0xd8] sm:$0xff]
    %v3643 = vld [vmem:[%s3614 + $0xe0] sm:$0xff]
    %v3644 = vld [vmem:[%s3614 + $0xe8] sm:$0xff]
    %v3645 = vld [vmem:[%s3614 + $0xf0] sm:$0xff]
    %v3646 = vld [vmem:[%s3614 + $0xf8] sm:$0xff]
    %v3647 = vrot.slane %v2878, 3
    %v3648 = vrot.slane %v2879, 3
    %v3683 = vunpack.c.l.b16 %v3615
    %v3684 = vunpack.c.h.b16 %v3615
    %v3685 = vunpack.c.l.b16 %v3616
    %v3686 = vunpack.c.h.b16 %v3616
    %v3687 = vunpack.c.l.b16 %v3617
    %v3688 = vunpack.c.h.b16 %v3617
    %v3689 = vunpack.c.l.b16 %v3618
    %v3690 = vunpack.c.h.b16 %v3618
    %v3691 = vunpack.c.l.b16 %v3619
    %v3692 = vunpack.c.h.b16 %v3619
    %v3693 = vunpack.c.l.b16 %v3620
    %v3694 = vunpack.c.h.b16 %v3620
    %v3695 = vunpack.c.l.b16 %v3621
    %v3696 = vunpack.c.h.b16 %v3621
    %v3697 = vunpack.c.l.b16 %v3622
    %v3698 = vunpack.c.h.b16 %v3622
    %v3699 = vunpack.c.l.b16 %v3623
    %v3700 = vunpack.c.h.b16 %v3623
    %v3701 = vunpack.c.l.b16 %v3624
    %v3702 = vunpack.c.h.b16 %v3624
    %v3703 = vunpack.c.l.b16 %v3625
    %v3704 = vunpack.c.h.b16 %v3625
    %v3705 = vunpack.c.l.b16 %v3626
    %v3706 = vunpack.c.h.b16 %v3626
    %v3707 = vunpack.c.l.b16 %v3627
    %v3708 = vunpack.c.h.b16 %v3627
    %v3709 = vunpack.c.l.b16 %v3628
    %v3710 = vunpack.c.h.b16 %v3628
    %v3711 = vunpack.c.l.b16 %v3629
    %v3712 = vunpack.c.h.b16 %v3629
    %v3713 = vunpack.c.l.b16 %v3630
    %v3714 = vunpack.c.h.b16 %v3630
    %v3715 = vunpack.c.l.b16 %v3631
    %v3716 = vunpack.c.h.b16 %v3631
    %v3717 = vunpack.c.l.b16 %v3632
    %v3718 = vunpack.c.h.b16 %v3632
    %v3719 = vunpack.c.l.b16 %v3633
    %v3720 = vunpack.c.h.b16 %v3633
    %v3721 = vunpack.c.l.b16 %v3634
    %v3722 = vunpack.c.h.b16 %v3634
    %v3723 = vunpack.c.l.b16 %v3635
    %v3724 = vunpack.c.h.b16 %v3635
    %v3725 = vunpack.c.l.b16 %v3636
    %v3726 = vunpack.c.h.b16 %v3636
    %v3727 = vunpack.c.l.b16 %v3637
    %v3728 = vunpack.c.h.b16 %v3637
    %v3729 = vunpack.c.l.b16 %v3638
    %v3730 = vunpack.c.h.b16 %v3638
    %v3731 = vunpack.c.l.b16 %v3639
    %v3732 = vunpack.c.h.b16 %v3639
    %v3733 = vunpack.c.l.b16 %v3640
    %v3734 = vunpack.c.h.b16 %v3640
    %v3735 = vunpack.c.l.b16 %v3641
    %v3736 = vunpack.c.h.b16 %v3641
    %v3737 = vunpack.c.l.b16 %v3642
    %v3738 = vunpack.c.h.b16 %v3642
    %v3739 = vunpack.c.l.b16 %v3643
    %v3740 = vunpack.c.h.b16 %v3643
    %v3741 = vunpack.c.l.b16 %v3644
    %v3742 = vunpack.c.h.b16 %v3644
    %v3743 = vunpack.c.l.b16 %v3645
    %v3744 = vunpack.c.h.b16 %v3645
    %v3745 = vunpack.c.l.b16 %v3646
    %v3746 = vunpack.c.h.b16 %v3646
    %v3747 = vpack.c.b16 %v3685, %v3683
    %v3748 = vpack.c.b16 %v3686, %v3684
    %v3749 = vpack.c.b16 %v3689, %v3687
    %v3750 = vpack.c.b16 %v3690, %v3688
    %v3751 = vpack.c.b16 %v3693, %v3691
    %v3752 = vpack.c.b16 %v3694, %v3692
    %v3753 = vpack.c.b16 %v3697, %v3695
    %v3754 = vpack.c.b16 %v3698, %v3696
    %v3755 = vpack.c.b16 %v3701, %v3699
    %v3756 = vpack.c.b16 %v3702, %v3700
    %v3757 = vpack.c.b16 %v3705, %v3703
    %v3758 = vpack.c.b16 %v3706, %v3704
    %v3759 = vpack.c.b16 %v3709, %v3707
    %v3760 = vpack.c.b16 %v3710, %v3708
    %v3761 = vpack.c.b16 %v3713, %v3711
    %v3762 = vpack.c.b16 %v3714, %v3712
    %v3763 = vpack.c.b16 %v3717, %v3715
    %v3764 = vpack.c.b16 %v3718, %v3716
    %v3765 = vpack.c.b16 %v3721, %v3719
    %v3766 = vpack.c.b16 %v3722, %v3720
    %v3767 = vpack.c.b16 %v3725, %v3723
    %v3768 = vpack.c.b16 %v3726, %v3724
    %v3769 = vpack.c.b16 %v3729, %v3727
    %v3770 = vpack.c.b16 %v3730, %v3728
    %v3771 = vpack.c.b16 %v3733, %v3731
    %v3772 = vpack.c.b16 %v3734, %v3732
    %v3773 = vpack.c.b16 %v3737, %v3735
    %v3774 = vpack.c.b16 %v3738, %v3736
    %v3775 = vpack.c.b16 %v3741, %v3739
    %v3776 = vpack.c.b16 %v3742, %v3740
    %v3777 = vpack.c.b16 %v3745, %v3743
    %v3778 = vpack.c.b16 %v3746, %v3744
    %3811 = vmatprep.subr.bf16.mxu0 %v3762
    %3812 = vmatpush1.bf16.msra.mxu0 %v3761
    %3813 = vmatprep.subr.bf16.mxu0 %v3760
    %3814 = vmatpush1.bf16.msra.mxu0 %v3759
    %3815 = vmatprep.subr.bf16.mxu0 %v3758
    %3816 = vmatpush1.bf16.msra.mxu0 %v3757
    %3817 = vmatprep.subr.bf16.mxu0 %v3756
    %3818 = vmatpush1.bf16.msra.mxu0 %v3755
    %3819 = vmatprep.subr.bf16.mxu0 %v3754
    %3820 = vmatpush1.bf16.msra.mxu0 %v3753
    %3821 = vmatprep.subr.bf16.mxu0 %v3752
    %3822 = vmatpush1.bf16.msra.mxu0 %v3751
    %3823 = vmatprep.subr.bf16.mxu0 %v3750
    %3824 = vmatpush1.bf16.msra.mxu0 %v3749
    %3825 = vmatprep.subr.bf16.mxu0 %v3748
    %3826 = vmatpush1.bf16.msra.mxu0 %v3747
    %3827 = vmatprep.subr.bf16.mxu0 %v3778
    %3828 = vmatpush2.bf16.msra.mxu0 %v3777
    %3829 = vmatprep.subr.bf16.mxu0 %v3776
    %3830 = vmatpush2.bf16.msra.mxu0 %v3775
    %3831 = vmatprep.subr.bf16.mxu0 %v3774
    %3832 = vmatpush2.bf16.msra.mxu0 %v3773
    %3833 = vmatprep.subr.bf16.mxu0 %v3772
    %3834 = vmatpush2.bf16.msra.mxu0 %v3771
    %3835 = vmatprep.subr.bf16.mxu0 %v3770
    %3836 = vmatpush2.bf16.msra.mxu0 %v3769
    %3837 = vmatprep.subr.bf16.mxu0 %v3768
    %3838 = vmatpush2.bf16.msra.mxu0 %v3767
    %3839 = vmatprep.subr.bf16.mxu0 %v3766
    %3840 = vmatpush2.bf16.msra.mxu0 %v3765
    %3841 = vmatprep.subr.bf16.mxu0 %v3764
    %3842 = vmatpush2.bf16.msra.mxu0 %v3763
    %3843 = vmatprep.mubr.bf16.mxu0 %v3648
    %3844 = vmatmul.mubr.bf16.gmra.mxu0 %v3647
    %v3845 = vpop.f32.mrf.mxu0
    %v3846 = vadd.f32 0.0, %v3845
    %v3847 = vpop.f32.mrf.mxu0
    %v3848 = vadd.f32 0.0, %v3847
    %v3849 = vpop.f32.mrf.mxu0
    %v3850 = vpop.f32.mrf.mxu0
    %3851 = vdwg.mxu0
    %v3854 = vrot.slane %v3846, 2
    %v3855 = vrot.slane %v3848, 2
    %v3858 = vadd.f32 %v3116, %v3854
    %v3859 = vadd.f32 %v3116, %v3855
    %v3860 = vsel %vm2080, %v3118, %v3366
    %v3861 = vsel %vm2080, %v3119, %v3367
    %v3862 = vsel %vm2083, %v3860, %v3612
    %v3863 = vsel %vm2083, %v3861, %v3613
    %v3864 = vsel %vm2086, %v3862, %v3858
    %v3865 = vsel %vm2086, %v3863, %v3859
    %s3866 = scalar_lea.vmem %s13, 40
    %v3867 = vld [vmem:[%s3866] sm:$0xff]
    %3869 = vset.pattern.permute.xlu0 0
    %3870 = vperm.xlu0 %3869, %v3867
    %v3871 = vpop.permute.xlu0 %3870
    %v3873 = vmul.f32 %v461, %v3871
    %v3874 = vmul.f32 %v462, %v3871
    %s3875 = scalar_lea.vmem %s13, 48
    %v3876 = vld [vmem:[%s3875] sm:$0xff]
    %3878 = vset.pattern.permute.xlu0 0
    %3879 = vperm.xlu0 %3878, %v3876
    %v3880 = vpop.permute.xlu0 %3879
    %v3882 = vadd.f32 %v3873, %v3880
    %v3883 = vadd.f32 %v3874, %v3880
    %v3884 = vadd.f32 %v319, %v3864
    %v3885 = vadd.f32 %v320, %v3865
    %v3886 = vadd.f32 %v3884, %v3882
    %v3887 = vadd.f32 %v3885, %v3883
    %v3888 = vadd.f32 %v3886, %v2872
    %v3889 = vadd.f32 %v3887, %v2873
    %v3890 = vmax.f32 %v3888, 0.0
    %v3891 = vmax.f32 %v3889, 0.0
    %v3892 = vld [vmem:[%s8] sm:$0xff]
    %s3893 = scalar_lea.vmem %s13, 96
    %v3894 = vld [vmem:[%s3893] sm:$0xff]
    %3896 = vset.pattern.permute.xlu0 0
    %3897 = vperm.xlu0 %3896, %v3894
    %v3898 = vpop.permute.xlu0 %3897
    %v3901 = vsel %vm334, %v3892, 0
    %3903 = vmatprep.subr.mxu0 0.0
    %3904 = vmatpush1.msra.mxu0 0.0
    %3905 = vmatprep.subr.mxu0 0.0
    %3906 = vmatpush1.msra.mxu0 0.0
    %3907 = vmatprep.subr.mxu0 0.0
    %3908 = vmatpush1.msra.mxu0 0.0
    %3909 = vmatprep.subr.mxu0 0.0
    %3910 = vmatpush1.msra.mxu0 0.0
    %3911 = vmatprep.subr.mxu0 0.0
    %3912 = vmatpush1.msra.mxu0 0.0
    %3913 = vmatprep.subr.mxu0 0.0
    %3914 = vmatpush1.msra.mxu0 0.0
    %3915 = vmatprep.subr.mxu0 0.0
    %3916 = vmatpush1.msra.mxu0 0.0
    %3917 = vmatprep.subr.mxu0 0.0
    %3918 = vmatpush1.msra.mxu0 0.0
    %3919 = vmatprep.subr.mxu0 0.0
    %3920 = vmatpush1.msra.mxu0 0.0
    %3921 = vmatprep.subr.mxu0 0.0
    %3922 = vmatpush1.msra.mxu0 0.0
    %3923 = vmatprep.subr.mxu0 0.0
    %3924 = vmatpush1.msra.mxu0 0.0
    %3925 = vmatprep.subr.mxu0 0.0
    %3926 = vmatpush1.msra.mxu0 0.0
    %3927 = vmatprep.subr.mxu0 0.0
    %3928 = vmatpush1.msra.mxu0 0.0
    %3929 = vmatprep.subr.mxu0 0.0
    %3930 = vmatpush1.msra.mxu0 0.0
    %3931 = vmatprep.subr.mxu0 0.0
    %3932 = vmatpush1.msra.mxu0 0.0
    %3933 = vmatprep.subr.mxu0 %v3891
    %3934 = vmatpush1.msra.mxu0 %v3890
    %3935 = vmatprep.subr.mxu0 0.0
    %3936 = vmatpush2.msra.mxu0 0.0
    %3937 = vmatprep.subr.mxu0 0.0
    %3938 = vmatpush2.msra.mxu0 0.0
    %3939 = vmatprep.subr.mxu0 0.0
    %3940 = vmatpush2.msra.mxu0 0.0
    %3941 = vmatprep.subr.mxu0 0.0
    %3942 = vmatpush2.msra.mxu0 0.0
    %3943 = vmatprep.subr.mxu0 0.0
    %3944 = vmatpush2.msra.mxu0 0.0
    %3945 = vmatprep.subr.mxu0 0.0
    %3946 = vmatpush2.msra.mxu0 0.0
    %3947 = vmatprep.subr.mxu0 0.0
    %3948 = vmatpush2.msra.mxu0 0.0
    %3949 = vmatprep.subr.mxu0 0.0
    %3950 = vmatpush2.msra.mxu0 0.0
    %3951 = vmatprep.subr.mxu0 0.0
    %3952 = vmatpush2.msra.mxu0 0.0
    %3953 = vmatprep.subr.mxu0 0.0
    %3954 = vmatpush2.msra.mxu0 0.0
    %3955 = vmatprep.subr.mxu0 0.0
    %3956 = vmatpush2.msra.mxu0 0.0
    %3957 = vmatprep.subr.mxu0 0.0
    %3958 = vmatpush2.msra.mxu0 0.0
    %3959 = vmatprep.subr.mxu0 0.0
    %3960 = vmatpush2.msra.mxu0 0.0
    %3961 = vmatprep.subr.mxu0 0.0
    %3962 = vmatpush2.msra.mxu0 0.0
    %3963 = vmatprep.subr.mxu0 0.0
    %3964 = vmatpush2.msra.mxu0 0.0
    %3965 = vmatprep.subr.mxu0 0.0
    %3966 = vmatpush2.msra.mxu0 0.0
    %3967 = vmatprep.mubr.f32.mxu0 0.0
    %3968 = vmatmul.mubr.f32.gmra.mxu0 %v3901
    %v3969 = vpop.f32.mrf.mxu0
    %v3970 = vadd.f32 %v3898, %v3969
    %v3971 = vpop.f32.mrf.mxu0
    %v3972 = vadd.f32 %v3898, %v3971
    %3973 = vdwg.mxu0
    %v3974 = vld [vmem:[%s2] sm:$0xff]
    %v3975 = vld [vmem:[%s2 + $0x8] sm:$0xff]
    %v3976 = vld [vmem:[%s2 + $0x10] sm:$0xff]
    %v3977 = vld [vmem:[%s2 + $0x18] sm:$0xff]
    %v3978 = vld [vmem:[%s3] sm:$0xff]
    %v3979 = vld [vmem:[%s3 + $0x8] sm:$0xff]
    %v3980 = vld [vmem:[%s3 + $0x10] sm:$0xff]
    %v3981 = vld [vmem:[%s3 + $0x18] sm:$0xff]
    %vm3982 = vcmask 195584
    %v3984 = vsel %vm3982, %v3978, 0
    %v3987 = vsel %vm3982, %v3979, 0
    %v3990 = vsel %vm3982, %v3980, 0
    %v3993 = vsel %vm3982, %v3981, 0
    %3995 = vmatprep.subr.mxu0 0.0
    %3996 = vmatpush1.msra.mxu0 0.0
    %3997 = vmatprep.subr.mxu0 0.0
    %3998 = vmatpush1.msra.mxu0 0.0
    %3999 = vmatprep.subr.mxu0 0.0
    %4000 = vmatpush1.msra.mxu0 0.0
    %4001 = vmatprep.subr.mxu0 0.0
    %4002 = vmatpush1.msra.mxu0 0.0
    %4003 = vmatprep.subr.mxu0 0.0
    %4004 = vmatpush1.msra.mxu0 0.0
    %4005 = vmatprep.subr.mxu0 0.0
    %4006 = vmatpush1.msra.mxu0 0.0
    %4007 = vmatprep.subr.mxu0 0.0
    %4008 = vmatpush1.msra.mxu0 0.0
    %4009 = vmatprep.subr.mxu0 0.0
    %4010 = vmatpush1.msra.mxu0 0.0
    %4011 = vmatprep.subr.mxu0 0.0
    %4012 = vmatpush1.msra.mxu0 0.0
    %4013 = vmatprep.subr.mxu0 0.0
    %4014 = vmatpush1.msra.mxu0 0.0
    %4015 = vmatprep.subr.mxu0 0.0
    %4016 = vmatpush1.msra.mxu0 0.0
    %4017 = vmatprep.subr.mxu0 0.0
    %4018 = vmatpush1.msra.mxu0 0.0
    %4019 = vmatprep.subr.mxu0 0.0
    %4020 = vmatpush1.msra.mxu0 0.0
    %4021 = vmatprep.subr.mxu0 %v326
    %4022 = vmatpush1.msra.mxu0 %v325
    %4023 = vmatprep.subr.mxu0 %v324
    %4024 = vmatpush1.msra.mxu0 %v323
    %4025 = vmatprep.subr.mxu0 %v322
    %4026 = vmatpush1.msra.mxu0 %v321
    %4027 = vmatprep.subr.mxu0 0.0
    %4028 = vmatpush2.msra.mxu0 0.0
    %4029 = vmatprep.subr.mxu0 0.0
    %4030 = vmatpush2.msra.mxu0 0.0
    %4031 = vmatprep.subr.mxu0 0.0
    %4032 = vmatpush2.msra.mxu0 0.0
    %4033 = vmatprep.subr.mxu0 0.0
    %4034 = vmatpush2.msra.mxu0 0.0
    %4035 = vmatprep.subr.mxu0 0.0
    %4036 = vmatpush2.msra.mxu0 0.0
    %4037 = vmatprep.subr.mxu0 0.0
    %4038 = vmatpush2.msra.mxu0 0.0
    %4039 = vmatprep.subr.mxu0 0.0
    %4040 = vmatpush2.msra.mxu0 0.0
    %4041 = vmatprep.subr.mxu0 0.0
    %4042 = vmatpush2.msra.mxu0 0.0
    %4043 = vmatprep.subr.mxu0 0.0
    %4044 = vmatpush2.msra.mxu0 0.0
    %4045 = vmatprep.subr.mxu0 0.0
    %4046 = vmatpush2.msra.mxu0 0.0
    %4047 = vmatprep.subr.mxu0 0.0
    %4048 = vmatpush2.msra.mxu0 0.0
    %4049 = vmatprep.subr.mxu0 0.0
    %4050 = vmatpush2.msra.mxu0 0.0
    %4051 = vmatprep.subr.mxu0 0.0
    %4052 = vmatpush2.msra.mxu0 0.0
    %4053 = vmatprep.subr.mxu0 0.0
    %4054 = vmatpush2.msra.mxu0 0.0
    %4055 = vmatprep.subr.mxu0 0.0
    %4056 = vmatpush2.msra.mxu0 0.0
    %4057 = vmatprep.subr.mxu0 0.0
    %4058 = vmatpush2.msra.mxu0 0.0
    %4059 = vmatprep.mubr.f32.mxu0 0.0
    %4060 = vmatmul.mubr.f32.gmra.mxu0 %v3984
    %v4061 = vpop.f32.mrf.mxu0
    %v4062 = vadd.f32 0.0, %v4061
    %v4063 = vpop.f32.mrf.mxu0
    %v4064 = vadd.f32 0.0, %v4063
    %4065 = vmatprep.mubr.f32.mxu0 0.0
    %4066 = vmatmul.mubr.f32.gmra.mxu0 %v3987
    %v4067 = vpop.f32.mrf.mxu0
    %v4068 = vadd.f32 0.0, %v4067
    %v4069 = vpop.f32.mrf.mxu0
    %v4070 = vadd.f32 0.0, %v4069
    %4071 = vmatprep.mubr.f32.mxu0 0.0
    %4072 = vmatmul.mubr.f32.gmra.mxu0 %v3990
    %v4073 = vpop.f32.mrf.mxu0
    %v4074 = vadd.f32 0.0, %v4073
    %v4075 = vpop.f32.mrf.mxu0
    %v4076 = vadd.f32 0.0, %v4075
    %4077 = vmatprep.mubr.f32.mxu0 0.0
    %4078 = vmatmul.mubr.f32.gmra.mxu0 %v3993
    %v4079 = vpop.f32.mrf.mxu0
    %v4080 = vadd.f32 0.0, %v4079
    %v4081 = vpop.f32.mrf.mxu0
    %v4082 = vadd.f32 0.0, %v4081
    %4083 = vdwg.mxu0
    %v4085 = vsel %vm334, %v3974, 0
    %v4088 = vsel %vm334, %v3975, 0
    %v4091 = vsel %vm334, %v3976, 0
    %v4094 = vsel %vm334, %v3977, 0
    %4096 = vmatprep.subr.mxu0 0.0
    %4097 = vmatpush1.msra.mxu0 0.0
    %4098 = vmatprep.subr.mxu0 0.0
    %4099 = vmatpush1.msra.mxu0 0.0
    %4100 = vmatprep.subr.mxu0 0.0
    %4101 = vmatpush1.msra.mxu0 0.0
    %4102 = vmatprep.subr.mxu0 0.0
    %4103 = vmatpush1.msra.mxu0 0.0
    %4104 = vmatprep.subr.mxu0 0.0
    %4105 = vmatpush1.msra.mxu0 0.0
    %4106 = vmatprep.subr.mxu0 0.0
    %4107 = vmatpush1.msra.mxu0 0.0
    %4108 = vmatprep.subr.mxu0 0.0
    %4109 = vmatpush1.msra.mxu0 0.0
    %4110 = vmatprep.subr.mxu0 0.0
    %4111 = vmatpush1.msra.mxu0 0.0
    %4112 = vmatprep.subr.mxu0 0.0
    %4113 = vmatpush1.msra.mxu0 0.0
    %4114 = vmatprep.subr.mxu0 0.0
    %4115 = vmatpush1.msra.mxu0 0.0
    %4116 = vmatprep.subr.mxu0 0.0
    %4117 = vmatpush1.msra.mxu0 0.0
    %4118 = vmatprep.subr.mxu0 0.0
    %4119 = vmatpush1.msra.mxu0 0.0
    %4120 = vmatprep.subr.mxu0 0.0
    %4121 = vmatpush1.msra.mxu0 0.0
    %4122 = vmatprep.subr.mxu0 0.0
    %4123 = vmatpush1.msra.mxu0 0.0
    %4124 = vmatprep.subr.mxu0 0.0
    %4125 = vmatpush1.msra.mxu0 0.0
    %4126 = vmatprep.subr.mxu0 %v3972
    %4127 = vmatpush1.msra.mxu0 %v3970
    %4128 = vmatprep.subr.mxu0 0.0
    %4129 = vmatpush2.msra.mxu0 0.0
    %4130 = vmatprep.subr.mxu0 0.0
    %4131 = vmatpush2.msra.mxu0 0.0
    %4132 = vmatprep.subr.mxu0 0.0
    %4133 = vmatpush2.msra.mxu0 0.0
    %4134 = vmatprep.subr.mxu0 0.0
    %4135 = vmatpush2.msra.mxu0 0.0
    %4136 = vmatprep.subr.mxu0 0.0
    %4137 = vmatpush2.msra.mxu0 0.0
    %4138 = vmatprep.subr.mxu0 0.0
    %4139 = vmatpush2.msra.mxu0 0.0
    %4140 = vmatprep.subr.mxu0 0.0
    %4141 = vmatpush2.msra.mxu0 0.0
    %4142 = vmatprep.subr.mxu0 0.0
    %4143 = vmatpush2.msra.mxu0 0.0
    %4144 = vmatprep.subr.mxu0 0.0
    %4145 = vmatpush2.msra.mxu0 0.0
    %4146 = vmatprep.subr.mxu0 0.0
    %4147 = vmatpush2.msra.mxu0 0.0
    %4148 = vmatprep.subr.mxu0 0.0
    %4149 = vmatpush2.msra.mxu0 0.0
    %4150 = vmatprep.subr.mxu0 0.0
    %4151 = vmatpush2.msra.mxu0 0.0
    %4152 = vmatprep.subr.mxu0 0.0
    %4153 = vmatpush2.msra.mxu0 0.0
    %4154 = vmatprep.subr.mxu0 0.0
    %4155 = vmatpush2.msra.mxu0 0.0
    %4156 = vmatprep.subr.mxu0 0.0
    %4157 = vmatpush2.msra.mxu0 0.0
    %4158 = vmatprep.subr.mxu0 0.0
    %4159 = vmatpush2.msra.mxu0 0.0
    %4160 = vmatprep.mubr.f32.mxu0 0.0
    %4161 = vmatmul.mubr.f32.gmra.mxu0 %v4085
    %v4162 = vpop.f32.mrf.mxu0
    %v4163 = vadd.f32 %v4062, %v4162
    %v4164 = vpop.f32.mrf.mxu0
    %v4165 = vadd.f32 %v4064, %v4164
    %4166 = vmatprep.mubr.f32.mxu0 0.0
    %4167 = vmatmul.mubr.f32.gmra.mxu0 %v4088
    %v4168 = vpop.f32.mrf.mxu0
    %v4169 = vadd.f32 %v4068, %v4168
    %v4170 = vpop.f32.mrf.mxu0
    %v4171 = vadd.f32 %v4070, %v4170
    %4172 = vmatprep.mubr.f32.mxu0 0.0
    %4173 = vmatmul.mubr.f32.gmra.mxu0 %v4091
    %v4174 = vpop.f32.mrf.mxu0
    %v4175 = vadd.f32 %v4074, %v4174
    %v4176 = vpop.f32.mrf.mxu0
    %v4177 = vadd.f32 %v4076, %v4176
    %4178 = vmatprep.mubr.f32.mxu0 0.0
    %4179 = vmatmul.mubr.f32.gmra.mxu0 %v4094
    %v4180 = vpop.f32.mrf.mxu0
    %v4181 = vadd.f32 %v4080, %v4180
    %v4182 = vpop.f32.mrf.mxu0
    %v4183 = vadd.f32 %v4082, %v4182
    %4184 = vdwg.mxu0
    %s4185 = scalar_lea.vmem %s12, 64
    %v4186 = vld [vmem:[%s4185] sm:$0xff]
    %v4187 = vld [vmem:[%s4185 + $0x8] sm:$0xff]
    %v4188 = vld [vmem:[%s4185 + $0x10] sm:$0xff]
    %v4189 = vld [vmem:[%s4185 + $0x18] sm:$0xff]
    %4191 = vset.pattern.permute.xlu0 0
    %4192 = vperm.xlu0 %4191, %v4186
    %v4193 = vpop.permute.xlu0 %4192
    %4196 = vset.pattern.permute.xlu0 0
    %4197 = vperm.xlu0 %4196, %v4187
    %v4198 = vpop.permute.xlu0 %4197
    %4201 = vset.pattern.permute.xlu0 0
    %4202 = vperm.xlu0 %4201, %v4188
    %v4203 = vpop.permute.xlu0 %4202
    %4206 = vset.pattern.permute.xlu0 0
    %4207 = vperm.xlu0 %4206, %v4189
    %v4208 = vpop.permute.xlu0 %4207
    %v4210 = vmul.f32 %v4163, %v4193
    %v4211 = vmul.f32 %v4165, %v4193
    %v4212 = vmul.f32 %v4169, %v4198
    %v4213 = vmul.f32 %v4171, %v4198
    %v4214 = vmul.f32 %v4175, %v4203
    %v4215 = vmul.f32 %v4177, %v4203
    %v4216 = vmul.f32 %v4181, %v4208
    %v4217 = vmul.f32 %v4183, %v4208
    %s4218 = scalar_lea.vmem %s12, 96
    %v4219 = vld [vmem:[%s4218] sm:$0xff]
    %v4220 = vld [vmem:[%s4218 + $0x8] sm:$0xff]
    %v4221 = vld [vmem:[%s4218 + $0x10] sm:$0xff]
    %v4222 = vld [vmem:[%s4218 + $0x18] sm:$0xff]
    %4224 = vset.pattern.permute.xlu0 0
    %4225 = vperm.xlu0 %4224, %v4219
    %v4226 = vpop.permute.xlu0 %4225
    %4229 = vset.pattern.permute.xlu0 0
    %4230 = vperm.xlu0 %4229, %v4220
    %v4231 = vpop.permute.xlu0 %4230
    %4234 = vset.pattern.permute.xlu0 0
    %4235 = vperm.xlu0 %4234, %v4221
    %v4236 = vpop.permute.xlu0 %4235
    %4239 = vset.pattern.permute.xlu0 0
    %4240 = vperm.xlu0 %4239, %v4222
    %v4241 = vpop.permute.xlu0 %4240
    %v4243 = vadd.f32 %v4210, %v4226
    %v4244 = vadd.f32 %v4211, %v4226
    %v4245 = vadd.f32 %v4212, %v4231
    %v4246 = vadd.f32 %v4213, %v4231
    %v4247 = vadd.f32 %v4214, %v4236
    %v4248 = vadd.f32 %v4215, %v4236
    %v4249 = vadd.f32 %v4216, %v4241
    %v4250 = vadd.f32 %v4217, %v4241
    %v4251 = vxor.u32 %v4243, 2147483648
    %v4252 = vxor.u32 %v4244, 2147483648
    %v4253 = vxor.u32 %v4245, 2147483648
    %v4254 = vxor.u32 %v4246, 2147483648
    %v4255 = vxor.u32 %v4247, 2147483648
    %v4256 = vxor.u32 %v4248, 2147483648
    %v4257 = vxor.u32 %v4249, 2147483648
    %v4258 = vxor.u32 %v4250, 2147483648
    %v4259 = vmul.f32 %v4251, 1.442695
    %v4260 = vpow.pop %v4259
    %v4261 = vmul.f32 %v4252, 1.442695
    %v4262 = vpow.pop %v4261
    %v4263 = vmul.f32 %v4253, 1.442695
    %v4264 = vpow.pop %v4263
    %v4265 = vmul.f32 %v4254, 1.442695
    %v4266 = vpow.pop %v4265
    %v4267 = vmul.f32 %v4255, 1.442695
    %v4268 = vpow.pop %v4267
    %v4269 = vmul.f32 %v4256, 1.442695
    %v4270 = vpow.pop %v4269
    %v4271 = vmul.f32 %v4257, 1.442695
    %v4272 = vpow.pop %v4271
    %v4273 = vmul.f32 %v4258, 1.442695
    %v4274 = vpow.pop %v4273
    %v4275 = vadd.f32 %v4260, 1.0
    %v4276 = vadd.f32 %v4262, 1.0
    %v4277 = vadd.f32 %v4264, 1.0
    %v4278 = vadd.f32 %v4266, 1.0
    %v4279 = vadd.f32 %v4268, 1.0
    %v4280 = vadd.f32 %v4270, 1.0
    %v4281 = vadd.f32 %v4272, 1.0
    %v4282 = vadd.f32 %v4274, 1.0
    %v4283 = vrcp.pop %v4275
    %v4284 = vmul.f32 1.0, %v4283
    %v4285 = vrcp.pop %v4276
    %v4286 = vmul.f32 1.0, %v4285
    %v4287 = vrcp.pop %v4277
    %v4288 = vmul.f32 1.0, %v4287
    %v4289 = vrcp.pop %v4278
    %v4290 = vmul.f32 1.0, %v4289
    %v4291 = vrcp.pop %v4279
    %v4292 = vmul.f32 1.0, %v4291
    %v4293 = vrcp.pop %v4280
    %v4294 = vmul.f32 1.0, %v4293
    %v4295 = vrcp.pop %v4281
    %v4296 = vmul.f32 1.0, %v4295
    %v4297 = vrcp.pop %v4282
    %v4298 = vmul.f32 1.0, %v4297
    %v4299 = vmul.f32 %v4243, %v4284
    %v4300 = vmul.f32 %v4244, %v4286
    %v4301 = vmul.f32 %v4245, %v4288
    %v4302 = vmul.f32 %v4246, %v4290
    %v4303 = vmul.f32 %v4247, %v4292
    %v4304 = vmul.f32 %v4248, %v4294
    %v4305 = vmul.f32 %v4249, %v4296
    %v4306 = vmul.f32 %v4250, %v4298
    %4307 = vst [vmem:[%s18] sm:$0xff] %v4299
    %4308 = vst [vmem:[%s18 + $0x8] sm:$0xff] %v4300
    %4309 = vst [vmem:[%s18 + $0x10] sm:$0xff] %v4301
    %4310 = vst [vmem:[%s18 + $0x18] sm:$0xff] %v4302
    %4311 = vst [vmem:[%s18 + $0x20] sm:$0xff] %v4303
    %4312 = vst [vmem:[%s18 + $0x28] sm:$0xff] %v4304
    %4313 = vst [vmem:[%s18 + $0x30] sm:$0xff] %v4305
    %4314 = vst [vmem:[%s18 + $0x38] sm:$0xff] %v4306
    // Predicated region
    $region78: #{mfff_forward.1} parent=1 // pred_check
      _
    $region79: #{mfff_forward.1} parent=1 // pred_check_branch
      %4316 = sbr.rel (0) target = $region81
    $region80: #{mfff_forward.1} parent=1 // pred_region
      _
    $region81: #{mfff_forward.1} parent=1 // pred_fallthru
      _
    // Predicated region
    $region82: #{mfff_forward.1} parent=1 // pred_check
      _
    $region83: #{mfff_forward.1} parent=1 // pred_check_branch
      %4318 = sbr.rel (0) target = $region85
    $region84: #{mfff_forward.1} parent=1 // pred_region
      _
    $region85: #{mfff_forward.1} parent=1 // pred_fallthru
      _
    %4319 = vsyncpa [#allocation6], 1
  %4320 = vsyncmov [#allocation4]
  %s4321 = vpop.sfrf %4320
  %p4322 = scmp.eq.s32.totalorder %s4321, 0
  %p4323 = pneg %p4322
  %4325 = shalt.err (%p4323)
  %s4326 = scalar_lea.sflag [#allocation4], 1
  %4327 = vsyncmov %s4326
  %s4328 = vpop.sfrf %4327
  %p4329 = scmp.eq.s32.totalorder %s4328, 0
  %p4330 = pneg %p4329
  %4332 = shalt.err (%p4330)

</llo_original>
